<compile_context>
chip_gen: v6e
topology: v6e:2x2x1
jax: 0.10.0
libtpu: 0.0.40
codegen_flags: <defaults>
</compile_context>

<pallas_src>
from functools import partial

import numpy as np
import jax
import jax.numpy as jnp
from jax import lax
from jax.experimental import pallas as pl
from jax.experimental.pallas import tpu as pltpu  # noqa: F401  (TPU backend)

LEAK = 0.2
BN_EPS = 1e-5


def _leaky(x):
    return jnp.where(x > 0, x, LEAK * x)


# ----------------------------------------------------------------------------
# Tiny 0/1 helper matrices, built ONCE inside the (grid-less) kernel with iota.
# Layout convention: activations are (C, L) with L = B*T flattened batch-major,
# i.e. column l = b*T + t.
# ----------------------------------------------------------------------------
def _shift_mats(L, T):
    """(x @ prev)[:, l] = x[:, l-1] (0 at t==0); (x @ nxt)[:, l] = x[:, l+1] (0 at t==T-1)."""
    r = lax.broadcasted_iota(jnp.int32, (L, L), 0)   # source column j
    c = lax.broadcasted_iota(jnp.int32, (L, L), 1)   # destination column l
    prev = jnp.where((c == r + 1) & (c % T != 0), 1.0, 0.0)
    nxt = jnp.where((c == r - 1) & (c % T != T - 1), 1.0, 0.0)
    return prev.astype(jnp.float32), nxt.astype(jnp.float32)


def _upsample_mats(L, T):
    """ConvTranspose1d(k=4,s=2,p=1) scatter matrices, (L, 2L) each:
       out = y1 @ E + y2 @ O + y3 @ E1 + y0 @ O1  (even/odd interleave + taps 3/0 shifts)."""
    r = lax.broadcasted_iota(jnp.int32, (L, 2 * L), 0)
    c = lax.broadcasted_iota(jnp.int32, (L, 2 * L), 1)
    e = jnp.where(c == 2 * r, 1.0, 0.0)
    o = jnp.where(c == 2 * r + 1, 1.0, 0.0)
    e1 = jnp.where((c == 2 * r + 2) & (r % T != T - 1), 1.0, 0.0)
    o1 = jnp.where((c == 2 * r - 1) & (r % T != 0), 1.0, 0.0)
    return (e.astype(jnp.float32), o.astype(jnp.float32),
            e1.astype(jnp.float32), o1.astype(jnp.float32))


def _scatter_mat(n, L0, t0, t):
    """(N, L0) matrix placing column n of a (C, N) block at flattened column n*t0 + t."""
    r = lax.broadcasted_iota(jnp.int32, (n, L0), 0)
    c = lax.broadcasted_iota(jnp.int32, (n, L0), 1)
    return jnp.where(c == r * t0 + t, 1.0, 0.0).astype(jnp.float32)


# ----------------------------------------------------------------------------
# The single fused kernel: noise_dec -> 4 x [conv3+BN+LReLU, upconv+BN+LReLU] -> logits.
# All BN/bias already folded into the weight operands.
# ----------------------------------------------------------------------------
def _fused_kernel(noise_t_ref, w1_ref, b1_ref, w2s_ref, b2s_ref,
                  wc_ref, bc_ref, wu_ref, bu_ref, wlt_ref, bl_ref, o_ref,
                  *, n_noise, t0, t_dec, channels):
    f32 = jnp.float32
    dot = partial(jnp.dot, preferred_element_type=f32)
    C = channels

    # ---- noise_dec: Linear+BN+LeakyReLU, then Linear producing the decoder layout ----
    # h1t: (in_noise_dim, N)   (column-vector orientation; no in-kernel transpose needed)
    h1t = _leaky(dot(w1_ref[...], noise_t_ref[...]) + b1_ref[...])
    L0 = n_noise * t0
    # second Linear, its rows pre-permuted host-side so the result lands directly in
    # (C, N*T0) batch-major layout: g[c, n*t0 + t] = Linear2(h1)[n, c*t0 + t]
    g = jnp.zeros((C, L0), f32)
    for t in range(t0):
        gt = dot(w2s_ref[t], h1t) + b2s_ref[t]            # (C, N)
        g = g + dot(gt, _scatter_mat(n_noise, L0, t0, t))  # scatter to columns n*t0+t
    x = g                                                  # (C, L0)

    # ---- decoder: 4 x [conv3 (k=3,s=1,p=1) , ConvTranspose1d (k=4,s=2,p=1)] ----
    T = t_dec
    for i in range(4):
        L = x.shape[-1]
        # conv3: one MXU dot with the 3 taps stacked on the contraction dim
        sp, sn = _shift_mats(L, T)
        x_prev = dot(x, sp)
        x_next = dot(x, sn)
        xcat = jnp.concatenate([x_prev, x, x_next], axis=0)          # (3C, L)
        x = _leaky(dot(wc_ref[i], xcat) + bc_ref[i])                 # (C, L)

        # transpose conv: one (4C,C)x(C,L) dot, then even/odd interleave to (C, 2L)
        Y = dot(wu_ref[i], x)                                        # (4C, L)
        y0 = Y[0 * C:1 * C]
        y1 = Y[1 * C:2 * C]
        y2 = Y[2 * C:3 * C]
        y3 = Y[3 * C:4 * C]
        E, O, E1, O1 = _upsample_mats(L, T)
        x = _leaky(dot(y1, E) + dot(y2, O) + dot(y3, E1) + dot(y0, O1) + bu_ref[i])
        T = 2 * T

    # ---- logits (1x1 conv), written time-major (B*T, out_feats): no XLA transpose ----
    o_ref[...] = dot(x.T, wlt_ref[...]) + bl_ref[...]


def fused_forward(noise, kp, *, cfg, sample_flag):
    N = noise.shape[0]
    C = cfg["in_channels"]
    F = cfg["out_feats"]
    T0 = cfg["time_steps"] // 2 ** 4
    assert cfg["time_steps"] % 2 ** 4 == 0
    assert cfg["out_noise_dim"] == cfg["in_channels"]
    if sample_flag:
        B_dec, T_dec = 1, N * T0
    else:
        B_dec, T_dec = N, T0
    L_out = N * cfg["time_steps"]                       # == B_dec * T_dec * 16

    kernel = partial(_fused_kernel, n_noise=N, t0=T0, t_dec=T_dec, channels=C)
    out = pl.pallas_call(
        kernel,
        out_shape=jax.ShapeDtypeStruct((L_out, F), jnp.float32),
        # no grid / no BlockSpecs: single invocation, every operand fully VMEM-resident.
        # TODO(synk): on v7x (2 TensorCores) a 2-wide core-parallel split could be added,
        # but this workload is launch-bound and fits one core, so it is kept fused.
    )(noise.T, kp["w1"], kp["b1"], kp["w2s"], kp["b2s"],
      kp["wc"], kp["bc"], kp["wu"], kp["bu"], kp["wlt"], kp["bl"])
    return out.reshape(B_dec, T_dec * 2 ** 4, F)


# ----------------------------------------------------------------------------
# Parameters: raw (PyTorch-like) init + host-side folding/packing for the kernel
# ----------------------------------------------------------------------------
def _bn_params(key, dim):
    k1, k2, k3, k4 = jax.random.split(key, 4)
    gamma = 1.0 + 0.1 * jax.random.normal(k1, (dim,), jnp.float32)
    beta = 0.1 * jax.random.normal(k2, (dim,), jnp.float32)
    mean = 0.1 * jax.random.normal(k3, (dim,), jnp.float32)
    var = 1.0 + 0.1 * jnp.abs(jax.random.normal(k4, (dim,), jnp.float32))
    scale = gamma / jnp.sqrt(var + BN_EPS)
    shift = beta - mean * scale
    return scale, shift


def init_params(key, *, time_steps, in_channels, out_feats, in_noise_dim, out_noise_dim):
    keys = iter(jax.random.split(key, 64))
    D = in_noise_dim
    D2 = time_steps * out_noise_dim // 2 ** 4
    C = in_channels

    w1 = (1.0 / np.sqrt(D)) * jax.random.normal(next(keys), (D, D), jnp.float32)
    b1 = 0.1 * jax.random.normal(next(keys), (D,), jnp.float32)
    s1, t1 = _bn_params(next(keys), D)
    w2 = (1.0 / np.sqrt(D)) * jax.random.normal(next(keys), (D2, D), jnp.float32)
    b2 = 0.1 * jax.random.normal(next(keys), (D2,), jnp.float32)
    noise_dec = dict(w1=w1, b1=b1, s1=s1, t1=t1, w2=w2, b2=b2)

    decoder = []
    for _ in range(4):
        cw = (1.0 / np.sqrt(3 * C)) * jax.random.normal(next(keys), (C, C, 3), jnp.float32)
        cb = 0.1 * jax.random.normal(next(keys), (C,), jnp.float32)
        cs, ct = _bn_params(next(keys), C)
        uw = (1.0 / np.sqrt(4 * C)) * jax.random.normal(next(keys), (C, C, 4), jnp.float32)
        ub = 0.1 * jax.random.normal(next(keys), (C,), jnp.float32)
        us, ut = _bn_params(next(keys), C)
        decoder.append(dict(conv_w=cw, conv_b=cb, conv_s=cs, conv_t=ct,
                            up_w=uw, up_b=ub, up_s=us, up_t=ut))

    wl = (1.0 / np.sqrt(C)) * jax.random.normal(next(keys), (out_feats, C), jnp.float32)
    bl = 0.1 * jax.random.normal(next(keys), (out_feats,), jnp.float32)
    return dict(noise_dec=noise_dec, decoder=decoder, logits=dict(w=wl, b=bl))


def prepare_kernel_params(raw, cfg):
    """Fold BN (inference) + biases into weights and pack per-stage weights."""
    C = cfg["in_channels"]
    T0 = cfg["time_steps"] // 2 ** 4

    nd = raw["noise_dec"]
    w1f = nd["s1"][:, None] * nd["w1"]                              # (D, D)
    b1f = (nd["s1"] * nd["b1"] + nd["t1"])[:, None]                 # (D, 1)
    D = nd["w1"].shape[0]
    w2s = jnp.transpose(nd["w2"].reshape(C, T0, D), (1, 0, 2))      # (T0, C, D)
    b2s = jnp.transpose(nd["b2"].reshape(C, T0))[:, :, None]        # (T0, C, 1)

    wc_l, bc_l, wu_l, bu_l = [], [], [], []
    for st in raw["decoder"]:
        cs = st["conv_s"]
        wsc = cs[:, None, None] * st["conv_w"]                      # (C, C, 3), BN-folded
        wc = jnp.concatenate([wsc[:, :, 0], wsc[:, :, 1], wsc[:, :, 2]], axis=1)   # (C, 3C)
        bc = (cs * st["conv_b"] + st["conv_t"])[:, None]            # (C, 1)

        us = st["up_s"]
        wkT = jnp.transpose(st["up_w"], (2, 1, 0))                  # (4, Cout, Cin)
        wu = jnp.concatenate([us[:, None] * wkT[k] for k in range(4)], axis=0)     # (4C, C)
        bu = (us * st["up_b"] + st["up_t"])[:, None]                # (C, 1)

        wc_l.append(wc); bc_l.append(bc); wu_l.append(wu); bu_l.append(bu)

    lg = raw["logits"]
    return dict(w1=w1f, b1=b1f, w2s=w2s, b2s=b2s,
                wc=jnp.stack(wc_l), bc=jnp.stack(bc_l),
                wu=jnp.stack(wu_l), bu=jnp.stack(bu_l),
                wlt=lg["w"].T, bl=lg["b"][None, :])


# ----------------------------------------------------------------------------
# Module forward (matches the PyTorch signature / semantics)
# ----------------------------------------------------------------------------
def joint_late_cluster_noise2pose3_g_forward(x, y, params, cfg, *, noise=None,
                                             time_steps=None, sample_flag=False):
    internal_losses = []
    labels = x[-1]   # extracted and unused, as in the PyTorch forward
    del labels, y, time_steps
    if noise is None:
        # TODO(synk): torch.rand default-noise path uses host RNG; pass `noise` explicitly.
        raise ValueError("pass `noise` explicitly")
    out = fused_forward(noise, params, cfg=cfg, sample_flag=sample_flag)
    return out, internal_losses


# ----------------------------------------------------------------------------
# Pure-JAX reference (lax.conv) on the RAW parameters — numerical check only.
# ----------------------------------------------------------------------------
def reference_forward(noise, raw, cfg, sample_flag=False):
    nd = raw["noise_dec"]
    h = noise @ nd["w1"].T + nd["b1"]
    h = h * nd["s1"] + nd["t1"]
    h = jnp.where(h > 0, h, LEAK * h)
    h = h @ nd["w2"].T + nd["b2"]
    C = cfg["in_channels"]
    T0 = cfg["time_steps"] // 2 ** 4
    x = h.reshape(-1, C, T0)
    if sample_flag:
        x = jnp.transpose(x, (1, 0, 2)).reshape(1, C, -1)
    for st in raw["decoder"]:
        y = lax.conv_general_dilated(x, st["conv_w"], (1,), ((1, 1),),
                                     dimension_numbers=("NCH", "OIH", "NCH"))
        y = y + st["conv_b"][None, :, None]
        y = y * st["conv_s"][None, :, None] + st["conv_t"][None, :, None]
        x = jnp.where(y > 0, y, LEAK * y)
        w_oih = jnp.flip(jnp.transpose(st["up_w"], (1, 0, 2)), axis=-1)   # (Cout, Cin, 4)
        y = lax.conv_general_dilated(x, w_oih, (1,), ((2, 2),), lhs_dilation=(2,),
                                     dimension_numbers=("NCH", "OIH", "NCH"))
        y = y + st["up_b"][None, :, None]
        y = y * st["up_s"][None, :, None] + st["up_t"][None, :, None]
        x = jnp.where(y > 0, y, LEAK * y)
    lg = raw["logits"]
    y = lax.conv_general_dilated(x, lg["w"][:, :, None], (1,), ((0, 0),),
                                 dimension_numbers=("NCH", "OIH", "NCH")) + lg["b"][None, :, None]
    return jnp.transpose(y, (0, 2, 1))


if __name__ == "__main__":
    # Small hyperparameters consistent with the module: time_steps divisible by 2**4,
    # out_noise_dim == in_channels (required by the decoder input).
    cfg = dict(time_steps=32, in_channels=32, out_feats=24,
               in_noise_dim=64, out_noise_dim=32)
    B = 2

    key = jax.random.PRNGKey(0)
    k_par, k_noise, k_y, k_lab = jax.random.split(key, 4)
    raw_params = init_params(k_par, **cfg)
    kparams = prepare_kernel_params(raw_params, cfg)

    noise = jax.random.uniform(k_noise, (B, cfg["in_noise_dim"]), jnp.float32)
    y = jax.random.normal(k_y, (B, cfg["time_steps"], cfg["out_feats"]), jnp.float32)
    x_in = [jax.random.normal(k_lab, (B, cfg["time_steps"], 8), jnp.float32)]  # x[-1]=labels

    # --- standard path ---
    out, internal_losses = joint_late_cluster_noise2pose3_g_forward(
        x_in, y, kparams, cfg, noise=noise, sample_flag=False)
    out = jax.block_until_ready(out)
    assert out.shape == (B, cfg["time_steps"], cfg["out_feats"])
    assert internal_losses == []
    ref = jax.block_until_ready(reference_forward(noise, raw_params, cfg, sample_flag=False))
    np.testing.assert_allclose(np.asarray(out), np.asarray(ref), rtol=2e-3, atol=2e-3)

    # --- sample_flag path (noise rows are concatenated along time, batch becomes 1) ---
    n_chunks = 2
    noise_s = jax.random.uniform(k_noise, (n_chunks, cfg["in_noise_dim"]), jnp.float32)
    y_s = jax.random.normal(k_y, (1, n_chunks * cfg["time_steps"], cfg["out_feats"]), jnp.float32)
    out_s, _ = joint_late_cluster_noise2pose3_g_forward(
        x_in, y_s, kparams, cfg, noise=noise_s, sample_flag=True)
    out_s = jax.block_until_ready(out_s)
    assert out_s.shape == (1, n_chunks * cfg["time_steps"], cfg["out_feats"])
    ref_s = jax.block_until_ready(reference_forward(noise_s, raw_params, cfg, sample_flag=True))
    np.testing.assert_allclose(np.asarray(out_s), np.asarray(ref_s), rtol=2e-3, atol=2e-3)

    print("KERNEL_OK")
</pallas_src>

<mosaic_0001>
module attributes {stable_mosaic.version = 11 : i64} {
  func.func @_fused_kernel(%arg0: memref<64x2xf32, #tpu.memory_space<vmem>>, %arg1: memref<64x64xf32, #tpu.memory_space<vmem>>, %arg2: memref<64x1xf32, #tpu.memory_space<vmem>>, %arg3: memref<2x32x64xf32, #tpu.memory_space<vmem>>, %arg4: memref<2x32x1xf32, #tpu.memory_space<vmem>>, %arg5: memref<4x32x96xf32, #tpu.memory_space<vmem>>, %arg6: memref<4x32x1xf32, #tpu.memory_space<vmem>>, %arg7: memref<4x128x32xf32, #tpu.memory_space<vmem>>, %arg8: memref<4x32x1xf32, #tpu.memory_space<vmem>>, %arg9: memref<32x24xf32, #tpu.memory_space<vmem>>, %arg10: memref<1x24xf32, #tpu.memory_space<vmem>>, %arg11: memref<64x24xf32, #tpu.memory_space<vmem>>) attributes {dimension_semantics = [], scalar_prefetch = 0 : i64, scratch_operands = 0 : i64, tpu.core_type = #tpu.core_type<tc>} {
    %c0 = arith.constant 0 : index
    %c0_0 = arith.constant 0 : index
    %0 = vector.load %arg1[%c0, %c0_0] : memref<64x64xf32, #tpu.memory_space<vmem>>, vector<64x64xf32>
    %c0_1 = arith.constant 0 : index
    %c0_2 = arith.constant 0 : index
    %1 = vector.load %arg0[%c0_1, %c0_2] : memref<64x2xf32, #tpu.memory_space<vmem>>, vector<64x2xf32>
    %cst = arith.constant dense<0.000000e+00> : vector<64x2xf32>
    %2 = tpu.matmul %0, %1, %cst {dimension_numbers = #tpu.dot_dimension_numbers<[1], [0], [0], [1], [0, 0, 1, 1], [], []>} : vector<64x64xf32>, vector<64x2xf32>, vector<64x2xf32> -> vector<64x2xf32>
    %c0_3 = arith.constant 0 : index
    %c0_4 = arith.constant 0 : index
    %3 = vector.load %arg2[%c0_3, %c0_4] : memref<64x1xf32, #tpu.memory_space<vmem>>, vector<64x1xf32>
    %4 = vector.broadcast %3 : vector<64x1xf32> to vector<64x2xf32>
    %5 = arith.addf %2, %4 : vector<64x2xf32>
    %cst_5 = arith.constant 0.000000e+00 : f32
    %6 = vector.broadcast %cst_5 : f32 to vector<64x2xf32>
    %7 = arith.cmpf ogt, %5, %6 : vector<64x2xf32>
    %cst_6 = arith.constant 2.000000e-01 : f32
    %8 = vector.broadcast %cst_6 : f32 to vector<64x2xf32>
    %9 = arith.mulf %8, %5 : vector<64x2xf32>
    %10 = arith.select %7, %5, %9 : vector<64x2xi1>, vector<64x2xf32>
    %cst_7 = arith.constant 0.000000e+00 : f32
    %11 = vector.broadcast %cst_7 : f32 to vector<32x4xf32>
    %c0_8 = arith.constant 0 : index
    %c0_9 = arith.constant 0 : index
    %c0_10 = arith.constant 0 : index
    %12 = vector.load %arg3[%c0_8, %c0_9, %c0_10] : memref<2x32x64xf32, #tpu.memory_space<vmem>>, vector<1x32x64xf32>
    %13 = vector.shape_cast %12 : vector<1x32x64xf32> to vector<32x64xf32>
    %cst_11 = arith.constant dense<0.000000e+00> : vector<32x2xf32>
    %14 = tpu.matmul %13, %10, %cst_11 {dimension_numbers = #tpu.dot_dimension_numbers<[1], [0], [0], [1], [0, 0, 1, 1], [], []>} : vector<32x64xf32>, vector<64x2xf32>, vector<32x2xf32> -> vector<32x2xf32>
    %c0_12 = arith.constant 0 : index
    %c0_13 = arith.constant 0 : index
    %c0_14 = arith.constant 0 : index
    %15 = vector.load %arg4[%c0_12, %c0_13, %c0_14] : memref<2x32x1xf32, #tpu.memory_space<vmem>>, vector<1x32x1xf32>
    %16 = vector.shape_cast %15 : vector<1x32x1xf32> to vector<32x1xf32>
    %17 = vector.broadcast %16 : vector<32x1xf32> to vector<32x2xf32>
    %18 = arith.addf %14, %17 : vector<32x2xf32>
    %19 = tpu.iota {dimensions = array<i32: 0>} : vector<2x4xi32>
    %20 = tpu.iota {dimensions = array<i32: 1>} : vector<2x4xi32>
    %c2_i32 = arith.constant 2 : i32
    %21 = vector.broadcast %c2_i32 : i32 to vector<2x4xi32>
    %22 = arith.muli %19, %21 : vector<2x4xi32>
    %c0_i32 = arith.constant 0 : i32
    %23 = vector.broadcast %c0_i32 : i32 to vector<2x4xi32>
    %24 = arith.addi %22, %23 : vector<2x4xi32>
    %25 = arith.cmpi eq, %20, %24 : vector<2x4xi32>
    %cst_15 = arith.constant 1.000000e+00 : f32
    %cst_16 = arith.constant 0.000000e+00 : f32
    %26 = vector.broadcast %cst_15 : f32 to vector<2x4xf32>
    %27 = vector.broadcast %cst_16 : f32 to vector<2x4xf32>
    %28 = arith.select %25, %26, %27 : vector<2x4xi1>, vector<2x4xf32>
    %cst_17 = arith.constant dense<0.000000e+00> : vector<32x4xf32>
    %29 = tpu.matmul %18, %28, %cst_17 {dimension_numbers = #tpu.dot_dimension_numbers<[1], [0], [0], [1], [0, 0, 1, 1], [], []>} : vector<32x2xf32>, vector<2x4xf32>, vector<32x4xf32> -> vector<32x4xf32>
    %30 = arith.addf %11, %29 : vector<32x4xf32>
    %c1 = arith.constant 1 : index
    %c0_18 = arith.constant 0 : index
    %c0_19 = arith.constant 0 : index
    %31 = vector.load %arg3[%c1, %c0_18, %c0_19] : memref<2x32x64xf32, #tpu.memory_space<vmem>>, vector<1x32x64xf32>
    %32 = vector.shape_cast %31 : vector<1x32x64xf32> to vector<32x64xf32>
    %cst_20 = arith.constant dense<0.000000e+00> : vector<32x2xf32>
    %33 = tpu.matmul %32, %10, %cst_20 {dimension_numbers = #tpu.dot_dimension_numbers<[1], [0], [0], [1], [0, 0, 1, 1], [], []>} : vector<32x64xf32>, vector<64x2xf32>, vector<32x2xf32> -> vector<32x2xf32>
    %c1_21 = arith.constant 1 : index
    %c0_22 = arith.constant 0 : index
    %c0_23 = arith.constant 0 : index
    %34 = vector.load %arg4[%c1_21, %c0_22, %c0_23] : memref<2x32x1xf32, #tpu.memory_space<vmem>>, vector<1x32x1xf32>
    %35 = vector.shape_cast %34 : vector<1x32x1xf32> to vector<32x1xf32>
    %36 = vector.broadcast %35 : vector<32x1xf32> to vector<32x2xf32>
    %37 = arith.addf %33, %36 : vector<32x2xf32>
    %38 = tpu.iota {dimensions = array<i32: 0>} : vector<2x4xi32>
    %39 = tpu.iota {dimensions = array<i32: 1>} : vector<2x4xi32>
    %c2_i32_24 = arith.constant 2 : i32
    %40 = vector.broadcast %c2_i32_24 : i32 to vector<2x4xi32>
    %41 = arith.muli %38, %40 : vector<2x4xi32>
    %c1_i32 = arith.constant 1 : i32
    %42 = vector.broadcast %c1_i32 : i32 to vector<2x4xi32>
    %43 = arith.addi %41, %42 : vector<2x4xi32>
    %44 = arith.cmpi eq, %39, %43 : vector<2x4xi32>
    %cst_25 = arith.constant 1.000000e+00 : f32
    %cst_26 = arith.constant 0.000000e+00 : f32
    %45 = vector.broadcast %cst_25 : f32 to vector<2x4xf32>
    %46 = vector.broadcast %cst_26 : f32 to vector<2x4xf32>
    %47 = arith.select %44, %45, %46 : vector<2x4xi1>, vector<2x4xf32>
    %cst_27 = arith.constant dense<0.000000e+00> : vector<32x4xf32>
    %48 = tpu.matmul %37, %47, %cst_27 {dimension_numbers = #tpu.dot_dimension_numbers<[1], [0], [0], [1], [0, 0, 1, 1], [], []>} : vector<32x2xf32>, vector<2x4xf32>, vector<32x4xf32> -> vector<32x4xf32>
    %49 = arith.addf %30, %48 : vector<32x4xf32>
    %50 = tpu.iota {dimensions = array<i32: 0>} : vector<4x4xi32>
    %51 = tpu.iota {dimensions = array<i32: 1>} : vector<4x4xi32>
    %c1_i32_28 = arith.constant 1 : i32
    %52 = vector.broadcast %c1_i32_28 : i32 to vector<4x4xi32>
    %53 = arith.addi %50, %52 : vector<4x4xi32>
    %54 = arith.cmpi eq, %51, %53 : vector<4x4xi32>
    %c2_i32_29 = arith.constant 2 : i32
    %c0_i32_30 = arith.constant 0 : i32
    %55 = arith.cmpi eq, %c2_i32_29, %c0_i32_30 : i32
    %c1_i32_31 = arith.constant 1 : i32
    %56 = arith.select %55, %c1_i32_31, %c2_i32_29 : i32
    %57 = vector.broadcast %56 : i32 to vector<4x4xi32>
    %58 = arith.remsi %51, %57 : vector<4x4xi32>
    %c0_i32_32 = arith.constant 0 : i32
    %59 = vector.broadcast %c0_i32_32 : i32 to vector<4x4xi32>
    %60 = arith.cmpi ne, %58, %59 : vector<4x4xi32>
    %c0_i32_33 = arith.constant 0 : i32
    %61 = vector.broadcast %c0_i32_33 : i32 to vector<4x4xi32>
    %62 = arith.cmpi slt, %58, %61 : vector<4x4xi32>
    %c0_i32_34 = arith.constant 0 : i32
    %63 = arith.cmpi slt, %56, %c0_i32_34 : i32
    %64 = vector.broadcast %63 : i1 to vector<4x4xi1>
    %65 = vector.broadcast %64 : vector<4x4xi1> to vector<4x4xi1>
    %66 = arith.xori %62, %65 : vector<4x4xi1>
    %67 = arith.andi %66, %60 : vector<4x4xi1>
    %68 = vector.broadcast %56 : i32 to vector<4x4xi32>
    %69 = arith.addi %58, %68 : vector<4x4xi32>
    %70 = arith.select %67, %69, %58 : vector<4x4xi1>, vector<4x4xi32>
    %c0_i32_35 = arith.constant 0 : i32
    %71 = vector.broadcast %c0_i32_35 : i32 to vector<4x4xi32>
    %72 = arith.cmpi ne, %70, %71 : vector<4x4xi32>
    %73 = arith.andi %54, %72 : vector<4x4xi1>
    %cst_36 = arith.constant 1.000000e+00 : f32
    %cst_37 = arith.constant 0.000000e+00 : f32
    %74 = vector.broadcast %cst_36 : f32 to vector<4x4xf32>
    %75 = vector.broadcast %cst_37 : f32 to vector<4x4xf32>
    %76 = arith.select %73, %74, %75 : vector<4x4xi1>, vector<4x4xf32>
    %c1_i32_38 = arith.constant 1 : i32
    %77 = vector.broadcast %c1_i32_38 : i32 to vector<4x4xi32>
    %78 = arith.subi %50, %77 : vector<4x4xi32>
    %79 = arith.cmpi eq, %51, %78 : vector<4x4xi32>
    %c2_i32_39 = arith.constant 2 : i32
    %c0_i32_40 = arith.constant 0 : i32
    %80 = arith.cmpi eq, %c2_i32_39, %c0_i32_40 : i32
    %c1_i32_41 = arith.constant 1 : i32
    %81 = arith.select %80, %c1_i32_41, %c2_i32_39 : i32
    %82 = vector.broadcast %81 : i32 to vector<4x4xi32>
    %83 = arith.remsi %51, %82 : vector<4x4xi32>
    %c0_i32_42 = arith.constant 0 : i32
    %84 = vector.broadcast %c0_i32_42 : i32 to vector<4x4xi32>
    %85 = arith.cmpi ne, %83, %84 : vector<4x4xi32>
    %c0_i32_43 = arith.constant 0 : i32
    %86 = vector.broadcast %c0_i32_43 : i32 to vector<4x4xi32>
    %87 = arith.cmpi slt, %83, %86 : vector<4x4xi32>
    %c0_i32_44 = arith.constant 0 : i32
    %88 = arith.cmpi slt, %81, %c0_i32_44 : i32
    %89 = vector.broadcast %88 : i1 to vector<4x4xi1>
    %90 = vector.broadcast %89 : vector<4x4xi1> to vector<4x4xi1>
    %91 = arith.xori %87, %90 : vector<4x4xi1>
    %92 = arith.andi %91, %85 : vector<4x4xi1>
    %93 = vector.broadcast %81 : i32 to vector<4x4xi32>
    %94 = arith.addi %83, %93 : vector<4x4xi32>
    %95 = arith.select %92, %94, %83 : vector<4x4xi1>, vector<4x4xi32>
    %c1_i32_45 = arith.constant 1 : i32
    %96 = vector.broadcast %c1_i32_45 : i32 to vector<4x4xi32>
    %97 = arith.cmpi ne, %95, %96 : vector<4x4xi32>
    %98 = arith.andi %79, %97 : vector<4x4xi1>
    %cst_46 = arith.constant 1.000000e+00 : f32
    %cst_47 = arith.constant 0.000000e+00 : f32
    %99 = vector.broadcast %cst_46 : f32 to vector<4x4xf32>
    %100 = vector.broadcast %cst_47 : f32 to vector<4x4xf32>
    %101 = arith.select %98, %99, %100 : vector<4x4xi1>, vector<4x4xf32>
    %cst_48 = arith.constant dense<0.000000e+00> : vector<32x4xf32>
    %102 = tpu.matmul %49, %76, %cst_48 {dimension_numbers = #tpu.dot_dimension_numbers<[1], [0], [0], [1], [0, 0, 1, 1], [], []>} : vector<32x4xf32>, vector<4x4xf32>, vector<32x4xf32> -> vector<32x4xf32>
    %cst_49 = arith.constant dense<0.000000e+00> : vector<32x4xf32>
    %103 = tpu.matmul %49, %101, %cst_49 {dimension_numbers = #tpu.dot_dimension_numbers<[1], [0], [0], [1], [0, 0, 1, 1], [], []>} : vector<32x4xf32>, vector<4x4xf32>, vector<32x4xf32> -> vector<32x4xf32>
    %104 = tpu.concatenate %102, %49, %103 in 0 : vector<32x4xf32>, vector<32x4xf32>, vector<32x4xf32> -> vector<96x4xf32>
    %c0_50 = arith.constant 0 : index
    %c0_51 = arith.constant 0 : index
    %c0_52 = arith.constant 0 : index
    %105 = vector.load %arg5[%c0_50, %c0_51, %c0_52] : memref<4x32x96xf32, #tpu.memory_space<vmem>>, vector<1x32x96xf32>
    %106 = vector.shape_cast %105 : vector<1x32x96xf32> to vector<32x96xf32>
    %cst_53 = arith.constant dense<0.000000e+00> : vector<32x4xf32>
    %107 = tpu.matmul %106, %104, %cst_53 {dimension_numbers = #tpu.dot_dimension_numbers<[1], [0], [0], [1], [0, 0, 1, 1], [], []>} : vector<32x96xf32>, vector<96x4xf32>, vector<32x4xf32> -> vector<32x4xf32>
    %c0_54 = arith.constant 0 : index
    %c0_55 = arith.constant 0 : index
    %c0_56 = arith.constant 0 : index
    %108 = vector.load %arg6[%c0_54, %c0_55, %c0_56] : memref<4x32x1xf32, #tpu.memory_space<vmem>>, vector<1x32x1xf32>
    %109 = vector.shape_cast %108 : vector<1x32x1xf32> to vector<32x1xf32>
    %110 = vector.broadcast %109 : vector<32x1xf32> to vector<32x4xf32>
    %111 = arith.addf %107, %110 : vector<32x4xf32>
    %cst_57 = arith.constant 0.000000e+00 : f32
    %112 = vector.broadcast %cst_57 : f32 to vector<32x4xf32>
    %113 = arith.cmpf ogt, %111, %112 : vector<32x4xf32>
    %cst_58 = arith.constant 2.000000e-01 : f32
    %114 = vector.broadcast %cst_58 : f32 to vector<32x4xf32>
    %115 = arith.mulf %114, %111 : vector<32x4xf32>
    %116 = arith.select %113, %111, %115 : vector<32x4xi1>, vector<32x4xf32>
    %c0_59 = arith.constant 0 : index
    %c0_60 = arith.constant 0 : index
    %c0_61 = arith.constant 0 : index
    %117 = vector.load %arg7[%c0_59, %c0_60, %c0_61] : memref<4x128x32xf32, #tpu.memory_space<vmem>>, vector<1x128x32xf32>
    %118 = vector.shape_cast %117 : vector<1x128x32xf32> to vector<128x32xf32>
    %cst_62 = arith.constant dense<0.000000e+00> : vector<128x4xf32>
    %119 = tpu.matmul %118, %116, %cst_62 {dimension_numbers = #tpu.dot_dimension_numbers<[1], [0], [0], [1], [0, 0, 1, 1], [], []>} : vector<128x32xf32>, vector<32x4xf32>, vector<128x4xf32> -> vector<128x4xf32>
    %120 = vector.extract_strided_slice %119 {offsets = [0, 0], sizes = [32, 4], strides = [1, 1]} : vector<128x4xf32> to vector<32x4xf32>
    %121 = vector.extract_strided_slice %119 {offsets = [32, 0], sizes = [32, 4], strides = [1, 1]} : vector<128x4xf32> to vector<32x4xf32>
    %122 = vector.extract_strided_slice %119 {offsets = [64, 0], sizes = [32, 4], strides = [1, 1]} : vector<128x4xf32> to vector<32x4xf32>
    %123 = vector.extract_strided_slice %119 {offsets = [96, 0], sizes = [32, 4], strides = [1, 1]} : vector<128x4xf32> to vector<32x4xf32>
    %124 = tpu.iota {dimensions = array<i32: 0>} : vector<4x8xi32>
    %125 = tpu.iota {dimensions = array<i32: 1>} : vector<4x8xi32>
    %c2_i32_63 = arith.constant 2 : i32
    %126 = vector.broadcast %c2_i32_63 : i32 to vector<4x8xi32>
    %127 = arith.muli %126, %124 : vector<4x8xi32>
    %128 = arith.cmpi eq, %125, %127 : vector<4x8xi32>
    %cst_64 = arith.constant 1.000000e+00 : f32
    %cst_65 = arith.constant 0.000000e+00 : f32
    %129 = vector.broadcast %cst_64 : f32 to vector<4x8xf32>
    %130 = vector.broadcast %cst_65 : f32 to vector<4x8xf32>
    %131 = arith.select %128, %129, %130 : vector<4x8xi1>, vector<4x8xf32>
    %c2_i32_66 = arith.constant 2 : i32
    %132 = vector.broadcast %c2_i32_66 : i32 to vector<4x8xi32>
    %133 = arith.muli %132, %124 : vector<4x8xi32>
    %c1_i32_67 = arith.constant 1 : i32
    %134 = vector.broadcast %c1_i32_67 : i32 to vector<4x8xi32>
    %135 = arith.addi %133, %134 : vector<4x8xi32>
    %136 = arith.cmpi eq, %125, %135 : vector<4x8xi32>
    %cst_68 = arith.constant 1.000000e+00 : f32
    %cst_69 = arith.constant 0.000000e+00 : f32
    %137 = vector.broadcast %cst_68 : f32 to vector<4x8xf32>
    %138 = vector.broadcast %cst_69 : f32 to vector<4x8xf32>
    %139 = arith.select %136, %137, %138 : vector<4x8xi1>, vector<4x8xf32>
    %c2_i32_70 = arith.constant 2 : i32
    %140 = vector.broadcast %c2_i32_70 : i32 to vector<4x8xi32>
    %141 = arith.muli %140, %124 : vector<4x8xi32>
    %c2_i32_71 = arith.constant 2 : i32
    %142 = vector.broadcast %c2_i32_71 : i32 to vector<4x8xi32>
    %143 = arith.addi %141, %142 : vector<4x8xi32>
    %144 = arith.cmpi eq, %125, %143 : vector<4x8xi32>
    %c2_i32_72 = arith.constant 2 : i32
    %c0_i32_73 = arith.constant 0 : i32
    %145 = arith.cmpi eq, %c2_i32_72, %c0_i32_73 : i32
    %c1_i32_74 = arith.constant 1 : i32
    %146 = arith.select %145, %c1_i32_74, %c2_i32_72 : i32
    %147 = vector.broadcast %146 : i32 to vector<4x8xi32>
    %148 = arith.remsi %124, %147 : vector<4x8xi32>
    %c0_i32_75 = arith.constant 0 : i32
    %149 = vector.broadcast %c0_i32_75 : i32 to vector<4x8xi32>
    %150 = arith.cmpi ne, %148, %149 : vector<4x8xi32>
    %c0_i32_76 = arith.constant 0 : i32
    %151 = vector.broadcast %c0_i32_76 : i32 to vector<4x8xi32>
    %152 = arith.cmpi slt, %148, %151 : vector<4x8xi32>
    %c0_i32_77 = arith.constant 0 : i32
    %153 = arith.cmpi slt, %146, %c0_i32_77 : i32
    %154 = vector.broadcast %153 : i1 to vector<4x8xi1>
    %155 = vector.broadcast %154 : vector<4x8xi1> to vector<4x8xi1>
    %156 = arith.xori %152, %155 : vector<4x8xi1>
    %157 = arith.andi %156, %150 : vector<4x8xi1>
    %158 = vector.broadcast %146 : i32 to vector<4x8xi32>
    %159 = arith.addi %148, %158 : vector<4x8xi32>
    %160 = arith.select %157, %159, %148 : vector<4x8xi1>, vector<4x8xi32>
    %c1_i32_78 = arith.constant 1 : i32
    %161 = vector.broadcast %c1_i32_78 : i32 to vector<4x8xi32>
    %162 = arith.cmpi ne, %160, %161 : vector<4x8xi32>
    %163 = arith.andi %144, %162 : vector<4x8xi1>
    %cst_79 = arith.constant 1.000000e+00 : f32
    %cst_80 = arith.constant 0.000000e+00 : f32
    %164 = vector.broadcast %cst_79 : f32 to vector<4x8xf32>
    %165 = vector.broadcast %cst_80 : f32 to vector<4x8xf32>
    %166 = arith.select %163, %164, %165 : vector<4x8xi1>, vector<4x8xf32>
    %c2_i32_81 = arith.constant 2 : i32
    %167 = vector.broadcast %c2_i32_81 : i32 to vector<4x8xi32>
    %168 = arith.muli %167, %124 : vector<4x8xi32>
    %c1_i32_82 = arith.constant 1 : i32
    %169 = vector.broadcast %c1_i32_82 : i32 to vector<4x8xi32>
    %170 = arith.subi %168, %169 : vector<4x8xi32>
    %171 = arith.cmpi eq, %125, %170 : vector<4x8xi32>
    %c2_i32_83 = arith.constant 2 : i32
    %c0_i32_84 = arith.constant 0 : i32
    %172 = arith.cmpi eq, %c2_i32_83, %c0_i32_84 : i32
    %c1_i32_85 = arith.constant 1 : i32
    %173 = arith.select %172, %c1_i32_85, %c2_i32_83 : i32
    %174 = vector.broadcast %173 : i32 to vector<4x8xi32>
    %175 = arith.remsi %124, %174 : vector<4x8xi32>
    %c0_i32_86 = arith.constant 0 : i32
    %176 = vector.broadcast %c0_i32_86 : i32 to vector<4x8xi32>
    %177 = arith.cmpi ne, %175, %176 : vector<4x8xi32>
    %c0_i32_87 = arith.constant 0 : i32
    %178 = vector.broadcast %c0_i32_87 : i32 to vector<4x8xi32>
    %179 = arith.cmpi slt, %175, %178 : vector<4x8xi32>
    %c0_i32_88 = arith.constant 0 : i32
    %180 = arith.cmpi slt, %173, %c0_i32_88 : i32
    %181 = vector.broadcast %180 : i1 to vector<4x8xi1>
    %182 = vector.broadcast %181 : vector<4x8xi1> to vector<4x8xi1>
    %183 = arith.xori %179, %182 : vector<4x8xi1>
    %184 = arith.andi %183, %177 : vector<4x8xi1>
    %185 = vector.broadcast %173 : i32 to vector<4x8xi32>
    %186 = arith.addi %175, %185 : vector<4x8xi32>
    %187 = arith.select %184, %186, %175 : vector<4x8xi1>, vector<4x8xi32>
    %c0_i32_89 = arith.constant 0 : i32
    %188 = vector.broadcast %c0_i32_89 : i32 to vector<4x8xi32>
    %189 = arith.cmpi ne, %187, %188 : vector<4x8xi32>
    %190 = arith.andi %171, %189 : vector<4x8xi1>
    %cst_90 = arith.constant 1.000000e+00 : f32
    %cst_91 = arith.constant 0.000000e+00 : f32
    %191 = vector.broadcast %cst_90 : f32 to vector<4x8xf32>
    %192 = vector.broadcast %cst_91 : f32 to vector<4x8xf32>
    %193 = arith.select %190, %191, %192 : vector<4x8xi1>, vector<4x8xf32>
    %cst_92 = arith.constant dense<0.000000e+00> : vector<32x8xf32>
    %194 = tpu.matmul %121, %131, %cst_92 {dimension_numbers = #tpu.dot_dimension_numbers<[1], [0], [0], [1], [0, 0, 1, 1], [], []>} : vector<32x4xf32>, vector<4x8xf32>, vector<32x8xf32> -> vector<32x8xf32>
    %cst_93 = arith.constant dense<0.000000e+00> : vector<32x8xf32>
    %195 = tpu.matmul %122, %139, %cst_93 {dimension_numbers = #tpu.dot_dimension_numbers<[1], [0], [0], [1], [0, 0, 1, 1], [], []>} : vector<32x4xf32>, vector<4x8xf32>, vector<32x8xf32> -> vector<32x8xf32>
    %196 = arith.addf %194, %195 : vector<32x8xf32>
    %cst_94 = arith.constant dense<0.000000e+00> : vector<32x8xf32>
    %197 = tpu.matmul %123, %166, %cst_94 {dimension_numbers = #tpu.dot_dimension_numbers<[1], [0], [0], [1], [0, 0, 1, 1], [], []>} : vector<32x4xf32>, vector<4x8xf32>, vector<32x8xf32> -> vector<32x8xf32>
    %198 = arith.addf %196, %197 : vector<32x8xf32>
    %cst_95 = arith.constant dense<0.000000e+00> : vector<32x8xf32>
    %199 = tpu.matmul %120, %193, %cst_95 {dimension_numbers = #tpu.dot_dimension_numbers<[1], [0], [0], [1], [0, 0, 1, 1], [], []>} : vector<32x4xf32>, vector<4x8xf32>, vector<32x8xf32> -> vector<32x8xf32>
    %200 = arith.addf %198, %199 : vector<32x8xf32>
    %c0_96 = arith.constant 0 : index
    %c0_97 = arith.constant 0 : index
    %c0_98 = arith.constant 0 : index
    %201 = vector.load %arg8[%c0_96, %c0_97, %c0_98] : memref<4x32x1xf32, #tpu.memory_space<vmem>>, vector<1x32x1xf32>
    %202 = vector.shape_cast %201 : vector<1x32x1xf32> to vector<32x1xf32>
    %203 = vector.broadcast %202 : vector<32x1xf32> to vector<32x8xf32>
    %204 = arith.addf %200, %203 : vector<32x8xf32>
    %cst_99 = arith.constant 0.000000e+00 : f32
    %205 = vector.broadcast %cst_99 : f32 to vector<32x8xf32>
    %206 = arith.cmpf ogt, %204, %205 : vector<32x8xf32>
    %cst_100 = arith.constant 2.000000e-01 : f32
    %207 = vector.broadcast %cst_100 : f32 to vector<32x8xf32>
    %208 = arith.mulf %207, %204 : vector<32x8xf32>
    %209 = arith.select %206, %204, %208 : vector<32x8xi1>, vector<32x8xf32>
    %210 = tpu.iota {dimensions = array<i32: 0>} : vector<8x8xi32>
    %211 = tpu.iota {dimensions = array<i32: 1>} : vector<8x8xi32>
    %c1_i32_101 = arith.constant 1 : i32
    %212 = vector.broadcast %c1_i32_101 : i32 to vector<8x8xi32>
    %213 = arith.addi %210, %212 : vector<8x8xi32>
    %214 = arith.cmpi eq, %211, %213 : vector<8x8xi32>
    %c4_i32 = arith.constant 4 : i32
    %c0_i32_102 = arith.constant 0 : i32
    %215 = arith.cmpi eq, %c4_i32, %c0_i32_102 : i32
    %c1_i32_103 = arith.constant 1 : i32
    %216 = arith.select %215, %c1_i32_103, %c4_i32 : i32
    %217 = vector.broadcast %216 : i32 to vector<8x8xi32>
    %218 = arith.remsi %211, %217 : vector<8x8xi32>
    %c0_i32_104 = arith.constant 0 : i32
    %219 = vector.broadcast %c0_i32_104 : i32 to vector<8x8xi32>
    %220 = arith.cmpi ne, %218, %219 : vector<8x8xi32>
    %c0_i32_105 = arith.constant 0 : i32
    %221 = vector.broadcast %c0_i32_105 : i32 to vector<8x8xi32>
    %222 = arith.cmpi slt, %218, %221 : vector<8x8xi32>
    %c0_i32_106 = arith.constant 0 : i32
    %223 = arith.cmpi slt, %216, %c0_i32_106 : i32
    %224 = vector.broadcast %223 : i1 to vector<8x8xi1>
    %225 = vector.broadcast %224 : vector<8x8xi1> to vector<8x8xi1>
    %226 = arith.xori %222, %225 : vector<8x8xi1>
    %227 = arith.andi %226, %220 : vector<8x8xi1>
    %228 = vector.broadcast %216 : i32 to vector<8x8xi32>
    %229 = arith.addi %218, %228 : vector<8x8xi32>
    %230 = arith.select %227, %229, %218 : vector<8x8xi1>, vector<8x8xi32>
    %c0_i32_107 = arith.constant 0 : i32
    %231 = vector.broadcast %c0_i32_107 : i32 to vector<8x8xi32>
    %232 = arith.cmpi ne, %230, %231 : vector<8x8xi32>
    %233 = arith.andi %214, %232 : vector<8x8xi1>
    %cst_108 = arith.constant 1.000000e+00 : f32
    %cst_109 = arith.constant 0.000000e+00 : f32
    %234 = vector.broadcast %cst_108 : f32 to vector<8x8xf32>
    %235 = vector.broadcast %cst_109 : f32 to vector<8x8xf32>
    %236 = arith.select %233, %234, %235 : vector<8x8xi1>, vector<8x8xf32>
    %c1_i32_110 = arith.constant 1 : i32
    %237 = vector.broadcast %c1_i32_110 : i32 to vector<8x8xi32>
    %238 = arith.subi %210, %237 : vector<8x8xi32>
    %239 = arith.cmpi eq, %211, %238 : vector<8x8xi32>
    %c4_i32_111 = arith.constant 4 : i32
    %c0_i32_112 = arith.constant 0 : i32
    %240 = arith.cmpi eq, %c4_i32_111, %c0_i32_112 : i32
    %c1_i32_113 = arith.constant 1 : i32
    %241 = arith.select %240, %c1_i32_113, %c4_i32_111 : i32
    %242 = vector.broadcast %241 : i32 to vector<8x8xi32>
    %243 = arith.remsi %211, %242 : vector<8x8xi32>
    %c0_i32_114 = arith.constant 0 : i32
    %244 = vector.broadcast %c0_i32_114 : i32 to vector<8x8xi32>
    %245 = arith.cmpi ne, %243, %244 : vector<8x8xi32>
    %c0_i32_115 = arith.constant 0 : i32
    %246 = vector.broadcast %c0_i32_115 : i32 to vector<8x8xi32>
    %247 = arith.cmpi slt, %243, %246 : vector<8x8xi32>
    %c0_i32_116 = arith.constant 0 : i32
    %248 = arith.cmpi slt, %241, %c0_i32_116 : i32
    %249 = vector.broadcast %248 : i1 to vector<8x8xi1>
    %250 = vector.broadcast %249 : vector<8x8xi1> to vector<8x8xi1>
    %251 = arith.xori %247, %250 : vector<8x8xi1>
    %252 = arith.andi %251, %245 : vector<8x8xi1>
    %253 = vector.broadcast %241 : i32 to vector<8x8xi32>
    %254 = arith.addi %243, %253 : vector<8x8xi32>
    %255 = arith.select %252, %254, %243 : vector<8x8xi1>, vector<8x8xi32>
    %c3_i32 = arith.constant 3 : i32
    %256 = vector.broadcast %c3_i32 : i32 to vector<8x8xi32>
    %257 = arith.cmpi ne, %255, %256 : vector<8x8xi32>
    %258 = arith.andi %239, %257 : vector<8x8xi1>
    %cst_117 = arith.constant 1.000000e+00 : f32
    %cst_118 = arith.constant 0.000000e+00 : f32
    %259 = vector.broadcast %cst_117 : f32 to vector<8x8xf32>
    %260 = vector.broadcast %cst_118 : f32 to vector<8x8xf32>
    %261 = arith.select %258, %259, %260 : vector<8x8xi1>, vector<8x8xf32>
    %cst_119 = arith.constant dense<0.000000e+00> : vector<32x8xf32>
    %262 = tpu.matmul %209, %236, %cst_119 {dimension_numbers = #tpu.dot_dimension_numbers<[1], [0], [0], [1], [0, 0, 1, 1], [], []>} : vector<32x8xf32>, vector<8x8xf32>, vector<32x8xf32> -> vector<32x8xf32>
    %cst_120 = arith.constant dense<0.000000e+00> : vector<32x8xf32>
    %263 = tpu.matmul %209, %261, %cst_120 {dimension_numbers = #tpu.dot_dimension_numbers<[1], [0], [0], [1], [0, 0, 1, 1], [], []>} : vector<32x8xf32>, vector<8x8xf32>, vector<32x8xf32> -> vector<32x8xf32>
    %264 = tpu.concatenate %262, %209, %263 in 0 : vector<32x8xf32>, vector<32x8xf32>, vector<32x8xf32> -> vector<96x8xf32>
    %c1_121 = arith.constant 1 : index
    %c0_122 = arith.constant 0 : index
    %c0_123 = arith.constant 0 : index
    %265 = vector.load %arg5[%c1_121, %c0_122, %c0_123] : memref<4x32x96xf32, #tpu.memory_space<vmem>>, vector<1x32x96xf32>
    %266 = vector.shape_cast %265 : vector<1x32x96xf32> to vector<32x96xf32>
    %cst_124 = arith.constant dense<0.000000e+00> : vector<32x8xf32>
    %267 = tpu.matmul %266, %264, %cst_124 {dimension_numbers = #tpu.dot_dimension_numbers<[1], [0], [0], [1], [0, 0, 1, 1], [], []>} : vector<32x96xf32>, vector<96x8xf32>, vector<32x8xf32> -> vector<32x8xf32>
    %c1_125 = arith.constant 1 : index
    %c0_126 = arith.constant 0 : index
    %c0_127 = arith.constant 0 : index
    %268 = vector.load %arg6[%c1_125, %c0_126, %c0_127] : memref<4x32x1xf32, #tpu.memory_space<vmem>>, vector<1x32x1xf32>
    %269 = vector.shape_cast %268 : vector<1x32x1xf32> to vector<32x1xf32>
    %270 = vector.broadcast %269 : vector<32x1xf32> to vector<32x8xf32>
    %271 = arith.addf %267, %270 : vector<32x8xf32>
    %cst_128 = arith.constant 0.000000e+00 : f32
    %272 = vector.broadcast %cst_128 : f32 to vector<32x8xf32>
    %273 = arith.cmpf ogt, %271, %272 : vector<32x8xf32>
    %cst_129 = arith.constant 2.000000e-01 : f32
    %274 = vector.broadcast %cst_129 : f32 to vector<32x8xf32>
    %275 = arith.mulf %274, %271 : vector<32x8xf32>
    %276 = arith.select %273, %271, %275 : vector<32x8xi1>, vector<32x8xf32>
    %c1_130 = arith.constant 1 : index
    %c0_131 = arith.constant 0 : index
    %c0_132 = arith.constant 0 : index
    %277 = vector.load %arg7[%c1_130, %c0_131, %c0_132] : memref<4x128x32xf32, #tpu.memory_space<vmem>>, vector<1x128x32xf32>
    %278 = vector.shape_cast %277 : vector<1x128x32xf32> to vector<128x32xf32>
    %cst_133 = arith.constant dense<0.000000e+00> : vector<128x8xf32>
    %279 = tpu.matmul %278, %276, %cst_133 {dimension_numbers = #tpu.dot_dimension_numbers<[1], [0], [0], [1], [0, 0, 1, 1], [], []>} : vector<128x32xf32>, vector<32x8xf32>, vector<128x8xf32> -> vector<128x8xf32>
    %280 = vector.extract_strided_slice %279 {offsets = [0, 0], sizes = [32, 8], strides = [1, 1]} : vector<128x8xf32> to vector<32x8xf32>
    %281 = vector.extract_strided_slice %279 {offsets = [32, 0], sizes = [32, 8], strides = [1, 1]} : vector<128x8xf32> to vector<32x8xf32>
    %282 = vector.extract_strided_slice %279 {offsets = [64, 0], sizes = [32, 8], strides = [1, 1]} : vector<128x8xf32> to vector<32x8xf32>
    %283 = vector.extract_strided_slice %279 {offsets = [96, 0], sizes = [32, 8], strides = [1, 1]} : vector<128x8xf32> to vector<32x8xf32>
    %284 = tpu.iota {dimensions = array<i32: 0>} : vector<8x16xi32>
    %285 = tpu.iota {dimensions = array<i32: 1>} : vector<8x16xi32>
    %c2_i32_134 = arith.constant 2 : i32
    %286 = vector.broadcast %c2_i32_134 : i32 to vector<8x16xi32>
    %287 = arith.muli %286, %284 : vector<8x16xi32>
    %288 = arith.cmpi eq, %285, %287 : vector<8x16xi32>
    %cst_135 = arith.constant 1.000000e+00 : f32
    %cst_136 = arith.constant 0.000000e+00 : f32
    %289 = vector.broadcast %cst_135 : f32 to vector<8x16xf32>
    %290 = vector.broadcast %cst_136 : f32 to vector<8x16xf32>
    %291 = arith.select %288, %289, %290 : vector<8x16xi1>, vector<8x16xf32>
    %c2_i32_137 = arith.constant 2 : i32
    %292 = vector.broadcast %c2_i32_137 : i32 to vector<8x16xi32>
    %293 = arith.muli %292, %284 : vector<8x16xi32>
    %c1_i32_138 = arith.constant 1 : i32
    %294 = vector.broadcast %c1_i32_138 : i32 to vector<8x16xi32>
    %295 = arith.addi %293, %294 : vector<8x16xi32>
    %296 = arith.cmpi eq, %285, %295 : vector<8x16xi32>
    %cst_139 = arith.constant 1.000000e+00 : f32
    %cst_140 = arith.constant 0.000000e+00 : f32
    %297 = vector.broadcast %cst_139 : f32 to vector<8x16xf32>
    %298 = vector.broadcast %cst_140 : f32 to vector<8x16xf32>
    %299 = arith.select %296, %297, %298 : vector<8x16xi1>, vector<8x16xf32>
    %c2_i32_141 = arith.constant 2 : i32
    %300 = vector.broadcast %c2_i32_141 : i32 to vector<8x16xi32>
    %301 = arith.muli %300, %284 : vector<8x16xi32>
    %c2_i32_142 = arith.constant 2 : i32
    %302 = vector.broadcast %c2_i32_142 : i32 to vector<8x16xi32>
    %303 = arith.addi %301, %302 : vector<8x16xi32>
    %304 = arith.cmpi eq, %285, %303 : vector<8x16xi32>
    %c4_i32_143 = arith.constant 4 : i32
    %c0_i32_144 = arith.constant 0 : i32
    %305 = arith.cmpi eq, %c4_i32_143, %c0_i32_144 : i32
    %c1_i32_145 = arith.constant 1 : i32
    %306 = arith.select %305, %c1_i32_145, %c4_i32_143 : i32
    %307 = vector.broadcast %306 : i32 to vector<8x16xi32>
    %308 = arith.remsi %284, %307 : vector<8x16xi32>
    %c0_i32_146 = arith.constant 0 : i32
    %309 = vector.broadcast %c0_i32_146 : i32 to vector<8x16xi32>
    %310 = arith.cmpi ne, %308, %309 : vector<8x16xi32>
    %c0_i32_147 = arith.constant 0 : i32
    %311 = vector.broadcast %c0_i32_147 : i32 to vector<8x16xi32>
    %312 = arith.cmpi slt, %308, %311 : vector<8x16xi32>
    %c0_i32_148 = arith.constant 0 : i32
    %313 = arith.cmpi slt, %306, %c0_i32_148 : i32
    %314 = vector.broadcast %313 : i1 to vector<8x16xi1>
    %315 = vector.broadcast %314 : vector<8x16xi1> to vector<8x16xi1>
    %316 = arith.xori %312, %315 : vector<8x16xi1>
    %317 = arith.andi %316, %310 : vector<8x16xi1>
    %318 = vector.broadcast %306 : i32 to vector<8x16xi32>
    %319 = arith.addi %308, %318 : vector<8x16xi32>
    %320 = arith.select %317, %319, %308 : vector<8x16xi1>, vector<8x16xi32>
    %c3_i32_149 = arith.constant 3 : i32
    %321 = vector.broadcast %c3_i32_149 : i32 to vector<8x16xi32>
    %322 = arith.cmpi ne, %320, %321 : vector<8x16xi32>
    %323 = arith.andi %304, %322 : vector<8x16xi1>
    %cst_150 = arith.constant 1.000000e+00 : f32
    %cst_151 = arith.constant 0.000000e+00 : f32
    %324 = vector.broadcast %cst_150 : f32 to vector<8x16xf32>
    %325 = vector.broadcast %cst_151 : f32 to vector<8x16xf32>
    %326 = arith.select %323, %324, %325 : vector<8x16xi1>, vector<8x16xf32>
    %c2_i32_152 = arith.constant 2 : i32
    %327 = vector.broadcast %c2_i32_152 : i32 to vector<8x16xi32>
    %328 = arith.muli %327, %284 : vector<8x16xi32>
    %c1_i32_153 = arith.constant 1 : i32
    %329 = vector.broadcast %c1_i32_153 : i32 to vector<8x16xi32>
    %330 = arith.subi %328, %329 : vector<8x16xi32>
    %331 = arith.cmpi eq, %285, %330 : vector<8x16xi32>
    %c4_i32_154 = arith.constant 4 : i32
    %c0_i32_155 = arith.constant 0 : i32
    %332 = arith.cmpi eq, %c4_i32_154, %c0_i32_155 : i32
    %c1_i32_156 = arith.constant 1 : i32
    %333 = arith.select %332, %c1_i32_156, %c4_i32_154 : i32
    %334 = vector.broadcast %333 : i32 to vector<8x16xi32>
    %335 = arith.remsi %284, %334 : vector<8x16xi32>
    %c0_i32_157 = arith.constant 0 : i32
    %336 = vector.broadcast %c0_i32_157 : i32 to vector<8x16xi32>
    %337 = arith.cmpi ne, %335, %336 : vector<8x16xi32>
    %c0_i32_158 = arith.constant 0 : i32
    %338 = vector.broadcast %c0_i32_158 : i32 to vector<8x16xi32>
    %339 = arith.cmpi slt, %335, %338 : vector<8x16xi32>
    %c0_i32_159 = arith.constant 0 : i32
    %340 = arith.cmpi slt, %333, %c0_i32_159 : i32
    %341 = vector.broadcast %340 : i1 to vector<8x16xi1>
    %342 = vector.broadcast %341 : vector<8x16xi1> to vector<8x16xi1>
    %343 = arith.xori %339, %342 : vector<8x16xi1>
    %344 = arith.andi %343, %337 : vector<8x16xi1>
    %345 = vector.broadcast %333 : i32 to vector<8x16xi32>
    %346 = arith.addi %335, %345 : vector<8x16xi32>
    %347 = arith.select %344, %346, %335 : vector<8x16xi1>, vector<8x16xi32>
    %c0_i32_160 = arith.constant 0 : i32
    %348 = vector.broadcast %c0_i32_160 : i32 to vector<8x16xi32>
    %349 = arith.cmpi ne, %347, %348 : vector<8x16xi32>
    %350 = arith.andi %331, %349 : vector<8x16xi1>
    %cst_161 = arith.constant 1.000000e+00 : f32
    %cst_162 = arith.constant 0.000000e+00 : f32
    %351 = vector.broadcast %cst_161 : f32 to vector<8x16xf32>
    %352 = vector.broadcast %cst_162 : f32 to vector<8x16xf32>
    %353 = arith.select %350, %351, %352 : vector<8x16xi1>, vector<8x16xf32>
    %cst_163 = arith.constant dense<0.000000e+00> : vector<32x16xf32>
    %354 = tpu.matmul %281, %291, %cst_163 {dimension_numbers = #tpu.dot_dimension_numbers<[1], [0], [0], [1], [0, 0, 1, 1], [], []>} : vector<32x8xf32>, vector<8x16xf32>, vector<32x16xf32> -> vector<32x16xf32>
    %cst_164 = arith.constant dense<0.000000e+00> : vector<32x16xf32>
    %355 = tpu.matmul %282, %299, %cst_164 {dimension_numbers = #tpu.dot_dimension_numbers<[1], [0], [0], [1], [0, 0, 1, 1], [], []>} : vector<32x8xf32>, vector<8x16xf32>, vector<32x16xf32> -> vector<32x16xf32>
    %356 = arith.addf %354, %355 : vector<32x16xf32>
    %cst_165 = arith.constant dense<0.000000e+00> : vector<32x16xf32>
    %357 = tpu.matmul %283, %326, %cst_165 {dimension_numbers = #tpu.dot_dimension_numbers<[1], [0], [0], [1], [0, 0, 1, 1], [], []>} : vector<32x8xf32>, vector<8x16xf32>, vector<32x16xf32> -> vector<32x16xf32>
    %358 = arith.addf %356, %357 : vector<32x16xf32>
    %cst_166 = arith.constant dense<0.000000e+00> : vector<32x16xf32>
    %359 = tpu.matmul %280, %353, %cst_166 {dimension_numbers = #tpu.dot_dimension_numbers<[1], [0], [0], [1], [0, 0, 1, 1], [], []>} : vector<32x8xf32>, vector<8x16xf32>, vector<32x16xf32> -> vector<32x16xf32>
    %360 = arith.addf %358, %359 : vector<32x16xf32>
    %c1_167 = arith.constant 1 : index
    %c0_168 = arith.constant 0 : index
    %c0_169 = arith.constant 0 : index
    %361 = vector.load %arg8[%c1_167, %c0_168, %c0_169] : memref<4x32x1xf32, #tpu.memory_space<vmem>>, vector<1x32x1xf32>
    %362 = vector.shape_cast %361 : vector<1x32x1xf32> to vector<32x1xf32>
    %363 = vector.broadcast %362 : vector<32x1xf32> to vector<32x16xf32>
    %364 = arith.addf %360, %363 : vector<32x16xf32>
    %cst_170 = arith.constant 0.000000e+00 : f32
    %365 = vector.broadcast %cst_170 : f32 to vector<32x16xf32>
    %366 = arith.cmpf ogt, %364, %365 : vector<32x16xf32>
    %cst_171 = arith.constant 2.000000e-01 : f32
    %367 = vector.broadcast %cst_171 : f32 to vector<32x16xf32>
    %368 = arith.mulf %367, %364 : vector<32x16xf32>
    %369 = arith.select %366, %364, %368 : vector<32x16xi1>, vector<32x16xf32>
    %370 = tpu.iota {dimensions = array<i32: 0>} : vector<16x16xi32>
    %371 = tpu.iota {dimensions = array<i32: 1>} : vector<16x16xi32>
    %c1_i32_172 = arith.constant 1 : i32
    %372 = vector.broadcast %c1_i32_172 : i32 to vector<16x16xi32>
    %373 = arith.addi %370, %372 : vector<16x16xi32>
    %374 = arith.cmpi eq, %371, %373 : vector<16x16xi32>
    %c8_i32 = arith.constant 8 : i32
    %c0_i32_173 = arith.constant 0 : i32
    %375 = arith.cmpi eq, %c8_i32, %c0_i32_173 : i32
    %c1_i32_174 = arith.constant 1 : i32
    %376 = arith.select %375, %c1_i32_174, %c8_i32 : i32
    %377 = vector.broadcast %376 : i32 to vector<16x16xi32>
    %378 = arith.remsi %371, %377 : vector<16x16xi32>
    %c0_i32_175 = arith.constant 0 : i32
    %379 = vector.broadcast %c0_i32_175 : i32 to vector<16x16xi32>
    %380 = arith.cmpi ne, %378, %379 : vector<16x16xi32>
    %c0_i32_176 = arith.constant 0 : i32
    %381 = vector.broadcast %c0_i32_176 : i32 to vector<16x16xi32>
    %382 = arith.cmpi slt, %378, %381 : vector<16x16xi32>
    %c0_i32_177 = arith.constant 0 : i32
    %383 = arith.cmpi slt, %376, %c0_i32_177 : i32
    %384 = vector.broadcast %383 : i1 to vector<16x16xi1>
    %385 = vector.broadcast %384 : vector<16x16xi1> to vector<16x16xi1>
    %386 = arith.xori %382, %385 : vector<16x16xi1>
    %387 = arith.andi %386, %380 : vector<16x16xi1>
    %388 = vector.broadcast %376 : i32 to vector<16x16xi32>
    %389 = arith.addi %378, %388 : vector<16x16xi32>
    %390 = arith.select %387, %389, %378 : vector<16x16xi1>, vector<16x16xi32>
    %c0_i32_178 = arith.constant 0 : i32
    %391 = vector.broadcast %c0_i32_178 : i32 to vector<16x16xi32>
    %392 = arith.cmpi ne, %390, %391 : vector<16x16xi32>
    %393 = arith.andi %374, %392 : vector<16x16xi1>
    %cst_179 = arith.constant 1.000000e+00 : f32
    %cst_180 = arith.constant 0.000000e+00 : f32
    %394 = vector.broadcast %cst_179 : f32 to vector<16x16xf32>
    %395 = vector.broadcast %cst_180 : f32 to vector<16x16xf32>
    %396 = arith.select %393, %394, %395 : vector<16x16xi1>, vector<16x16xf32>
    %c1_i32_181 = arith.constant 1 : i32
    %397 = vector.broadcast %c1_i32_181 : i32 to vector<16x16xi32>
    %398 = arith.subi %370, %397 : vector<16x16xi32>
    %399 = arith.cmpi eq, %371, %398 : vector<16x16xi32>
    %c8_i32_182 = arith.constant 8 : i32
    %c0_i32_183 = arith.constant 0 : i32
    %400 = arith.cmpi eq, %c8_i32_182, %c0_i32_183 : i32
    %c1_i32_184 = arith.constant 1 : i32
    %401 = arith.select %400, %c1_i32_184, %c8_i32_182 : i32
    %402 = vector.broadcast %401 : i32 to vector<16x16xi32>
    %403 = arith.remsi %371, %402 : vector<16x16xi32>
    %c0_i32_185 = arith.constant 0 : i32
    %404 = vector.broadcast %c0_i32_185 : i32 to vector<16x16xi32>
    %405 = arith.cmpi ne, %403, %404 : vector<16x16xi32>
    %c0_i32_186 = arith.constant 0 : i32
    %406 = vector.broadcast %c0_i32_186 : i32 to vector<16x16xi32>
    %407 = arith.cmpi slt, %403, %406 : vector<16x16xi32>
    %c0_i32_187 = arith.constant 0 : i32
    %408 = arith.cmpi slt, %401, %c0_i32_187 : i32
    %409 = vector.broadcast %408 : i1 to vector<16x16xi1>
    %410 = vector.broadcast %409 : vector<16x16xi1> to vector<16x16xi1>
    %411 = arith.xori %407, %410 : vector<16x16xi1>
    %412 = arith.andi %411, %405 : vector<16x16xi1>
    %413 = vector.broadcast %401 : i32 to vector<16x16xi32>
    %414 = arith.addi %403, %413 : vector<16x16xi32>
    %415 = arith.select %412, %414, %403 : vector<16x16xi1>, vector<16x16xi32>
    %c7_i32 = arith.constant 7 : i32
    %416 = vector.broadcast %c7_i32 : i32 to vector<16x16xi32>
    %417 = arith.cmpi ne, %415, %416 : vector<16x16xi32>
    %418 = arith.andi %399, %417 : vector<16x16xi1>
    %cst_188 = arith.constant 1.000000e+00 : f32
    %cst_189 = arith.constant 0.000000e+00 : f32
    %419 = vector.broadcast %cst_188 : f32 to vector<16x16xf32>
    %420 = vector.broadcast %cst_189 : f32 to vector<16x16xf32>
    %421 = arith.select %418, %419, %420 : vector<16x16xi1>, vector<16x16xf32>
    %cst_190 = arith.constant dense<0.000000e+00> : vector<32x16xf32>
    %422 = tpu.matmul %369, %396, %cst_190 {dimension_numbers = #tpu.dot_dimension_numbers<[1], [0], [0], [1], [0, 0, 1, 1], [], []>} : vector<32x16xf32>, vector<16x16xf32>, vector<32x16xf32> -> vector<32x16xf32>
    %cst_191 = arith.constant dense<0.000000e+00> : vector<32x16xf32>
    %423 = tpu.matmul %369, %421, %cst_191 {dimension_numbers = #tpu.dot_dimension_numbers<[1], [0], [0], [1], [0, 0, 1, 1], [], []>} : vector<32x16xf32>, vector<16x16xf32>, vector<32x16xf32> -> vector<32x16xf32>
    %424 = tpu.concatenate %422, %369, %423 in 0 : vector<32x16xf32>, vector<32x16xf32>, vector<32x16xf32> -> vector<96x16xf32>
    %c2 = arith.constant 2 : index
    %c0_192 = arith.constant 0 : index
    %c0_193 = arith.constant 0 : index
    %425 = vector.load %arg5[%c2, %c0_192, %c0_193] : memref<4x32x96xf32, #tpu.memory_space<vmem>>, vector<1x32x96xf32>
    %426 = vector.shape_cast %425 : vector<1x32x96xf32> to vector<32x96xf32>
    %cst_194 = arith.constant dense<0.000000e+00> : vector<32x16xf32>
    %427 = tpu.matmul %426, %424, %cst_194 {dimension_numbers = #tpu.dot_dimension_numbers<[1], [0], [0], [1], [0, 0, 1, 1], [], []>} : vector<32x96xf32>, vector<96x16xf32>, vector<32x16xf32> -> vector<32x16xf32>
    %c2_195 = arith.constant 2 : index
    %c0_196 = arith.constant 0 : index
    %c0_197 = arith.constant 0 : index
    %428 = vector.load %arg6[%c2_195, %c0_196, %c0_197] : memref<4x32x1xf32, #tpu.memory_space<vmem>>, vector<1x32x1xf32>
    %429 = vector.shape_cast %428 : vector<1x32x1xf32> to vector<32x1xf32>
    %430 = vector.broadcast %429 : vector<32x1xf32> to vector<32x16xf32>
    %431 = arith.addf %427, %430 : vector<32x16xf32>
    %cst_198 = arith.constant 0.000000e+00 : f32
    %432 = vector.broadcast %cst_198 : f32 to vector<32x16xf32>
    %433 = arith.cmpf ogt, %431, %432 : vector<32x16xf32>
    %cst_199 = arith.constant 2.000000e-01 : f32
    %434 = vector.broadcast %cst_199 : f32 to vector<32x16xf32>
    %435 = arith.mulf %434, %431 : vector<32x16xf32>
    %436 = arith.select %433, %431, %435 : vector<32x16xi1>, vector<32x16xf32>
    %c2_200 = arith.constant 2 : index
    %c0_201 = arith.constant 0 : index
    %c0_202 = arith.constant 0 : index
    %437 = vector.load %arg7[%c2_200, %c0_201, %c0_202] : memref<4x128x32xf32, #tpu.memory_space<vmem>>, vector<1x128x32xf32>
    %438 = vector.shape_cast %437 : vector<1x128x32xf32> to vector<128x32xf32>
    %cst_203 = arith.constant dense<0.000000e+00> : vector<128x16xf32>
    %439 = tpu.matmul %438, %436, %cst_203 {dimension_numbers = #tpu.dot_dimension_numbers<[1], [0], [0], [1], [0, 0, 1, 1], [], []>} : vector<128x32xf32>, vector<32x16xf32>, vector<128x16xf32> -> vector<128x16xf32>
    %440 = vector.extract_strided_slice %439 {offsets = [0, 0], sizes = [32, 16], strides = [1, 1]} : vector<128x16xf32> to vector<32x16xf32>
    %441 = vector.extract_strided_slice %439 {offsets = [32, 0], sizes = [32, 16], strides = [1, 1]} : vector<128x16xf32> to vector<32x16xf32>
    %442 = vector.extract_strided_slice %439 {offsets = [64, 0], sizes = [32, 16], strides = [1, 1]} : vector<128x16xf32> to vector<32x16xf32>
    %443 = vector.extract_strided_slice %439 {offsets = [96, 0], sizes = [32, 16], strides = [1, 1]} : vector<128x16xf32> to vector<32x16xf32>
    %444 = tpu.iota {dimensions = array<i32: 0>} : vector<16x32xi32>
    %445 = tpu.iota {dimensions = array<i32: 1>} : vector<16x32xi32>
    %c2_i32_204 = arith.constant 2 : i32
    %446 = vector.broadcast %c2_i32_204 : i32 to vector<16x32xi32>
    %447 = arith.muli %446, %444 : vector<16x32xi32>
    %448 = arith.cmpi eq, %445, %447 : vector<16x32xi32>
    %cst_205 = arith.constant 1.000000e+00 : f32
    %cst_206 = arith.constant 0.000000e+00 : f32
    %449 = vector.broadcast %cst_205 : f32 to vector<16x32xf32>
    %450 = vector.broadcast %cst_206 : f32 to vector<16x32xf32>
    %451 = arith.select %448, %449, %450 : vector<16x32xi1>, vector<16x32xf32>
    %c2_i32_207 = arith.constant 2 : i32
    %452 = vector.broadcast %c2_i32_207 : i32 to vector<16x32xi32>
    %453 = arith.muli %452, %444 : vector<16x32xi32>
    %c1_i32_208 = arith.constant 1 : i32
    %454 = vector.broadcast %c1_i32_208 : i32 to vector<16x32xi32>
    %455 = arith.addi %453, %454 : vector<16x32xi32>
    %456 = arith.cmpi eq, %445, %455 : vector<16x32xi32>
    %cst_209 = arith.constant 1.000000e+00 : f32
    %cst_210 = arith.constant 0.000000e+00 : f32
    %457 = vector.broadcast %cst_209 : f32 to vector<16x32xf32>
    %458 = vector.broadcast %cst_210 : f32 to vector<16x32xf32>
    %459 = arith.select %456, %457, %458 : vector<16x32xi1>, vector<16x32xf32>
    %c2_i32_211 = arith.constant 2 : i32
    %460 = vector.broadcast %c2_i32_211 : i32 to vector<16x32xi32>
    %461 = arith.muli %460, %444 : vector<16x32xi32>
    %c2_i32_212 = arith.constant 2 : i32
    %462 = vector.broadcast %c2_i32_212 : i32 to vector<16x32xi32>
    %463 = arith.addi %461, %462 : vector<16x32xi32>
    %464 = arith.cmpi eq, %445, %463 : vector<16x32xi32>
    %c8_i32_213 = arith.constant 8 : i32
    %c0_i32_214 = arith.constant 0 : i32
    %465 = arith.cmpi eq, %c8_i32_213, %c0_i32_214 : i32
    %c1_i32_215 = arith.constant 1 : i32
    %466 = arith.select %465, %c1_i32_215, %c8_i32_213 : i32
    %467 = vector.broadcast %466 : i32 to vector<16x32xi32>
    %468 = arith.remsi %444, %467 : vector<16x32xi32>
    %c0_i32_216 = arith.constant 0 : i32
    %469 = vector.broadcast %c0_i32_216 : i32 to vector<16x32xi32>
    %470 = arith.cmpi ne, %468, %469 : vector<16x32xi32>
    %c0_i32_217 = arith.constant 0 : i32
    %471 = vector.broadcast %c0_i32_217 : i32 to vector<16x32xi32>
    %472 = arith.cmpi slt, %468, %471 : vector<16x32xi32>
    %c0_i32_218 = arith.constant 0 : i32
    %473 = arith.cmpi slt, %466, %c0_i32_218 : i32
    %474 = vector.broadcast %473 : i1 to vector<16x32xi1>
    %475 = vector.broadcast %474 : vector<16x32xi1> to vector<16x32xi1>
    %476 = arith.xori %472, %475 : vector<16x32xi1>
    %477 = arith.andi %476, %470 : vector<16x32xi1>
    %478 = vector.broadcast %466 : i32 to vector<16x32xi32>
    %479 = arith.addi %468, %478 : vector<16x32xi32>
    %480 = arith.select %477, %479, %468 : vector<16x32xi1>, vector<16x32xi32>
    %c7_i32_219 = arith.constant 7 : i32
    %481 = vector.broadcast %c7_i32_219 : i32 to vector<16x32xi32>
    %482 = arith.cmpi ne, %480, %481 : vector<16x32xi32>
    %483 = arith.andi %464, %482 : vector<16x32xi1>
    %cst_220 = arith.constant 1.000000e+00 : f32
    %cst_221 = arith.constant 0.000000e+00 : f32
    %484 = vector.broadcast %cst_220 : f32 to vector<16x32xf32>
    %485 = vector.broadcast %cst_221 : f32 to vector<16x32xf32>
    %486 = arith.select %483, %484, %485 : vector<16x32xi1>, vector<16x32xf32>
    %c2_i32_222 = arith.constant 2 : i32
    %487 = vector.broadcast %c2_i32_222 : i32 to vector<16x32xi32>
    %488 = arith.muli %487, %444 : vector<16x32xi32>
    %c1_i32_223 = arith.constant 1 : i32
    %489 = vector.broadcast %c1_i32_223 : i32 to vector<16x32xi32>
    %490 = arith.subi %488, %489 : vector<16x32xi32>
    %491 = arith.cmpi eq, %445, %490 : vector<16x32xi32>
    %c8_i32_224 = arith.constant 8 : i32
    %c0_i32_225 = arith.constant 0 : i32
    %492 = arith.cmpi eq, %c8_i32_224, %c0_i32_225 : i32
    %c1_i32_226 = arith.constant 1 : i32
    %493 = arith.select %492, %c1_i32_226, %c8_i32_224 : i32
    %494 = vector.broadcast %493 : i32 to vector<16x32xi32>
    %495 = arith.remsi %444, %494 : vector<16x32xi32>
    %c0_i32_227 = arith.constant 0 : i32
    %496 = vector.broadcast %c0_i32_227 : i32 to vector<16x32xi32>
    %497 = arith.cmpi ne, %495, %496 : vector<16x32xi32>
    %c0_i32_228 = arith.constant 0 : i32
    %498 = vector.broadcast %c0_i32_228 : i32 to vector<16x32xi32>
    %499 = arith.cmpi slt, %495, %498 : vector<16x32xi32>
    %c0_i32_229 = arith.constant 0 : i32
    %500 = arith.cmpi slt, %493, %c0_i32_229 : i32
    %501 = vector.broadcast %500 : i1 to vector<16x32xi1>
    %502 = vector.broadcast %501 : vector<16x32xi1> to vector<16x32xi1>
    %503 = arith.xori %499, %502 : vector<16x32xi1>
    %504 = arith.andi %503, %497 : vector<16x32xi1>
    %505 = vector.broadcast %493 : i32 to vector<16x32xi32>
    %506 = arith.addi %495, %505 : vector<16x32xi32>
    %507 = arith.select %504, %506, %495 : vector<16x32xi1>, vector<16x32xi32>
    %c0_i32_230 = arith.constant 0 : i32
    %508 = vector.broadcast %c0_i32_230 : i32 to vector<16x32xi32>
    %509 = arith.cmpi ne, %507, %508 : vector<16x32xi32>
    %510 = arith.andi %491, %509 : vector<16x32xi1>
    %cst_231 = arith.constant 1.000000e+00 : f32
    %cst_232 = arith.constant 0.000000e+00 : f32
    %511 = vector.broadcast %cst_231 : f32 to vector<16x32xf32>
    %512 = vector.broadcast %cst_232 : f32 to vector<16x32xf32>
    %513 = arith.select %510, %511, %512 : vector<16x32xi1>, vector<16x32xf32>
    %cst_233 = arith.constant dense<0.000000e+00> : vector<32x32xf32>
    %514 = tpu.matmul %441, %451, %cst_233 {dimension_numbers = #tpu.dot_dimension_numbers<[1], [0], [0], [1], [0, 0, 1, 1], [], []>} : vector<32x16xf32>, vector<16x32xf32>, vector<32x32xf32> -> vector<32x32xf32>
    %cst_234 = arith.constant dense<0.000000e+00> : vector<32x32xf32>
    %515 = tpu.matmul %442, %459, %cst_234 {dimension_numbers = #tpu.dot_dimension_numbers<[1], [0], [0], [1], [0, 0, 1, 1], [], []>} : vector<32x16xf32>, vector<16x32xf32>, vector<32x32xf32> -> vector<32x32xf32>
    %516 = arith.addf %514, %515 : vector<32x32xf32>
    %cst_235 = arith.constant dense<0.000000e+00> : vector<32x32xf32>
    %517 = tpu.matmul %443, %486, %cst_235 {dimension_numbers = #tpu.dot_dimension_numbers<[1], [0], [0], [1], [0, 0, 1, 1], [], []>} : vector<32x16xf32>, vector<16x32xf32>, vector<32x32xf32> -> vector<32x32xf32>
    %518 = arith.addf %516, %517 : vector<32x32xf32>
    %cst_236 = arith.constant dense<0.000000e+00> : vector<32x32xf32>
    %519 = tpu.matmul %440, %513, %cst_236 {dimension_numbers = #tpu.dot_dimension_numbers<[1], [0], [0], [1], [0, 0, 1, 1], [], []>} : vector<32x16xf32>, vector<16x32xf32>, vector<32x32xf32> -> vector<32x32xf32>
    %520 = arith.addf %518, %519 : vector<32x32xf32>
    %c2_237 = arith.constant 2 : index
    %c0_238 = arith.constant 0 : index
    %c0_239 = arith.constant 0 : index
    %521 = vector.load %arg8[%c2_237, %c0_238, %c0_239] : memref<4x32x1xf32, #tpu.memory_space<vmem>>, vector<1x32x1xf32>
    %522 = vector.shape_cast %521 : vector<1x32x1xf32> to vector<32x1xf32>
    %523 = vector.broadcast %522 : vector<32x1xf32> to vector<32x32xf32>
    %524 = arith.addf %520, %523 : vector<32x32xf32>
    %cst_240 = arith.constant 0.000000e+00 : f32
    %525 = vector.broadcast %cst_240 : f32 to vector<32x32xf32>
    %526 = arith.cmpf ogt, %524, %525 : vector<32x32xf32>
    %cst_241 = arith.constant 2.000000e-01 : f32
    %527 = vector.broadcast %cst_241 : f32 to vector<32x32xf32>
    %528 = arith.mulf %527, %524 : vector<32x32xf32>
    %529 = arith.select %526, %524, %528 : vector<32x32xi1>, vector<32x32xf32>
    %530 = tpu.iota {dimensions = array<i32: 0>} : vector<32x32xi32>
    %531 = tpu.iota {dimensions = array<i32: 1>} : vector<32x32xi32>
    %c1_i32_242 = arith.constant 1 : i32
    %532 = vector.broadcast %c1_i32_242 : i32 to vector<32x32xi32>
    %533 = arith.addi %530, %532 : vector<32x32xi32>
    %534 = arith.cmpi eq, %531, %533 : vector<32x32xi32>
    %c16_i32 = arith.constant 16 : i32
    %c0_i32_243 = arith.constant 0 : i32
    %535 = arith.cmpi eq, %c16_i32, %c0_i32_243 : i32
    %c1_i32_244 = arith.constant 1 : i32
    %536 = arith.select %535, %c1_i32_244, %c16_i32 : i32
    %537 = vector.broadcast %536 : i32 to vector<32x32xi32>
    %538 = arith.remsi %531, %537 : vector<32x32xi32>
    %c0_i32_245 = arith.constant 0 : i32
    %539 = vector.broadcast %c0_i32_245 : i32 to vector<32x32xi32>
    %540 = arith.cmpi ne, %538, %539 : vector<32x32xi32>
    %c0_i32_246 = arith.constant 0 : i32
    %541 = vector.broadcast %c0_i32_246 : i32 to vector<32x32xi32>
    %542 = arith.cmpi slt, %538, %541 : vector<32x32xi32>
    %c0_i32_247 = arith.constant 0 : i32
    %543 = arith.cmpi slt, %536, %c0_i32_247 : i32
    %544 = vector.broadcast %543 : i1 to vector<32x32xi1>
    %545 = vector.broadcast %544 : vector<32x32xi1> to vector<32x32xi1>
    %546 = arith.xori %542, %545 : vector<32x32xi1>
    %547 = arith.andi %546, %540 : vector<32x32xi1>
    %548 = vector.broadcast %536 : i32 to vector<32x32xi32>
    %549 = arith.addi %538, %548 : vector<32x32xi32>
    %550 = arith.select %547, %549, %538 : vector<32x32xi1>, vector<32x32xi32>
    %c0_i32_248 = arith.constant 0 : i32
    %551 = vector.broadcast %c0_i32_248 : i32 to vector<32x32xi32>
    %552 = arith.cmpi ne, %550, %551 : vector<32x32xi32>
    %553 = arith.andi %534, %552 : vector<32x32xi1>
    %cst_249 = arith.constant 1.000000e+00 : f32
    %cst_250 = arith.constant 0.000000e+00 : f32
    %554 = vector.broadcast %cst_249 : f32 to vector<32x32xf32>
    %555 = vector.broadcast %cst_250 : f32 to vector<32x32xf32>
    %556 = arith.select %553, %554, %555 : vector<32x32xi1>, vector<32x32xf32>
    %c1_i32_251 = arith.constant 1 : i32
    %557 = vector.broadcast %c1_i32_251 : i32 to vector<32x32xi32>
    %558 = arith.subi %530, %557 : vector<32x32xi32>
    %559 = arith.cmpi eq, %531, %558 : vector<32x32xi32>
    %c16_i32_252 = arith.constant 16 : i32
    %c0_i32_253 = arith.constant 0 : i32
    %560 = arith.cmpi eq, %c16_i32_252, %c0_i32_253 : i32
    %c1_i32_254 = arith.constant 1 : i32
    %561 = arith.select %560, %c1_i32_254, %c16_i32_252 : i32
    %562 = vector.broadcast %561 : i32 to vector<32x32xi32>
    %563 = arith.remsi %531, %562 : vector<32x32xi32>
    %c0_i32_255 = arith.constant 0 : i32
    %564 = vector.broadcast %c0_i32_255 : i32 to vector<32x32xi32>
    %565 = arith.cmpi ne, %563, %564 : vector<32x32xi32>
    %c0_i32_256 = arith.constant 0 : i32
    %566 = vector.broadcast %c0_i32_256 : i32 to vector<32x32xi32>
    %567 = arith.cmpi slt, %563, %566 : vector<32x32xi32>
    %c0_i32_257 = arith.constant 0 : i32
    %568 = arith.cmpi slt, %561, %c0_i32_257 : i32
    %569 = vector.broadcast %568 : i1 to vector<32x32xi1>
    %570 = vector.broadcast %569 : vector<32x32xi1> to vector<32x32xi1>
    %571 = arith.xori %567, %570 : vector<32x32xi1>
    %572 = arith.andi %571, %565 : vector<32x32xi1>
    %573 = vector.broadcast %561 : i32 to vector<32x32xi32>
    %574 = arith.addi %563, %573 : vector<32x32xi32>
    %575 = arith.select %572, %574, %563 : vector<32x32xi1>, vector<32x32xi32>
    %c15_i32 = arith.constant 15 : i32
    %576 = vector.broadcast %c15_i32 : i32 to vector<32x32xi32>
    %577 = arith.cmpi ne, %575, %576 : vector<32x32xi32>
    %578 = arith.andi %559, %577 : vector<32x32xi1>
    %cst_258 = arith.constant 1.000000e+00 : f32
    %cst_259 = arith.constant 0.000000e+00 : f32
    %579 = vector.broadcast %cst_258 : f32 to vector<32x32xf32>
    %580 = vector.broadcast %cst_259 : f32 to vector<32x32xf32>
    %581 = arith.select %578, %579, %580 : vector<32x32xi1>, vector<32x32xf32>
    %cst_260 = arith.constant dense<0.000000e+00> : vector<32x32xf32>
    %582 = tpu.matmul %529, %556, %cst_260 {dimension_numbers = #tpu.dot_dimension_numbers<[1], [0], [0], [1], [0, 0, 1, 1], [], []>} : vector<32x32xf32>, vector<32x32xf32>, vector<32x32xf32> -> vector<32x32xf32>
    %cst_261 = arith.constant dense<0.000000e+00> : vector<32x32xf32>
    %583 = tpu.matmul %529, %581, %cst_261 {dimension_numbers = #tpu.dot_dimension_numbers<[1], [0], [0], [1], [0, 0, 1, 1], [], []>} : vector<32x32xf32>, vector<32x32xf32>, vector<32x32xf32> -> vector<32x32xf32>
    %584 = tpu.concatenate %582, %529, %583 in 0 : vector<32x32xf32>, vector<32x32xf32>, vector<32x32xf32> -> vector<96x32xf32>
    %c3 = arith.constant 3 : index
    %c0_262 = arith.constant 0 : index
    %c0_263 = arith.constant 0 : index
    %585 = vector.load %arg5[%c3, %c0_262, %c0_263] : memref<4x32x96xf32, #tpu.memory_space<vmem>>, vector<1x32x96xf32>
    %586 = vector.shape_cast %585 : vector<1x32x96xf32> to vector<32x96xf32>
    %cst_264 = arith.constant dense<0.000000e+00> : vector<32x32xf32>
    %587 = tpu.matmul %586, %584, %cst_264 {dimension_numbers = #tpu.dot_dimension_numbers<[1], [0], [0], [1], [0, 0, 1, 1], [], []>} : vector<32x96xf32>, vector<96x32xf32>, vector<32x32xf32> -> vector<32x32xf32>
    %c3_265 = arith.constant 3 : index
    %c0_266 = arith.constant 0 : index
    %c0_267 = arith.constant 0 : index
    %588 = vector.load %arg6[%c3_265, %c0_266, %c0_267] : memref<4x32x1xf32, #tpu.memory_space<vmem>>, vector<1x32x1xf32>
    %589 = vector.shape_cast %588 : vector<1x32x1xf32> to vector<32x1xf32>
    %590 = vector.broadcast %589 : vector<32x1xf32> to vector<32x32xf32>
    %591 = arith.addf %587, %590 : vector<32x32xf32>
    %cst_268 = arith.constant 0.000000e+00 : f32
    %592 = vector.broadcast %cst_268 : f32 to vector<32x32xf32>
    %593 = arith.cmpf ogt, %591, %592 : vector<32x32xf32>
    %cst_269 = arith.constant 2.000000e-01 : f32
    %594 = vector.broadcast %cst_269 : f32 to vector<32x32xf32>
    %595 = arith.mulf %594, %591 : vector<32x32xf32>
    %596 = arith.select %593, %591, %595 : vector<32x32xi1>, vector<32x32xf32>
    %c3_270 = arith.constant 3 : index
    %c0_271 = arith.constant 0 : index
    %c0_272 = arith.constant 0 : index
    %597 = vector.load %arg7[%c3_270, %c0_271, %c0_272] : memref<4x128x32xf32, #tpu.memory_space<vmem>>, vector<1x128x32xf32>
    %598 = vector.shape_cast %597 : vector<1x128x32xf32> to vector<128x32xf32>
    %cst_273 = arith.constant dense<0.000000e+00> : vector<128x32xf32>
    %599 = tpu.matmul %598, %596, %cst_273 {dimension_numbers = #tpu.dot_dimension_numbers<[1], [0], [0], [1], [0, 0, 1, 1], [], []>} : vector<128x32xf32>, vector<32x32xf32>, vector<128x32xf32> -> vector<128x32xf32>
    %600 = vector.extract_strided_slice %599 {offsets = [0, 0], sizes = [32, 32], strides = [1, 1]} : vector<128x32xf32> to vector<32x32xf32>
    %601 = vector.extract_strided_slice %599 {offsets = [32, 0], sizes = [32, 32], strides = [1, 1]} : vector<128x32xf32> to vector<32x32xf32>
    %602 = vector.extract_strided_slice %599 {offsets = [64, 0], sizes = [32, 32], strides = [1, 1]} : vector<128x32xf32> to vector<32x32xf32>
    %603 = vector.extract_strided_slice %599 {offsets = [96, 0], sizes = [32, 32], strides = [1, 1]} : vector<128x32xf32> to vector<32x32xf32>
    %604 = tpu.iota {dimensions = array<i32: 0>} : vector<32x64xi32>
    %605 = tpu.iota {dimensions = array<i32: 1>} : vector<32x64xi32>
    %c2_i32_274 = arith.constant 2 : i32
    %606 = vector.broadcast %c2_i32_274 : i32 to vector<32x64xi32>
    %607 = arith.muli %606, %604 : vector<32x64xi32>
    %608 = arith.cmpi eq, %605, %607 : vector<32x64xi32>
    %cst_275 = arith.constant 1.000000e+00 : f32
    %cst_276 = arith.constant 0.000000e+00 : f32
    %609 = vector.broadcast %cst_275 : f32 to vector<32x64xf32>
    %610 = vector.broadcast %cst_276 : f32 to vector<32x64xf32>
    %611 = arith.select %608, %609, %610 : vector<32x64xi1>, vector<32x64xf32>
    %c2_i32_277 = arith.constant 2 : i32
    %612 = vector.broadcast %c2_i32_277 : i32 to vector<32x64xi32>
    %613 = arith.muli %612, %604 : vector<32x64xi32>
    %c1_i32_278 = arith.constant 1 : i32
    %614 = vector.broadcast %c1_i32_278 : i32 to vector<32x64xi32>
    %615 = arith.addi %613, %614 : vector<32x64xi32>
    %616 = arith.cmpi eq, %605, %615 : vector<32x64xi32>
    %cst_279 = arith.constant 1.000000e+00 : f32
    %cst_280 = arith.constant 0.000000e+00 : f32
    %617 = vector.broadcast %cst_279 : f32 to vector<32x64xf32>
    %618 = vector.broadcast %cst_280 : f32 to vector<32x64xf32>
    %619 = arith.select %616, %617, %618 : vector<32x64xi1>, vector<32x64xf32>
    %c2_i32_281 = arith.constant 2 : i32
    %620 = vector.broadcast %c2_i32_281 : i32 to vector<32x64xi32>
    %621 = arith.muli %620, %604 : vector<32x64xi32>
    %c2_i32_282 = arith.constant 2 : i32
    %622 = vector.broadcast %c2_i32_282 : i32 to vector<32x64xi32>
    %623 = arith.addi %621, %622 : vector<32x64xi32>
    %624 = arith.cmpi eq, %605, %623 : vector<32x64xi32>
    %c16_i32_283 = arith.constant 16 : i32
    %c0_i32_284 = arith.constant 0 : i32
    %625 = arith.cmpi eq, %c16_i32_283, %c0_i32_284 : i32
    %c1_i32_285 = arith.constant 1 : i32
    %626 = arith.select %625, %c1_i32_285, %c16_i32_283 : i32
    %627 = vector.broadcast %626 : i32 to vector<32x64xi32>
    %628 = arith.remsi %604, %627 : vector<32x64xi32>
    %c0_i32_286 = arith.constant 0 : i32
    %629 = vector.broadcast %c0_i32_286 : i32 to vector<32x64xi32>
    %630 = arith.cmpi ne, %628, %629 : vector<32x64xi32>
    %c0_i32_287 = arith.constant 0 : i32
    %631 = vector.broadcast %c0_i32_287 : i32 to vector<32x64xi32>
    %632 = arith.cmpi slt, %628, %631 : vector<32x64xi32>
    %c0_i32_288 = arith.constant 0 : i32
    %633 = arith.cmpi slt, %626, %c0_i32_288 : i32
    %634 = vector.broadcast %633 : i1 to vector<32x64xi1>
    %635 = vector.broadcast %634 : vector<32x64xi1> to vector<32x64xi1>
    %636 = arith.xori %632, %635 : vector<32x64xi1>
    %637 = arith.andi %636, %630 : vector<32x64xi1>
    %638 = vector.broadcast %626 : i32 to vector<32x64xi32>
    %639 = arith.addi %628, %638 : vector<32x64xi32>
    %640 = arith.select %637, %639, %628 : vector<32x64xi1>, vector<32x64xi32>
    %c15_i32_289 = arith.constant 15 : i32
    %641 = vector.broadcast %c15_i32_289 : i32 to vector<32x64xi32>
    %642 = arith.cmpi ne, %640, %641 : vector<32x64xi32>
    %643 = arith.andi %624, %642 : vector<32x64xi1>
    %cst_290 = arith.constant 1.000000e+00 : f32
    %cst_291 = arith.constant 0.000000e+00 : f32
    %644 = vector.broadcast %cst_290 : f32 to vector<32x64xf32>
    %645 = vector.broadcast %cst_291 : f32 to vector<32x64xf32>
    %646 = arith.select %643, %644, %645 : vector<32x64xi1>, vector<32x64xf32>
    %c2_i32_292 = arith.constant 2 : i32
    %647 = vector.broadcast %c2_i32_292 : i32 to vector<32x64xi32>
    %648 = arith.muli %647, %604 : vector<32x64xi32>
    %c1_i32_293 = arith.constant 1 : i32
    %649 = vector.broadcast %c1_i32_293 : i32 to vector<32x64xi32>
    %650 = arith.subi %648, %649 : vector<32x64xi32>
    %651 = arith.cmpi eq, %605, %650 : vector<32x64xi32>
    %c16_i32_294 = arith.constant 16 : i32
    %c0_i32_295 = arith.constant 0 : i32
    %652 = arith.cmpi eq, %c16_i32_294, %c0_i32_295 : i32
    %c1_i32_296 = arith.constant 1 : i32
    %653 = arith.select %652, %c1_i32_296, %c16_i32_294 : i32
    %654 = vector.broadcast %653 : i32 to vector<32x64xi32>
    %655 = arith.remsi %604, %654 : vector<32x64xi32>
    %c0_i32_297 = arith.constant 0 : i32
    %656 = vector.broadcast %c0_i32_297 : i32 to vector<32x64xi32>
    %657 = arith.cmpi ne, %655, %656 : vector<32x64xi32>
    %c0_i32_298 = arith.constant 0 : i32
    %658 = vector.broadcast %c0_i32_298 : i32 to vector<32x64xi32>
    %659 = arith.cmpi slt, %655, %658 : vector<32x64xi32>
    %c0_i32_299 = arith.constant 0 : i32
    %660 = arith.cmpi slt, %653, %c0_i32_299 : i32
    %661 = vector.broadcast %660 : i1 to vector<32x64xi1>
    %662 = vector.broadcast %661 : vector<32x64xi1> to vector<32x64xi1>
    %663 = arith.xori %659, %662 : vector<32x64xi1>
    %664 = arith.andi %663, %657 : vector<32x64xi1>
    %665 = vector.broadcast %653 : i32 to vector<32x64xi32>
    %666 = arith.addi %655, %665 : vector<32x64xi32>
    %667 = arith.select %664, %666, %655 : vector<32x64xi1>, vector<32x64xi32>
    %c0_i32_300 = arith.constant 0 : i32
    %668 = vector.broadcast %c0_i32_300 : i32 to vector<32x64xi32>
    %669 = arith.cmpi ne, %667, %668 : vector<32x64xi32>
    %670 = arith.andi %651, %669 : vector<32x64xi1>
    %cst_301 = arith.constant 1.000000e+00 : f32
    %cst_302 = arith.constant 0.000000e+00 : f32
    %671 = vector.broadcast %cst_301 : f32 to vector<32x64xf32>
    %672 = vector.broadcast %cst_302 : f32 to vector<32x64xf32>
    %673 = arith.select %670, %671, %672 : vector<32x64xi1>, vector<32x64xf32>
    %cst_303 = arith.constant dense<0.000000e+00> : vector<32x64xf32>
    %674 = tpu.matmul %601, %611, %cst_303 {dimension_numbers = #tpu.dot_dimension_numbers<[1], [0], [0], [1], [0, 0, 1, 1], [], []>} : vector<32x32xf32>, vector<32x64xf32>, vector<32x64xf32> -> vector<32x64xf32>
    %cst_304 = arith.constant dense<0.000000e+00> : vector<32x64xf32>
    %675 = tpu.matmul %602, %619, %cst_304 {dimension_numbers = #tpu.dot_dimension_numbers<[1], [0], [0], [1], [0, 0, 1, 1], [], []>} : vector<32x32xf32>, vector<32x64xf32>, vector<32x64xf32> -> vector<32x64xf32>
    %676 = arith.addf %674, %675 : vector<32x64xf32>
    %cst_305 = arith.constant dense<0.000000e+00> : vector<32x64xf32>
    %677 = tpu.matmul %603, %646, %cst_305 {dimension_numbers = #tpu.dot_dimension_numbers<[1], [0], [0], [1], [0, 0, 1, 1], [], []>} : vector<32x32xf32>, vector<32x64xf32>, vector<32x64xf32> -> vector<32x64xf32>
    %678 = arith.addf %676, %677 : vector<32x64xf32>
    %cst_306 = arith.constant dense<0.000000e+00> : vector<32x64xf32>
    %679 = tpu.matmul %600, %673, %cst_306 {dimension_numbers = #tpu.dot_dimension_numbers<[1], [0], [0], [1], [0, 0, 1, 1], [], []>} : vector<32x32xf32>, vector<32x64xf32>, vector<32x64xf32> -> vector<32x64xf32>
    %680 = arith.addf %678, %679 : vector<32x64xf32>
    %c3_307 = arith.constant 3 : index
    %c0_308 = arith.constant 0 : index
    %c0_309 = arith.constant 0 : index
    %681 = vector.load %arg8[%c3_307, %c0_308, %c0_309] : memref<4x32x1xf32, #tpu.memory_space<vmem>>, vector<1x32x1xf32>
    %682 = vector.shape_cast %681 : vector<1x32x1xf32> to vector<32x1xf32>
    %683 = vector.broadcast %682 : vector<32x1xf32> to vector<32x64xf32>
    %684 = arith.addf %680, %683 : vector<32x64xf32>
    %cst_310 = arith.constant 0.000000e+00 : f32
    %685 = vector.broadcast %cst_310 : f32 to vector<32x64xf32>
    %686 = arith.cmpf ogt, %684, %685 : vector<32x64xf32>
    %cst_311 = arith.constant 2.000000e-01 : f32
    %687 = vector.broadcast %cst_311 : f32 to vector<32x64xf32>
    %688 = arith.mulf %687, %684 : vector<32x64xf32>
    %689 = arith.select %686, %684, %688 : vector<32x64xi1>, vector<32x64xf32>
    %690 = tpu.transpose %689, [1, 0] : vector<32x64xf32> -> vector<64x32xf32>
    %c0_312 = arith.constant 0 : index
    %c0_313 = arith.constant 0 : index
    %691 = vector.load %arg9[%c0_312, %c0_313] : memref<32x24xf32, #tpu.memory_space<vmem>>, vector<32x24xf32>
    %cst_314 = arith.constant dense<0.000000e+00> : vector<64x24xf32>
    %692 = tpu.matmul %690, %691, %cst_314 {dimension_numbers = #tpu.dot_dimension_numbers<[1], [0], [0], [1], [0, 0, 1, 1], [], []>} : vector<64x32xf32>, vector<32x24xf32>, vector<64x24xf32> -> vector<64x24xf32>
    %c0_315 = arith.constant 0 : index
    %c0_316 = arith.constant 0 : index
    %693 = vector.load %arg10[%c0_315, %c0_316] : memref<1x24xf32, #tpu.memory_space<vmem>>, vector<1x24xf32>
    %694 = vector.broadcast %693 : vector<1x24xf32> to vector<64x24xf32>
    %695 = arith.addf %692, %694 : vector<64x24xf32>
    %c0_317 = arith.constant 0 : index
    %c0_318 = arith.constant 0 : index
    %696 = vector.load %arg11[%c0_317, %c0_318] : memref<64x24xf32, #tpu.memory_space<vmem>>, vector<64x24xf32>
    tpu.vector_store %arg11[%c0_317, %c0_318], %695 {strides = array<i32>} : memref<64x24xf32, #tpu.memory_space<vmem>>, vector<64x24xf32>,
    return
  }
}

</mosaic_0001>

<llo_original>
// kernel: tpu_custom_call.1
$region0: #{tpu_custom_call.1}
  #allocation0 [shape = 'u32[]', space=smem, size = 0x4, offset = 0x4, fixed_abs, tag = 'smem constant byte address 0x4 - core index']
  #allocation1 [shape = 'u32[144,128]{1,0:T(1,128)}', space=vmem, size = 0x12000, scoped, tag = 'internal scratch']
  %s0 = inlined_call_operand.vmem [shape: f32[64,2], index: 0, kind: input, shape index: {}]
  %s1 = inlined_call_operand.vmem [shape: f32[64,64], index: 1, kind: input, shape index: {}]
  %s2 = inlined_call_operand.vmem [shape: f32[64,1], index: 2, kind: input, shape index: {}]
  %s3 = inlined_call_operand.vmem [shape: f32[2,32,64], index: 3, kind: input, shape index: {}]
  %s4 = inlined_call_operand.vmem [shape: f32[2,32,1], index: 4, kind: input, shape index: {}]
  %s5 = inlined_call_operand.vmem [shape: f32[4,32,96], index: 5, kind: input, shape index: {}]
  %s6 = inlined_call_operand.vmem [shape: f32[4,32,1], index: 6, kind: input, shape index: {}]
  %s7 = inlined_call_operand.vmem [shape: f32[4,128,32], index: 7, kind: input, shape index: {}]
  %s8 = inlined_call_operand.vmem [shape: f32[4,32,1], index: 8, kind: input, shape index: {}]
  %s9 = inlined_call_operand.vmem [shape: f32[32,24], index: 9, kind: input, shape index: {}]
  %s10 = inlined_call_operand.vmem [shape: f32[1,24], index: 10, kind: input, shape index: {}]
  %s11 = inlined_call_operand.vmem [shape: f32[64,24], index: 11, kind: output, shape index: {}]
  %s12 = sld [smem:[#allocation0]]
  $region54: #{tpu_custom_call.1} parent=0
    _
  %s14 = ssub.s32 1, %s12
  %s15 = scalar_select 0, %s14, %s12
  // Predicated region
  $region2: #{tpu_custom_call.1} parent=0 // pred_check
    _
  $region3: #{tpu_custom_call.1} parent=0 // pred_check_branch
    %17 = sbr.rel (0) target = $region5
  $region4: #{tpu_custom_call.1} parent=0 // pred_region
    _
  $region5: #{tpu_custom_call.1} parent=0 // pred_fallthru
    _
  // Predicated region
  $region6: #{tpu_custom_call.1} parent=0 // pred_check
    _
  $region7: #{tpu_custom_call.1} parent=0 // pred_check_branch
    %19 = sbr.rel (0) target = $region9
  $region8: #{tpu_custom_call.1} parent=0 // pred_region
    _
  $region9: #{tpu_custom_call.1} parent=0 // pred_fallthru
    _
  // Predicated region
  $region10: #{tpu_custom_call.1} parent=0 // pred_check
    _
  $region11: #{tpu_custom_call.1} parent=0 // pred_check_branch
    %21 = sbr.rel (0) target = $region13
  $region12: #{tpu_custom_call.1} parent=0 // pred_region
    _
  $region13: #{tpu_custom_call.1} parent=0 // pred_fallthru
    _
  // Predicated region
  $region14: #{tpu_custom_call.1} parent=0 // pred_check
    _
  $region15: #{tpu_custom_call.1} parent=0 // pred_check_branch
    %23 = sbr.rel (0) target = $region17
  $region16: #{tpu_custom_call.1} parent=0 // pred_region
    _
  $region17: #{tpu_custom_call.1} parent=0 // pred_fallthru
    _
  // Predicated region
  $region18: #{tpu_custom_call.1} parent=0 // pred_check
    _
  $region19: #{tpu_custom_call.1} parent=0 // pred_check_branch
    %25 = sbr.rel (0) target = $region21
  $region20: #{tpu_custom_call.1} parent=0 // pred_region
    _
  $region21: #{tpu_custom_call.1} parent=0 // pred_fallthru
    _
  // Predicated region
  $region22: #{tpu_custom_call.1} parent=0 // pred_check
    _
  $region23: #{tpu_custom_call.1} parent=0 // pred_check_branch
    %27 = sbr.rel (0) target = $region25
  $region24: #{tpu_custom_call.1} parent=0 // pred_region
    _
  $region25: #{tpu_custom_call.1} parent=0 // pred_fallthru
    _
  // Predicated region
  $region26: #{tpu_custom_call.1} parent=0 // pred_check
    _
  $region27: #{tpu_custom_call.1} parent=0 // pred_check_branch
    %29 = sbr.rel (0) target = $region29
  $region28: #{tpu_custom_call.1} parent=0 // pred_region
    _
  $region29: #{tpu_custom_call.1} parent=0 // pred_fallthru
    _
  // Predicated region
  $region30: #{tpu_custom_call.1} parent=0 // pred_check
    _
  $region31: #{tpu_custom_call.1} parent=0 // pred_check_branch
    %31 = sbr.rel (0) target = $region33
  $region32: #{tpu_custom_call.1} parent=0 // pred_region
    _
  $region33: #{tpu_custom_call.1} parent=0 // pred_fallthru
    _
  // Predicated region
  $region34: #{tpu_custom_call.1} parent=0 // pred_check
    _
  $region35: #{tpu_custom_call.1} parent=0 // pred_check_branch
    %33 = sbr.rel (0) target = $region37
  $region36: #{tpu_custom_call.1} parent=0 // pred_region
    _
  $region37: #{tpu_custom_call.1} parent=0 // pred_fallthru
    _
  // Predicated region
  $region38: #{tpu_custom_call.1} parent=0 // pred_check
    _
  $region39: #{tpu_custom_call.1} parent=0 // pred_check_branch
    %35 = sbr.rel (0) target = $region41
  $region40: #{tpu_custom_call.1} parent=0 // pred_region
    _
  $region41: #{tpu_custom_call.1} parent=0 // pred_fallthru
    _
  // Predicated region
  $region42: #{tpu_custom_call.1} parent=0 // pred_check
    _
  $region43: #{tpu_custom_call.1} parent=0 // pred_check_branch
    %37 = sbr.rel (0) target = $region45
  $region44: #{tpu_custom_call.1} parent=0 // pred_region
    _
  $region45: #{tpu_custom_call.1} parent=0 // pred_fallthru
    _
  %v38 = vld [vmem:[%s1] sm:$0xff]
  %v39 = vld [vmem:[%s1 + $0x8] sm:$0xff]
  %v40 = vld [vmem:[%s1 + $0x10] sm:$0xff]
  %v41 = vld [vmem:[%s1 + $0x18] sm:$0xff]
  %v42 = vld [vmem:[%s1 + $0x20] sm:$0xff]
  %v43 = vld [vmem:[%s1 + $0x28] sm:$0xff]
  %v44 = vld [vmem:[%s1 + $0x30] sm:$0xff]
  %v45 = vld [vmem:[%s1 + $0x38] sm:$0xff]
  %v46 = vld [vmem:[%s0] sm:$0xff]
  %v47 = vld [vmem:[%s0 + $0x8] sm:$0xff]
  %v48 = vld [vmem:[%s0 + $0x10] sm:$0xff]
  %v49 = vld [vmem:[%s0 + $0x18] sm:$0xff]
  %v50 = vld [vmem:[%s0 + $0x20] sm:$0xff]
  %v51 = vld [vmem:[%s0 + $0x28] sm:$0xff]
  %v52 = vld [vmem:[%s0 + $0x30] sm:$0xff]
  %v53 = vld [vmem:[%s0 + $0x38] sm:$0xff]
  %v54 = vld [vmem:[%s2] sm:$0xff]
  %v55 = vld [vmem:[%s2 + $0x8] sm:$0xff]
  %v56 = vld [vmem:[%s2 + $0x10] sm:$0xff]
  %v57 = vld [vmem:[%s2 + $0x18] sm:$0xff]
  %v58 = vld [vmem:[%s2 + $0x20] sm:$0xff]
  %v59 = vld [vmem:[%s2 + $0x28] sm:$0xff]
  %v60 = vld [vmem:[%s2 + $0x30] sm:$0xff]
  %v61 = vld [vmem:[%s2 + $0x38] sm:$0xff]
  %63 = vset.pattern.permute.xlu0 0
  %64 = vperm.xlu0 %63, %v54
  %v65 = vpop.permute.xlu0 %64
  %68 = vset.pattern.permute.xlu0 0
  %69 = vperm.xlu0 %68, %v55
  %v70 = vpop.permute.xlu0 %69
  %73 = vset.pattern.permute.xlu0 0
  %74 = vperm.xlu0 %73, %v56
  %v75 = vpop.permute.xlu0 %74
  %78 = vset.pattern.permute.xlu0 0
  %79 = vperm.xlu0 %78, %v57
  %v80 = vpop.permute.xlu0 %79
  %83 = vset.pattern.permute.xlu0 0
  %84 = vperm.xlu0 %83, %v58
  %v85 = vpop.permute.xlu0 %84
  %88 = vset.pattern.permute.xlu0 0
  %89 = vperm.xlu0 %88, %v59
  %v90 = vpop.permute.xlu0 %89
  %93 = vset.pattern.permute.xlu0 0
  %94 = vperm.xlu0 %93, %v60
  %v95 = vpop.permute.xlu0 %94
  %98 = vset.pattern.permute.xlu0 0
  %99 = vperm.xlu0 %98, %v61
  %v100 = vpop.permute.xlu0 %99
  %vm102 = vcmask 523264
  %v104 = vsel %vm102, %v38, 0
  %v107 = vsel %vm102, %v39, 0
  %v110 = vsel %vm102, %v40, 0
  %v113 = vsel %vm102, %v41, 0
  %v116 = vsel %vm102, %v42, 0
  %v119 = vsel %vm102, %v43, 0
  %v122 = vsel %vm102, %v44, 0
  %v125 = vsel %vm102, %v45, 0
  %127 = vmatprep.subr.mxu0 0.0
  %128 = vmatpush1.msra.mxu0 0.0
  %129 = vmatprep.subr.mxu0 0.0
  %130 = vmatpush1.msra.mxu0 0.0
  %131 = vmatprep.subr.mxu0 0.0
  %132 = vmatpush1.msra.mxu0 0.0
  %133 = vmatprep.subr.mxu0 0.0
  %134 = vmatpush1.msra.mxu0 0.0
  %135 = vmatprep.subr.mxu0 0.0
  %136 = vmatpush1.msra.mxu0 0.0
  %137 = vmatprep.subr.mxu0 0.0
  %138 = vmatpush1.msra.mxu0 0.0
  %139 = vmatprep.subr.mxu0 0.0
  %140 = vmatpush1.msra.mxu0 0.0
  %141 = vmatprep.subr.mxu0 0.0
  %142 = vmatpush1.msra.mxu0 0.0
  %143 = vmatprep.subr.mxu0 0.0
  %144 = vmatpush1.msra.mxu0 %v53
  %145 = vmatprep.subr.mxu0 0.0
  %146 = vmatpush1.msra.mxu0 %v52
  %147 = vmatprep.subr.mxu0 0.0
  %148 = vmatpush1.msra.mxu0 %v51
  %149 = vmatprep.subr.mxu0 0.0
  %150 = vmatpush1.msra.mxu0 %v50
  %151 = vmatprep.subr.mxu0 0.0
  %152 = vmatpush1.msra.mxu0 %v49
  %153 = vmatprep.subr.mxu0 0.0
  %154 = vmatpush1.msra.mxu0 %v48
  %155 = vmatprep.subr.mxu0 0.0
  %156 = vmatpush1.msra.mxu0 %v47
  %157 = vmatprep.subr.mxu0 0.0
  %158 = vmatpush1.msra.mxu0 %v46
  %159 = vmatprep.subr.mxu0 0.0
  %160 = vmatpush2.msra.mxu0 0.0
  %161 = vmatprep.subr.mxu0 0.0
  %162 = vmatpush2.msra.mxu0 0.0
  %163 = vmatprep.subr.mxu0 0.0
  %164 = vmatpush2.msra.mxu0 0.0
  %165 = vmatprep.subr.mxu0 0.0
  %166 = vmatpush2.msra.mxu0 0.0
  %167 = vmatprep.subr.mxu0 0.0
  %168 = vmatpush2.msra.mxu0 0.0
  %169 = vmatprep.subr.mxu0 0.0
  %170 = vmatpush2.msra.mxu0 0.0
  %171 = vmatprep.subr.mxu0 0.0
  %172 = vmatpush2.msra.mxu0 0.0
  %173 = vmatprep.subr.mxu0 0.0
  %174 = vmatpush2.msra.mxu0 0.0
  %175 = vmatprep.subr.mxu0 0.0
  %176 = vmatpush2.msra.mxu0 0.0
  %177 = vmatprep.subr.mxu0 0.0
  %178 = vmatpush2.msra.mxu0 0.0
  %179 = vmatprep.subr.mxu0 0.0
  %180 = vmatpush2.msra.mxu0 0.0
  %181 = vmatprep.subr.mxu0 0.0
  %182 = vmatpush2.msra.mxu0 0.0
  %183 = vmatprep.subr.mxu0 0.0
  %184 = vmatpush2.msra.mxu0 0.0
  %185 = vmatprep.subr.mxu0 0.0
  %186 = vmatpush2.msra.mxu0 0.0
  %187 = vmatprep.subr.mxu0 0.0
  %188 = vmatpush2.msra.mxu0 0.0
  %189 = vmatprep.subr.mxu0 0.0
  %190 = vmatpush2.msra.mxu0 0.0
  %191 = vmatprep.mubr.f32.mxu0 0.0
  %192 = vmatmul.mubr.f32.gmra.mxu0 %v104
  %v193 = vpop.f32.mrf.mxu0
  %v194 = vadd.f32 %v65, %v193
  %v195 = vpop.f32.mrf.mxu0
  %196 = vmatprep.mubr.f32.mxu0 0.0
  %197 = vmatmul.mubr.f32.gmra.mxu0 %v107
  %v198 = vpop.f32.mrf.mxu0
  %v199 = vadd.f32 %v70, %v198
  %v200 = vpop.f32.mrf.mxu0
  %201 = vmatprep.mubr.f32.mxu0 0.0
  %202 = vmatmul.mubr.f32.gmra.mxu0 %v110
  %v203 = vpop.f32.mrf.mxu0
  %v204 = vadd.f32 %v75, %v203
  %v205 = vpop.f32.mrf.mxu0
  %206 = vmatprep.mubr.f32.mxu0 0.0
  %207 = vmatmul.mubr.f32.gmra.mxu0 %v113
  %v208 = vpop.f32.mrf.mxu0
  %v209 = vadd.f32 %v80, %v208
  %v210 = vpop.f32.mrf.mxu0
  %211 = vmatprep.mubr.f32.mxu0 0.0
  %212 = vmatmul.mubr.f32.gmra.mxu0 %v116
  %v213 = vpop.f32.mrf.mxu0
  %v214 = vadd.f32 %v85, %v213
  %v215 = vpop.f32.mrf.mxu0
  %216 = vmatprep.mubr.f32.mxu0 0.0
  %217 = vmatmul.mubr.f32.gmra.mxu0 %v119
  %v218 = vpop.f32.mrf.mxu0
  %v219 = vadd.f32 %v90, %v218
  %v220 = vpop.f32.mrf.mxu0
  %221 = vmatprep.mubr.f32.mxu0 0.0
  %222 = vmatmul.mubr.f32.gmra.mxu0 %v122
  %v223 = vpop.f32.mrf.mxu0
  %v224 = vadd.f32 %v95, %v223
  %v225 = vpop.f32.mrf.mxu0
  %226 = vmatprep.mubr.f32.mxu0 0.0
  %227 = vmatmul.mubr.f32.gmra.mxu0 %v125
  %v228 = vpop.f32.mrf.mxu0
  %v229 = vadd.f32 %v100, %v228
  %v230 = vpop.f32.mrf.mxu0
  %231 = vdwg.mxu0
  %vm232 = vcmp.gt.f32.partialorder %v194, 0.0
  %vm233 = vcmp.gt.f32.partialorder %v199, 0.0
  %vm234 = vcmp.gt.f32.partialorder %v204, 0.0
  %vm235 = vcmp.gt.f32.partialorder %v209, 0.0
  %vm236 = vcmp.gt.f32.partialorder %v214, 0.0
  %vm237 = vcmp.gt.f32.partialorder %v219, 0.0
  %vm238 = vcmp.gt.f32.partialorder %v224, 0.0
  %vm239 = vcmp.gt.f32.partialorder %v229, 0.0
  %v240 = vmul.f32 %v194, 0.2
  %v241 = vmul.f32 %v199, 0.2
  %v242 = vmul.f32 %v204, 0.2
  %v243 = vmul.f32 %v209, 0.2
  %v244 = vmul.f32 %v214, 0.2
  %v245 = vmul.f32 %v219, 0.2
  %v246 = vmul.f32 %v224, 0.2
  %v247 = vmul.f32 %v229, 0.2
  %v248 = vsel %vm232, %v194, %v240
  %v249 = vsel %vm233, %v199, %v241
  %v250 = vsel %vm234, %v204, %v242
  %v251 = vsel %vm235, %v209, %v243
  %v252 = vsel %vm236, %v214, %v244
  %v253 = vsel %vm237, %v219, %v245
  %v254 = vsel %vm238, %v224, %v246
  %v255 = vsel %vm239, %v229, %v247
  %v256 = vld [vmem:[%s3] sm:$0xff]
  %v257 = vld [vmem:[%s3 + $0x8] sm:$0xff]
  %v258 = vld [vmem:[%s3 + $0x10] sm:$0xff]
  %v259 = vld [vmem:[%s3 + $0x18] sm:$0xff]
  %v260 = vld [vmem:[%s4] sm:$0xff]
  %v261 = vld [vmem:[%s4 + $0x8] sm:$0xff]
  %v262 = vld [vmem:[%s4 + $0x10] sm:$0xff]
  %v263 = vld [vmem:[%s4 + $0x18] sm:$0xff]
  %265 = vset.pattern.permute.xlu0 0
  %266 = vperm.xlu0 %265, %v260
  %v267 = vpop.permute.xlu0 %266
  %270 = vset.pattern.permute.xlu0 0
  %271 = vperm.xlu0 %270, %v261
  %v272 = vpop.permute.xlu0 %271
  %275 = vset.pattern.permute.xlu0 0
  %276 = vperm.xlu0 %275, %v262
  %v277 = vpop.permute.xlu0 %276
  %280 = vset.pattern.permute.xlu0 0
  %281 = vperm.xlu0 %280, %v263
  %v282 = vpop.permute.xlu0 %281
  %v285 = vsel %vm102, %v256, 0
  %v288 = vsel %vm102, %v257, 0
  %v291 = vsel %vm102, %v258, 0
  %v294 = vsel %vm102, %v259, 0
  %296 = vmatprep.subr.mxu0 0.0
  %297 = vmatpush1.msra.mxu0 0.0
  %298 = vmatprep.subr.mxu0 0.0
  %299 = vmatpush1.msra.mxu0 0.0
  %300 = vmatprep.subr.mxu0 0.0
  %301 = vmatpush1.msra.mxu0 0.0
  %302 = vmatprep.subr.mxu0 0.0
  %303 = vmatpush1.msra.mxu0 0.0
  %304 = vmatprep.subr.mxu0 0.0
  %305 = vmatpush1.msra.mxu0 0.0
  %306 = vmatprep.subr.mxu0 0.0
  %307 = vmatpush1.msra.mxu0 0.0
  %308 = vmatprep.subr.mxu0 0.0
  %309 = vmatpush1.msra.mxu0 0.0
  %310 = vmatprep.subr.mxu0 0.0
  %311 = vmatpush1.msra.mxu0 0.0
  %312 = vmatprep.subr.mxu0 0.0
  %313 = vmatpush1.msra.mxu0 %v255
  %314 = vmatprep.subr.mxu0 0.0
  %315 = vmatpush1.msra.mxu0 %v254
  %316 = vmatprep.subr.mxu0 0.0
  %317 = vmatpush1.msra.mxu0 %v253
  %318 = vmatprep.subr.mxu0 0.0
  %319 = vmatpush1.msra.mxu0 %v252
  %320 = vmatprep.subr.mxu0 0.0
  %321 = vmatpush1.msra.mxu0 %v251
  %322 = vmatprep.subr.mxu0 0.0
  %323 = vmatpush1.msra.mxu0 %v250
  %324 = vmatprep.subr.mxu0 0.0
  %325 = vmatpush1.msra.mxu0 %v249
  %326 = vmatprep.subr.mxu0 0.0
  %327 = vmatpush1.msra.mxu0 %v248
  %328 = vmatprep.subr.mxu0 0.0
  %329 = vmatpush2.msra.mxu0 0.0
  %330 = vmatprep.subr.mxu0 0.0
  %331 = vmatpush2.msra.mxu0 0.0
  %332 = vmatprep.subr.mxu0 0.0
  %333 = vmatpush2.msra.mxu0 0.0
  %334 = vmatprep.subr.mxu0 0.0
  %335 = vmatpush2.msra.mxu0 0.0
  %336 = vmatprep.subr.mxu0 0.0
  %337 = vmatpush2.msra.mxu0 0.0
  %338 = vmatprep.subr.mxu0 0.0
  %339 = vmatpush2.msra.mxu0 0.0
  %340 = vmatprep.subr.mxu0 0.0
  %341 = vmatpush2.msra.mxu0 0.0
  %342 = vmatprep.subr.mxu0 0.0
  %343 = vmatpush2.msra.mxu0 0.0
  %344 = vmatprep.subr.mxu0 0.0
  %345 = vmatpush2.msra.mxu0 0.0
  %346 = vmatprep.subr.mxu0 0.0
  %347 = vmatpush2.msra.mxu0 0.0
  %348 = vmatprep.subr.mxu0 0.0
  %349 = vmatpush2.msra.mxu0 0.0
  %350 = vmatprep.subr.mxu0 0.0
  %351 = vmatpush2.msra.mxu0 0.0
  %352 = vmatprep.subr.mxu0 0.0
  %353 = vmatpush2.msra.mxu0 0.0
  %354 = vmatprep.subr.mxu0 0.0
  %355 = vmatpush2.msra.mxu0 0.0
  %356 = vmatprep.subr.mxu0 0.0
  %357 = vmatpush2.msra.mxu0 0.0
  %358 = vmatprep.subr.mxu0 0.0
  %359 = vmatpush2.msra.mxu0 0.0
  %360 = vmatprep.mubr.f32.mxu0 0.0
  %361 = vmatmul.mubr.f32.gmra.mxu0 %v285
  %v362 = vpop.f32.mrf.mxu0
  %v363 = vadd.f32 %v267, %v362
  %v364 = vpop.f32.mrf.mxu0
  %365 = vmatprep.mubr.f32.mxu0 0.0
  %366 = vmatmul.mubr.f32.gmra.mxu0 %v288
  %v367 = vpop.f32.mrf.mxu0
  %v368 = vadd.f32 %v272, %v367
  %v369 = vpop.f32.mrf.mxu0
  %370 = vmatprep.mubr.f32.mxu0 0.0
  %371 = vmatmul.mubr.f32.gmra.mxu0 %v291
  %v372 = vpop.f32.mrf.mxu0
  %v373 = vadd.f32 %v277, %v372
  %v374 = vpop.f32.mrf.mxu0
  %375 = vmatprep.mubr.f32.mxu0 0.0
  %376 = vmatmul.mubr.f32.gmra.mxu0 %v294
  %v377 = vpop.f32.mrf.mxu0
  %v378 = vadd.f32 %v282, %v377
  %v379 = vpop.f32.mrf.mxu0
  %380 = vdwg.mxu0
  %v381 = vlaneseq
  %v382 = vshrl.u32 %v381, 7
  %v383 = vlaneseq
  %v384 = vand.u32 %v383, 127
  %v385 = vmul.u32 %v382, 2
  %vm386 = vcmp.eq.s32.totalorder %v384, %v385
  %v387 = vsel %vm386, 1.0, 0.0
  %s388 = scalar_lea.vmem %s3, 32
  %v389 = vld [vmem:[%s388] sm:$0xff]
  %v390 = vld [vmem:[%s388 + $0x8] sm:$0xff]
  %v391 = vld [vmem:[%s388 + $0x10] sm:$0xff]
  %v392 = vld [vmem:[%s388 + $0x18] sm:$0xff]
  %s393 = scalar_lea.vmem %s4, 32
  %v394 = vld [vmem:[%s393] sm:$0xff]
  %v395 = vld [vmem:[%s393 + $0x8] sm:$0xff]
  %v396 = vld [vmem:[%s393 + $0x10] sm:$0xff]
  %v397 = vld [vmem:[%s393 + $0x18] sm:$0xff]
  %399 = vset.pattern.permute.xlu0 0
  %400 = vperm.xlu0 %399, %v394
  %v401 = vpop.permute.xlu0 %400
  %404 = vset.pattern.permute.xlu0 0
  %405 = vperm.xlu0 %404, %v395
  %v406 = vpop.permute.xlu0 %405
  %409 = vset.pattern.permute.xlu0 0
  %410 = vperm.xlu0 %409, %v396
  %v411 = vpop.permute.xlu0 %410
  %414 = vset.pattern.permute.xlu0 0
  %415 = vperm.xlu0 %414, %v397
  %v416 = vpop.permute.xlu0 %415
  %v419 = vsel %vm102, %v389, 0
  %v422 = vsel %vm102, %v390, 0
  %v425 = vsel %vm102, %v391, 0
  %v428 = vsel %vm102, %v392, 0
  %430 = vmatprep.subr.mxu0 0.0
  %431 = vmatpush1.msra.mxu0 0.0
  %432 = vmatprep.subr.mxu0 0.0
  %433 = vmatpush1.msra.mxu0 0.0
  %434 = vmatprep.subr.mxu0 0.0
  %435 = vmatpush1.msra.mxu0 0.0
  %436 = vmatprep.subr.mxu0 0.0
  %437 = vmatpush1.msra.mxu0 0.0
  %438 = vmatprep.subr.mxu0 0.0
  %439 = vmatpush1.msra.mxu0 0.0
  %440 = vmatprep.subr.mxu0 0.0
  %441 = vmatpush1.msra.mxu0 0.0
  %442 = vmatprep.subr.mxu0 0.0
  %443 = vmatpush1.msra.mxu0 0.0
  %444 = vmatprep.subr.mxu0 0.0
  %445 = vmatpush1.msra.mxu0 0.0
  %446 = vmatprep.subr.mxu0 0.0
  %447 = vmatpush1.msra.mxu0 %v255
  %448 = vmatprep.subr.mxu0 0.0
  %449 = vmatpush1.msra.mxu0 %v254
  %450 = vmatprep.subr.mxu0 0.0
  %451 = vmatpush1.msra.mxu0 %v253
  %452 = vmatprep.subr.mxu0 0.0
  %453 = vmatpush1.msra.mxu0 %v252
  %454 = vmatprep.subr.mxu0 0.0
  %455 = vmatpush1.msra.mxu0 %v251
  %456 = vmatprep.subr.mxu0 0.0
  %457 = vmatpush1.msra.mxu0 %v250
  %458 = vmatprep.subr.mxu0 0.0
  %459 = vmatpush1.msra.mxu0 %v249
  %460 = vmatprep.subr.mxu0 0.0
  %461 = vmatpush1.msra.mxu0 %v248
  %462 = vmatprep.subr.mxu0 0.0
  %463 = vmatpush2.msra.mxu0 0.0
  %464 = vmatprep.subr.mxu0 0.0
  %465 = vmatpush2.msra.mxu0 0.0
  %466 = vmatprep.subr.mxu0 0.0
  %467 = vmatpush2.msra.mxu0 0.0
  %468 = vmatprep.subr.mxu0 0.0
  %469 = vmatpush2.msra.mxu0 0.0
  %470 = vmatprep.subr.mxu0 0.0
  %471 = vmatpush2.msra.mxu0 0.0
  %472 = vmatprep.subr.mxu0 0.0
  %473 = vmatpush2.msra.mxu0 0.0
  %474 = vmatprep.subr.mxu0 0.0
  %475 = vmatpush2.msra.mxu0 0.0
  %476 = vmatprep.subr.mxu0 0.0
  %477 = vmatpush2.msra.mxu0 0.0
  %478 = vmatprep.subr.mxu0 0.0
  %479 = vmatpush2.msra.mxu0 0.0
  %480 = vmatprep.subr.mxu0 0.0
  %481 = vmatpush2.msra.mxu0 0.0
  %482 = vmatprep.subr.mxu0 0.0
  %483 = vmatpush2.msra.mxu0 0.0
  %484 = vmatprep.subr.mxu0 0.0
  %485 = vmatpush2.msra.mxu0 0.0
  %486 = vmatprep.subr.mxu0 0.0
  %487 = vmatpush2.msra.mxu0 0.0
  %488 = vmatprep.subr.mxu0 0.0
  %489 = vmatpush2.msra.mxu0 0.0
  %490 = vmatprep.subr.mxu0 0.0
  %491 = vmatpush2.msra.mxu0 0.0
  %492 = vmatprep.subr.mxu0 0.0
  %493 = vmatpush2.msra.mxu0 0.0
  %494 = vmatprep.mubr.f32.mxu0 0.0
  %495 = vmatmul.mubr.f32.gmra.mxu0 %v419
  %v496 = vpop.f32.mrf.mxu0
  %v497 = vadd.f32 %v401, %v496
  %v498 = vpop.f32.mrf.mxu0
  %499 = vmatprep.mubr.f32.mxu0 0.0
  %500 = vmatmul.mubr.f32.gmra.mxu0 %v422
  %v501 = vpop.f32.mrf.mxu0
  %v502 = vadd.f32 %v406, %v501
  %v503 = vpop.f32.mrf.mxu0
  %504 = vmatprep.mubr.f32.mxu0 0.0
  %505 = vmatmul.mubr.f32.gmra.mxu0 %v425
  %v506 = vpop.f32.mrf.mxu0
  %v507 = vadd.f32 %v411, %v506
  %v508 = vpop.f32.mrf.mxu0
  %509 = vmatprep.mubr.f32.mxu0 0.0
  %510 = vmatmul.mubr.f32.gmra.mxu0 %v428
  %v511 = vpop.f32.mrf.mxu0
  %v512 = vadd.f32 %v416, %v511
  %v513 = vpop.f32.mrf.mxu0
  %514 = vdwg.mxu0
  %v515 = vadd.s32 %v385, 1
  %vm516 = vcmp.eq.s32.totalorder %v384, %v515
  %v517 = vsel %vm516, 1.0, 0.0
  %vm518 = vcmask 15360
  %v520 = vsel %vm518, %v497, 0
  %v523 = vsel %vm518, %v502, 0
  %v526 = vsel %vm518, %v507, 0
  %v529 = vsel %vm518, %v512, 0
  %vm531 = vcmask 1041408
  %v533 = vsel %vm531, %v517, 0
  %535 = vmatprep.subr.mxu0 0.0
  %536 = vmatpush1.msra.mxu0 0.0
  %537 = vmatprep.subr.mxu0 0.0
  %538 = vmatpush1.msra.mxu0 0.0
  %539 = vmatprep.subr.mxu0 0.0
  %540 = vmatpush1.msra.mxu0 0.0
  %541 = vmatprep.subr.mxu0 0.0
  %542 = vmatpush1.msra.mxu0 0.0
  %543 = vmatprep.subr.mxu0 0.0
  %544 = vmatpush1.msra.mxu0 0.0
  %545 = vmatprep.subr.mxu0 0.0
  %546 = vmatpush1.msra.mxu0 0.0
  %547 = vmatprep.subr.mxu0 0.0
  %548 = vmatpush1.msra.mxu0 0.0
  %549 = vmatprep.subr.mxu0 0.0
  %550 = vmatpush1.msra.mxu0 0.0
  %551 = vmatprep.subr.mxu0 0.0
  %552 = vmatpush1.msra.mxu0 0.0
  %553 = vmatprep.subr.mxu0 0.0
  %554 = vmatpush1.msra.mxu0 0.0
  %555 = vmatprep.subr.mxu0 0.0
  %556 = vmatpush1.msra.mxu0 0.0
  %557 = vmatprep.subr.mxu0 0.0
  %558 = vmatpush1.msra.mxu0 0.0
  %559 = vmatprep.subr.mxu0 0.0
  %560 = vmatpush1.msra.mxu0 0.0
  %561 = vmatprep.subr.mxu0 0.0
  %562 = vmatpush1.msra.mxu0 0.0
  %563 = vmatprep.subr.mxu0 0.0
  %564 = vmatpush1.msra.mxu0 0.0
  %565 = vmatprep.subr.mxu0 0.0
  %566 = vmatpush1.msra.mxu0 %v533
  %567 = vmatprep.subr.mxu0 0.0
  %568 = vmatpush2.msra.mxu0 0.0
  %569 = vmatprep.subr.mxu0 0.0
  %570 = vmatpush2.msra.mxu0 0.0
  %571 = vmatprep.subr.mxu0 0.0
  %572 = vmatpush2.msra.mxu0 0.0
  %573 = vmatprep.subr.mxu0 0.0
  %574 = vmatpush2.msra.mxu0 0.0
  %575 = vmatprep.subr.mxu0 0.0
  %576 = vmatpush2.msra.mxu0 0.0
  %577 = vmatprep.subr.mxu0 0.0
  %578 = vmatpush2.msra.mxu0 0.0
  %579 = vmatprep.subr.mxu0 0.0
  %580 = vmatpush2.msra.mxu0 0.0
  %581 = vmatprep.subr.mxu0 0.0
  %582 = vmatpush2.msra.mxu0 0.0
  %583 = vmatprep.subr.mxu0 0.0
  %584 = vmatpush2.msra.mxu0 0.0
  %585 = vmatprep.subr.mxu0 0.0
  %586 = vmatpush2.msra.mxu0 0.0
  %587 = vmatprep.subr.mxu0 0.0
  %588 = vmatpush2.msra.mxu0 0.0
  %589 = vmatprep.subr.mxu0 0.0
  %590 = vmatpush2.msra.mxu0 0.0
  %591 = vmatprep.subr.mxu0 0.0
  %592 = vmatpush2.msra.mxu0 0.0
  %593 = vmatprep.subr.mxu0 0.0
  %594 = vmatpush2.msra.mxu0 0.0
  %595 = vmatprep.subr.mxu0 0.0
  %596 = vmatpush2.msra.mxu0 0.0
  %597 = vmatprep.subr.mxu0 0.0
  %598 = vmatpush2.msra.mxu0 0.0
  %599 = vmatprep.mubr.f32.mxu0 0.0
  %600 = vmatmul.mubr.f32.gmra.mxu0 %v520
  %v601 = vpop.f32.mrf.mxu0
  %v602 = vadd.f32 0.0, %v601
  %v603 = vpop.f32.mrf.mxu0
  %604 = vmatprep.mubr.f32.mxu0 0.0
  %605 = vmatmul.mubr.f32.gmra.mxu0 %v523
  %v606 = vpop.f32.mrf.mxu0
  %v607 = vadd.f32 0.0, %v606
  %v608 = vpop.f32.mrf.mxu0
  %609 = vmatprep.mubr.f32.mxu0 0.0
  %610 = vmatmul.mubr.f32.gmra.mxu0 %v526
  %v611 = vpop.f32.mrf.mxu0
  %v612 = vadd.f32 0.0, %v611
  %v613 = vpop.f32.mrf.mxu0
  %614 = vmatprep.mubr.f32.mxu0 0.0
  %615 = vmatmul.mubr.f32.gmra.mxu0 %v529
  %v616 = vpop.f32.mrf.mxu0
  %v617 = vadd.f32 0.0, %v616
  %v618 = vpop.f32.mrf.mxu0
  %619 = vdwg.mxu0
  %v621 = vsel %vm518, %v363, 0
  %v624 = vsel %vm518, %v368, 0
  %v627 = vsel %vm518, %v373, 0
  %v630 = vsel %vm518, %v378, 0
  %v633 = vsel %vm531, %v387, 0
  %635 = vmatprep.subr.mxu0 0.0
  %636 = vmatpush1.msra.mxu0 0.0
  %637 = vmatprep.subr.mxu0 0.0
  %638 = vmatpush1.msra.mxu0 0.0
  %639 = vmatprep.subr.mxu0 0.0
  %640 = vmatpush1.msra.mxu0 0.0
  %641 = vmatprep.subr.mxu0 0.0
  %642 = vmatpush1.msra.mxu0 0.0
  %643 = vmatprep.subr.mxu0 0.0
  %644 = vmatpush1.msra.mxu0 0.0
  %645 = vmatprep.subr.mxu0 0.0
  %646 = vmatpush1.msra.mxu0 0.0
  %647 = vmatprep.subr.mxu0 0.0
  %648 = vmatpush1.msra.mxu0 0.0
  %649 = vmatprep.subr.mxu0 0.0
  %650 = vmatpush1.msra.mxu0 0.0
  %651 = vmatprep.subr.mxu0 0.0
  %652 = vmatpush1.msra.mxu0 0.0
  %653 = vmatprep.subr.mxu0 0.0
  %654 = vmatpush1.msra.mxu0 0.0
  %655 = vmatprep.subr.mxu0 0.0
  %656 = vmatpush1.msra.mxu0 0.0
  %657 = vmatprep.subr.mxu0 0.0
  %658 = vmatpush1.msra.mxu0 0.0
  %659 = vmatprep.subr.mxu0 0.0
  %660 = vmatpush1.msra.mxu0 0.0
  %661 = vmatprep.subr.mxu0 0.0
  %662 = vmatpush1.msra.mxu0 0.0
  %663 = vmatprep.subr.mxu0 0.0
  %664 = vmatpush1.msra.mxu0 0.0
  %665 = vmatprep.subr.mxu0 0.0
  %666 = vmatpush1.msra.mxu0 %v633
  %667 = vmatprep.subr.mxu0 0.0
  %668 = vmatpush2.msra.mxu0 0.0
  %669 = vmatprep.subr.mxu0 0.0
  %670 = vmatpush2.msra.mxu0 0.0
  %671 = vmatprep.subr.mxu0 0.0
  %672 = vmatpush2.msra.mxu0 0.0
  %673 = vmatprep.subr.mxu0 0.0
  %674 = vmatpush2.msra.mxu0 0.0
  %675 = vmatprep.subr.mxu0 0.0
  %676 = vmatpush2.msra.mxu0 0.0
  %677 = vmatprep.subr.mxu0 0.0
  %678 = vmatpush2.msra.mxu0 0.0
  %679 = vmatprep.subr.mxu0 0.0
  %680 = vmatpush2.msra.mxu0 0.0
  %681 = vmatprep.subr.mxu0 0.0
  %682 = vmatpush2.msra.mxu0 0.0
  %683 = vmatprep.subr.mxu0 0.0
  %684 = vmatpush2.msra.mxu0 0.0
  %685 = vmatprep.subr.mxu0 0.0
  %686 = vmatpush2.msra.mxu0 0.0
  %687 = vmatprep.subr.mxu0 0.0
  %688 = vmatpush2.msra.mxu0 0.0
  %689 = vmatprep.subr.mxu0 0.0
  %690 = vmatpush2.msra.mxu0 0.0
  %691 = vmatprep.subr.mxu0 0.0
  %692 = vmatpush2.msra.mxu0 0.0
  %693 = vmatprep.subr.mxu0 0.0
  %694 = vmatpush2.msra.mxu0 0.0
  %695 = vmatprep.subr.mxu0 0.0
  %696 = vmatpush2.msra.mxu0 0.0
  %697 = vmatprep.subr.mxu0 0.0
  %698 = vmatpush2.msra.mxu0 0.0
  %699 = vmatprep.mubr.f32.mxu0 0.0
  %700 = vmatmul.mubr.f32.gmra.mxu0 %v621
  %v701 = vpop.f32.mrf.mxu0
  %v702 = vadd.f32 %v602, %v701
  %v703 = vpop.f32.mrf.mxu0
  %704 = vmatprep.mubr.f32.mxu0 0.0
  %705 = vmatmul.mubr.f32.gmra.mxu0 %v624
  %v706 = vpop.f32.mrf.mxu0
  %v707 = vadd.f32 %v607, %v706
  %v708 = vpop.f32.mrf.mxu0
  %709 = vmatprep.mubr.f32.mxu0 0.0
  %710 = vmatmul.mubr.f32.gmra.mxu0 %v627
  %v711 = vpop.f32.mrf.mxu0
  %v712 = vadd.f32 %v612, %v711
  %v713 = vpop.f32.mrf.mxu0
  %714 = vmatprep.mubr.f32.mxu0 0.0
  %715 = vmatmul.mubr.f32.gmra.mxu0 %v630
  %v716 = vpop.f32.mrf.mxu0
  %v717 = vadd.f32 %v617, %v716
  %v718 = vpop.f32.mrf.mxu0
  %719 = vdwg.mxu0
  %v720 = vadd.s32 %v382, 1
  %vm721 = vcmp.eq.s32.totalorder %v384, %v720
  %vm722 = vcmp.lt.s32.totalorder %v384, 0
  %v723 = vsub.s32 0, %v384
  %v724 = vsel %vm722, %v723, %v384
  %v725 = vshrl.u32 %v724, 1
  %v726 = vand.u32 %v724, 1
  %v727 = vsub.s32 0, %v726
  %v728 = vsel %vm722, %v727, %v726
  %vm729 = vcmp.ne.s32.totalorder %v728, 0
  %vm730 = vcmp.lt.s32.totalorder %v728, 0
  %vm731 = vmand %vm730, %vm729
  %v732 = vadd.s32 %v728, 2
  %v733 = vsel %vm731, %v732, %v728
  %vm734 = vcmp.ne.s32.totalorder %v733, 0
  %vm735 = vmand %vm721, %vm734
  %v736 = vsel %vm735, 1.0, 0.0
  %v737 = vsub.s32 %v382, 1
  %vm738 = vcmp.eq.s32.totalorder %v384, %v737
  %vm739 = vcmp.ne.s32.totalorder %v733, 1
  %vm740 = vmand %vm738, %vm739
  %v741 = vsel %vm740, 1.0, 0.0
  %vm742 = vcmask 31744
  %v744 = vsel %vm742, %v702, 0
  %v747 = vsel %vm742, %v707, 0
  %v750 = vsel %vm742, %v712, 0
  %v753 = vsel %vm742, %v717, 0
  %vm755 = vcmask 1043456
  %v757 = vsel %vm755, %v736, 0
  %759 = vmatprep.subr.mxu0 0.0
  %760 = vmatpush1.msra.mxu0 0.0
  %761 = vmatprep.subr.mxu0 0.0
  %762 = vmatpush1.msra.mxu0 0.0
  %763 = vmatprep.subr.mxu0 0.0
  %764 = vmatpush1.msra.mxu0 0.0
  %765 = vmatprep.subr.mxu0 0.0
  %766 = vmatpush1.msra.mxu0 0.0
  %767 = vmatprep.subr.mxu0 0.0
  %768 = vmatpush1.msra.mxu0 0.0
  %769 = vmatprep.subr.mxu0 0.0
  %770 = vmatpush1.msra.mxu0 0.0
  %771 = vmatprep.subr.mxu0 0.0
  %772 = vmatpush1.msra.mxu0 0.0
  %773 = vmatprep.subr.mxu0 0.0
  %774 = vmatpush1.msra.mxu0 0.0
  %775 = vmatprep.subr.mxu0 0.0
  %776 = vmatpush1.msra.mxu0 0.0
  %777 = vmatprep.subr.mxu0 0.0
  %778 = vmatpush1.msra.mxu0 0.0
  %779 = vmatprep.subr.mxu0 0.0
  %780 = vmatpush1.msra.mxu0 0.0
  %781 = vmatprep.subr.mxu0 0.0
  %782 = vmatpush1.msra.mxu0 0.0
  %783 = vmatprep.subr.mxu0 0.0
  %784 = vmatpush1.msra.mxu0 0.0
  %785 = vmatprep.subr.mxu0 0.0
  %786 = vmatpush1.msra.mxu0 0.0
  %787 = vmatprep.subr.mxu0 0.0
  %788 = vmatpush1.msra.mxu0 0.0
  %789 = vmatprep.subr.mxu0 0.0
  %790 = vmatpush1.msra.mxu0 %v757
  %791 = vmatprep.subr.mxu0 0.0
  %792 = vmatpush2.msra.mxu0 0.0
  %793 = vmatprep.subr.mxu0 0.0
  %794 = vmatpush2.msra.mxu0 0.0
  %795 = vmatprep.subr.mxu0 0.0
  %796 = vmatpush2.msra.mxu0 0.0
  %797 = vmatprep.subr.mxu0 0.0
  %798 = vmatpush2.msra.mxu0 0.0
  %799 = vmatprep.subr.mxu0 0.0
  %800 = vmatpush2.msra.mxu0 0.0
  %801 = vmatprep.subr.mxu0 0.0
  %802 = vmatpush2.msra.mxu0 0.0
  %803 = vmatprep.subr.mxu0 0.0
  %804 = vmatpush2.msra.mxu0 0.0
  %805 = vmatprep.subr.mxu0 0.0
  %806 = vmatpush2.msra.mxu0 0.0
  %807 = vmatprep.subr.mxu0 0.0
  %808 = vmatpush2.msra.mxu0 0.0
  %809 = vmatprep.subr.mxu0 0.0
  %810 = vmatpush2.msra.mxu0 0.0
  %811 = vmatprep.subr.mxu0 0.0
  %812 = vmatpush2.msra.mxu0 0.0
  %813 = vmatprep.subr.mxu0 0.0
  %814 = vmatpush2.msra.mxu0 0.0
  %815 = vmatprep.subr.mxu0 0.0
  %816 = vmatpush2.msra.mxu0 0.0
  %817 = vmatprep.subr.mxu0 0.0
  %818 = vmatpush2.msra.mxu0 0.0
  %819 = vmatprep.subr.mxu0 0.0
  %820 = vmatpush2.msra.mxu0 0.0
  %821 = vmatprep.subr.mxu0 0.0
  %822 = vmatpush2.msra.mxu0 0.0
  %823 = vmatprep.mubr.f32.mxu0 0.0
  %824 = vmatmul.mubr.f32.gmra.mxu0 %v744
  %v825 = vpop.f32.mrf.mxu0
  %v826 = vadd.f32 0.0, %v825
  %v827 = vpop.f32.mrf.mxu0
  %828 = vmatprep.mubr.f32.mxu0 0.0
  %829 = vmatmul.mubr.f32.gmra.mxu0 %v747
  %v830 = vpop.f32.mrf.mxu0
  %v831 = vadd.f32 0.0, %v830
  %v832 = vpop.f32.mrf.mxu0
  %833 = vmatprep.mubr.f32.mxu0 0.0
  %834 = vmatmul.mubr.f32.gmra.mxu0 %v750
  %v835 = vpop.f32.mrf.mxu0
  %v836 = vadd.f32 0.0, %v835
  %v837 = vpop.f32.mrf.mxu0
  %838 = vmatprep.mubr.f32.mxu0 0.0
  %839 = vmatmul.mubr.f32.gmra.mxu0 %v753
  %v840 = vpop.f32.mrf.mxu0
  %v841 = vadd.f32 0.0, %v840
  %v842 = vpop.f32.mrf.mxu0
  %843 = vdwg.mxu0
  %v845 = vsel %vm755, %v741, 0
  %847 = vmatprep.subr.mxu0 0.0
  %848 = vmatpush1.msra.mxu0 0.0
  %849 = vmatprep.subr.mxu0 0.0
  %850 = vmatpush1.msra.mxu0 0.0
  %851 = vmatprep.subr.mxu0 0.0
  %852 = vmatpush1.msra.mxu0 0.0
  %853 = vmatprep.subr.mxu0 0.0
  %854 = vmatpush1.msra.mxu0 0.0
  %855 = vmatprep.subr.mxu0 0.0
  %856 = vmatpush1.msra.mxu0 0.0
  %857 = vmatprep.subr.mxu0 0.0
  %858 = vmatpush1.msra.mxu0 0.0
  %859 = vmatprep.subr.mxu0 0.0
  %860 = vmatpush1.msra.mxu0 0.0
  %861 = vmatprep.subr.mxu0 0.0
  %862 = vmatpush1.msra.mxu0 0.0
  %863 = vmatprep.subr.mxu0 0.0
  %864 = vmatpush1.msra.mxu0 0.0
  %865 = vmatprep.subr.mxu0 0.0
  %866 = vmatpush1.msra.mxu0 0.0
  %867 = vmatprep.subr.mxu0 0.0
  %868 = vmatpush1.msra.mxu0 0.0
  %869 = vmatprep.subr.mxu0 0.0
  %870 = vmatpush1.msra.mxu0 0.0
  %871 = vmatprep.subr.mxu0 0.0
  %872 = vmatpush1.msra.mxu0 0.0
  %873 = vmatprep.subr.mxu0 0.0
  %874 = vmatpush1.msra.mxu0 0.0
  %875 = vmatprep.subr.mxu0 0.0
  %876 = vmatpush1.msra.mxu0 0.0
  %877 = vmatprep.subr.mxu0 0.0
  %878 = vmatpush1.msra.mxu0 %v845
  %879 = vmatprep.subr.mxu0 0.0
  %880 = vmatpush2.msra.mxu0 0.0
  %881 = vmatprep.subr.mxu0 0.0
  %882 = vmatpush2.msra.mxu0 0.0
  %883 = vmatprep.subr.mxu0 0.0
  %884 = vmatpush2.msra.mxu0 0.0
  %885 = vmatprep.subr.mxu0 0.0
  %886 = vmatpush2.msra.mxu0 0.0
  %887 = vmatprep.subr.mxu0 0.0
  %888 = vmatpush2.msra.mxu0 0.0
  %889 = vmatprep.subr.mxu0 0.0
  %890 = vmatpush2.msra.mxu0 0.0
  %891 = vmatprep.subr.mxu0 0.0
  %892 = vmatpush2.msra.mxu0 0.0
  %893 = vmatprep.subr.mxu0 0.0
  %894 = vmatpush2.msra.mxu0 0.0
  %895 = vmatprep.subr.mxu0 0.0
  %896 = vmatpush2.msra.mxu0 0.0
  %897 = vmatprep.subr.mxu0 0.0
  %898 = vmatpush2.msra.mxu0 0.0
  %899 = vmatprep.subr.mxu0 0.0
  %900 = vmatpush2.msra.mxu0 0.0
  %901 = vmatprep.subr.mxu0 0.0
  %902 = vmatpush2.msra.mxu0 0.0
  %903 = vmatprep.subr.mxu0 0.0
  %904 = vmatpush2.msra.mxu0 0.0
  %905 = vmatprep.subr.mxu0 0.0
  %906 = vmatpush2.msra.mxu0 0.0
  %907 = vmatprep.subr.mxu0 0.0
  %908 = vmatpush2.msra.mxu0 0.0
  %909 = vmatprep.subr.mxu0 0.0
  %910 = vmatpush2.msra.mxu0 0.0
  %911 = vmatprep.mubr.f32.mxu0 0.0
  %912 = vmatmul.mubr.f32.gmra.mxu0 %v744
  %v913 = vpop.f32.mrf.mxu0
  %v914 = vadd.f32 0.0, %v913
  %v915 = vpop.f32.mrf.mxu0
  %916 = vmatprep.mubr.f32.mxu0 0.0
  %917 = vmatmul.mubr.f32.gmra.mxu0 %v747
  %v918 = vpop.f32.mrf.mxu0
  %v919 = vadd.f32 0.0, %v918
  %v920 = vpop.f32.mrf.mxu0
  %921 = vmatprep.mubr.f32.mxu0 0.0
  %922 = vmatmul.mubr.f32.gmra.mxu0 %v750
  %v923 = vpop.f32.mrf.mxu0
  %v924 = vadd.f32 0.0, %v923
  %v925 = vpop.f32.mrf.mxu0
  %926 = vmatprep.mubr.f32.mxu0 0.0
  %927 = vmatmul.mubr.f32.gmra.mxu0 %v753
  %v928 = vpop.f32.mrf.mxu0
  %v929 = vadd.f32 0.0, %v928
  %v930 = vpop.f32.mrf.mxu0
  %931 = vdwg.mxu0
  %v932 = vld [vmem:[%s5] sm:$0xff]
  %v933 = vld [vmem:[%s5 + $0x8] sm:$0xff]
  %v934 = vld [vmem:[%s5 + $0x10] sm:$0xff]
  %v935 = vld [vmem:[%s5 + $0x18] sm:$0xff]
  %v936 = vld [vmem:[%s6] sm:$0xff]
  %v937 = vld [vmem:[%s6 + $0x8] sm:$0xff]
  %v938 = vld [vmem:[%s6 + $0x10] sm:$0xff]
  %v939 = vld [vmem:[%s6 + $0x18] sm:$0xff]
  %941 = vset.pattern.permute.xlu0 0
  %942 = vperm.xlu0 %941, %v936
  %v943 = vpop.permute.xlu0 %942
  %946 = vset.pattern.permute.xlu0 0
  %947 = vperm.xlu0 %946, %v937
  %v948 = vpop.permute.xlu0 %947
  %951 = vset.pattern.permute.xlu0 0
  %952 = vperm.xlu0 %951, %v938
  %v953 = vpop.permute.xlu0 %952
  %956 = vset.pattern.permute.xlu0 0
  %957 = vperm.xlu0 %956, %v939
  %v958 = vpop.permute.xlu0 %957
  %vm960 = vcmask 785408
  %v962 = vsel %vm960, %v932, 0
  %v965 = vsel %vm960, %v933, 0
  %v968 = vsel %vm960, %v934, 0
  %v971 = vsel %vm960, %v935, 0
  %973 = vmatprep.subr.mxu0 0.0
  %974 = vmatpush1.msra.mxu0 0.0
  %975 = vmatprep.subr.mxu0 0.0
  %976 = vmatpush1.msra.mxu0 0.0
  %977 = vmatprep.subr.mxu0 0.0
  %978 = vmatpush1.msra.mxu0 0.0
  %979 = vmatprep.subr.mxu0 0.0
  %980 = vmatpush1.msra.mxu0 0.0
  %981 = vmatprep.subr.mxu0 0.0
  %982 = vmatpush1.msra.mxu0 %v929
  %983 = vmatprep.subr.mxu0 0.0
  %984 = vmatpush1.msra.mxu0 %v924
  %985 = vmatprep.subr.mxu0 0.0
  %986 = vmatpush1.msra.mxu0 %v919
  %987 = vmatprep.subr.mxu0 0.0
  %988 = vmatpush1.msra.mxu0 %v914
  %989 = vmatprep.subr.mxu0 0.0
  %990 = vmatpush1.msra.mxu0 %v717
  %991 = vmatprep.subr.mxu0 0.0
  %992 = vmatpush1.msra.mxu0 %v712
  %993 = vmatprep.subr.mxu0 0.0
  %994 = vmatpush1.msra.mxu0 %v707
  %995 = vmatprep.subr.mxu0 0.0
  %996 = vmatpush1.msra.mxu0 %v702
  %997 = vmatprep.subr.mxu0 0.0
  %998 = vmatpush1.msra.mxu0 %v841
  %999 = vmatprep.subr.mxu0 0.0
  %1000 = vmatpush1.msra.mxu0 %v836
  %1001 = vmatprep.subr.mxu0 0.0
  %1002 = vmatpush1.msra.mxu0 %v831
  %1003 = vmatprep.subr.mxu0 0.0
  %1004 = vmatpush1.msra.mxu0 %v826
  %1005 = vmatprep.subr.mxu0 0.0
  %1006 = vmatpush2.msra.mxu0 0.0
  %1007 = vmatprep.subr.mxu0 0.0
  %1008 = vmatpush2.msra.mxu0 0.0
  %1009 = vmatprep.subr.mxu0 0.0
  %1010 = vmatpush2.msra.mxu0 0.0
  %1011 = vmatprep.subr.mxu0 0.0
  %1012 = vmatpush2.msra.mxu0 0.0
  %1013 = vmatprep.subr.mxu0 0.0
  %1014 = vmatpush2.msra.mxu0 0.0
  %1015 = vmatprep.subr.mxu0 0.0
  %1016 = vmatpush2.msra.mxu0 0.0
  %1017 = vmatprep.subr.mxu0 0.0
  %1018 = vmatpush2.msra.mxu0 0.0
  %1019 = vmatprep.subr.mxu0 0.0
  %1020 = vmatpush2.msra.mxu0 0.0
  %1021 = vmatprep.subr.mxu0 0.0
  %1022 = vmatpush2.msra.mxu0 0.0
  %1023 = vmatprep.subr.mxu0 0.0
  %1024 = vmatpush2.msra.mxu0 0.0
  %1025 = vmatprep.subr.mxu0 0.0
  %1026 = vmatpush2.msra.mxu0 0.0
  %1027 = vmatprep.subr.mxu0 0.0
  %1028 = vmatpush2.msra.mxu0 0.0
  %1029 = vmatprep.subr.mxu0 0.0
  %1030 = vmatpush2.msra.mxu0 0.0
  %1031 = vmatprep.subr.mxu0 0.0
  %1032 = vmatpush2.msra.mxu0 0.0
  %1033 = vmatprep.subr.mxu0 0.0
  %1034 = vmatpush2.msra.mxu0 0.0
  %1035 = vmatprep.subr.mxu0 0.0
  %1036 = vmatpush2.msra.mxu0 0.0
  %1037 = vmatprep.mubr.f32.mxu0 0.0
  %1038 = vmatmul.mubr.f32.gmra.mxu0 %v962
  %v1039 = vpop.f32.mrf.mxu0
  %v1040 = vadd.f32 %v943, %v1039
  %v1041 = vpop.f32.mrf.mxu0
  %1042 = vmatprep.mubr.f32.mxu0 0.0
  %1043 = vmatmul.mubr.f32.gmra.mxu0 %v965
  %v1044 = vpop.f32.mrf.mxu0
  %v1045 = vadd.f32 %v948, %v1044
  %v1046 = vpop.f32.mrf.mxu0
  %1047 = vmatprep.mubr.f32.mxu0 0.0
  %1048 = vmatmul.mubr.f32.gmra.mxu0 %v968
  %v1049 = vpop.f32.mrf.mxu0
  %v1050 = vadd.f32 %v953, %v1049
  %v1051 = vpop.f32.mrf.mxu0
  %1052 = vmatprep.mubr.f32.mxu0 0.0
  %1053 = vmatmul.mubr.f32.gmra.mxu0 %v971
  %v1054 = vpop.f32.mrf.mxu0
  %v1055 = vadd.f32 %v958, %v1054
  %v1056 = vpop.f32.mrf.mxu0
  %1057 = vdwg.mxu0
  %vm1058 = vcmp.gt.f32.partialorder %v1040, 0.0
  %vm1059 = vcmp.gt.f32.partialorder %v1045, 0.0
  %vm1060 = vcmp.gt.f32.partialorder %v1050, 0.0
  %vm1061 = vcmp.gt.f32.partialorder %v1055, 0.0
  %v1062 = vmul.f32 %v1040, 0.2
  %v1063 = vmul.f32 %v1045, 0.2
  %v1064 = vmul.f32 %v1050, 0.2
  %v1065 = vmul.f32 %v1055, 0.2
  %v1066 = vsel %vm1058, %v1040, %v1062
  %v1067 = vsel %vm1059, %v1045, %v1063
  %v1068 = vsel %vm1060, %v1050, %v1064
  %v1069 = vsel %vm1061, %v1055, %v1065
  %v1070 = vld [vmem:[%s7] sm:$0xff]
  %v1071 = vld [vmem:[%s7 + $0x8] sm:$0xff]
  %v1072 = vld [vmem:[%s7 + $0x10] sm:$0xff]
  %v1073 = vld [vmem:[%s7 + $0x18] sm:$0xff]
  %v1074 = vld [vmem:[%s7 + $0x20] sm:$0xff]
  %v1075 = vld [vmem:[%s7 + $0x28] sm:$0xff]
  %v1076 = vld [vmem:[%s7 + $0x30] sm:$0xff]
  %v1077 = vld [vmem:[%s7 + $0x38] sm:$0xff]
  %v1078 = vld [vmem:[%s7 + $0x40] sm:$0xff]
  %v1079 = vld [vmem:[%s7 + $0x48] sm:$0xff]
  %v1080 = vld [vmem:[%s7 + $0x50] sm:$0xff]
  %v1081 = vld [vmem:[%s7 + $0x58] sm:$0xff]
  %v1082 = vld [vmem:[%s7 + $0x60] sm:$0xff]
  %v1083 = vld [vmem:[%s7 + $0x68] sm:$0xff]
  %v1084 = vld [vmem:[%s7 + $0x70] sm:$0xff]
  %v1085 = vld [vmem:[%s7 + $0x78] sm:$0xff]
  %vm1086 = vcmask 261120
  %v1088 = vsel %vm1086, %v1070, 0
  %v1091 = vsel %vm1086, %v1071, 0
  %v1094 = vsel %vm1086, %v1072, 0
  %v1097 = vsel %vm1086, %v1073, 0
  %v1100 = vsel %vm1086, %v1074, 0
  %v1103 = vsel %vm1086, %v1075, 0
  %v1106 = vsel %vm1086, %v1076, 0
  %v1109 = vsel %vm1086, %v1077, 0
  %v1112 = vsel %vm1086, %v1078, 0
  %v1115 = vsel %vm1086, %v1079, 0
  %v1118 = vsel %vm1086, %v1080, 0
  %v1121 = vsel %vm1086, %v1081, 0
  %v1124 = vsel %vm1086, %v1082, 0
  %v1127 = vsel %vm1086, %v1083, 0
  %v1130 = vsel %vm1086, %v1084, 0
  %v1133 = vsel %vm1086, %v1085, 0
  %1135 = vmatprep.subr.mxu0 0.0
  %1136 = vmatpush1.msra.mxu0 0.0
  %1137 = vmatprep.subr.mxu0 0.0
  %1138 = vmatpush1.msra.mxu0 0.0
  %1139 = vmatprep.subr.mxu0 0.0
  %1140 = vmatpush1.msra.mxu0 0.0
  %1141 = vmatprep.subr.mxu0 0.0
  %1142 = vmatpush1.msra.mxu0 0.0
  %1143 = vmatprep.subr.mxu0 0.0
  %1144 = vmatpush1.msra.mxu0 0.0
  %1145 = vmatprep.subr.mxu0 0.0
  %1146 = vmatpush1.msra.mxu0 0.0
  %1147 = vmatprep.subr.mxu0 0.0
  %1148 = vmatpush1.msra.mxu0 0.0
  %1149 = vmatprep.subr.mxu0 0.0
  %1150 = vmatpush1.msra.mxu0 0.0
  %1151 = vmatprep.subr.mxu0 0.0
  %1152 = vmatpush1.msra.mxu0 0.0
  %1153 = vmatprep.subr.mxu0 0.0
  %1154 = vmatpush1.msra.mxu0 0.0
  %1155 = vmatprep.subr.mxu0 0.0
  %1156 = vmatpush1.msra.mxu0 0.0
  %1157 = vmatprep.subr.mxu0 0.0
  %1158 = vmatpush1.msra.mxu0 0.0
  %1159 = vmatprep.subr.mxu0 0.0
  %1160 = vmatpush1.msra.mxu0 %v1069
  %1161 = vmatprep.subr.mxu0 0.0
  %1162 = vmatpush1.msra.mxu0 %v1068
  %1163 = vmatprep.subr.mxu0 0.0
  %1164 = vmatpush1.msra.mxu0 %v1067
  %1165 = vmatprep.subr.mxu0 0.0
  %1166 = vmatpush1.msra.mxu0 %v1066
  %1167 = vmatprep.subr.mxu0 0.0
  %1168 = vmatpush2.msra.mxu0 0.0
  %1169 = vmatprep.subr.mxu0 0.0
  %1170 = vmatpush2.msra.mxu0 0.0
  %1171 = vmatprep.subr.mxu0 0.0
  %1172 = vmatpush2.msra.mxu0 0.0
  %1173 = vmatprep.subr.mxu0 0.0
  %1174 = vmatpush2.msra.mxu0 0.0
  %1175 = vmatprep.subr.mxu0 0.0
  %1176 = vmatpush2.msra.mxu0 0.0
  %1177 = vmatprep.subr.mxu0 0.0
  %1178 = vmatpush2.msra.mxu0 0.0
  %1179 = vmatprep.subr.mxu0 0.0
  %1180 = vmatpush2.msra.mxu0 0.0
  %1181 = vmatprep.subr.mxu0 0.0
  %1182 = vmatpush2.msra.mxu0 0.0
  %1183 = vmatprep.subr.mxu0 0.0
  %1184 = vmatpush2.msra.mxu0 0.0
  %1185 = vmatprep.subr.mxu0 0.0
  %1186 = vmatpush2.msra.mxu0 0.0
  %1187 = vmatprep.subr.mxu0 0.0
  %1188 = vmatpush2.msra.mxu0 0.0
  %1189 = vmatprep.subr.mxu0 0.0
  %1190 = vmatpush2.msra.mxu0 0.0
  %1191 = vmatprep.subr.mxu0 0.0
  %1192 = vmatpush2.msra.mxu0 0.0
  %1193 = vmatprep.subr.mxu0 0.0
  %1194 = vmatpush2.msra.mxu0 0.0
  %1195 = vmatprep.subr.mxu0 0.0
  %1196 = vmatpush2.msra.mxu0 0.0
  %1197 = vmatprep.subr.mxu0 0.0
  %1198 = vmatpush2.msra.mxu0 0.0
  %1199 = vmatprep.mubr.f32.mxu0 0.0
  %1200 = vmatmul.mubr.f32.gmra.mxu0 %v1088
  %v1201 = vpop.f32.mrf.mxu0
  %v1202 = vadd.f32 0.0, %v1201
  %v1203 = vpop.f32.mrf.mxu0
  %1204 = vmatprep.mubr.f32.mxu0 0.0
  %1205 = vmatmul.mubr.f32.gmra.mxu0 %v1091
  %v1206 = vpop.f32.mrf.mxu0
  %v1207 = vadd.f32 0.0, %v1206
  %v1208 = vpop.f32.mrf.mxu0
  %1209 = vmatprep.mubr.f32.mxu0 0.0
  %1210 = vmatmul.mubr.f32.gmra.mxu0 %v1094
  %v1211 = vpop.f32.mrf.mxu0
  %v1212 = vadd.f32 0.0, %v1211
  %v1213 = vpop.f32.mrf.mxu0
  %1214 = vmatprep.mubr.f32.mxu0 0.0
  %1215 = vmatmul.mubr.f32.gmra.mxu0 %v1097
  %v1216 = vpop.f32.mrf.mxu0
  %v1217 = vadd.f32 0.0, %v1216
  %v1218 = vpop.f32.mrf.mxu0
  %1219 = vmatprep.mubr.f32.mxu0 0.0
  %1220 = vmatmul.mubr.f32.gmra.mxu0 %v1100
  %v1221 = vpop.f32.mrf.mxu0
  %v1222 = vadd.f32 0.0, %v1221
  %v1223 = vpop.f32.mrf.mxu0
  %1224 = vmatprep.mubr.f32.mxu0 0.0
  %1225 = vmatmul.mubr.f32.gmra.mxu0 %v1103
  %v1226 = vpop.f32.mrf.mxu0
  %v1227 = vadd.f32 0.0, %v1226
  %v1228 = vpop.f32.mrf.mxu0
  %1229 = vmatprep.mubr.f32.mxu0 0.0
  %1230 = vmatmul.mubr.f32.gmra.mxu0 %v1106
  %v1231 = vpop.f32.mrf.mxu0
  %v1232 = vadd.f32 0.0, %v1231
  %v1233 = vpop.f32.mrf.mxu0
  %1234 = vmatprep.mubr.f32.mxu0 0.0
  %1235 = vmatmul.mubr.f32.gmra.mxu0 %v1109
  %v1236 = vpop.f32.mrf.mxu0
  %v1237 = vadd.f32 0.0, %v1236
  %v1238 = vpop.f32.mrf.mxu0
  %1239 = vmatprep.mubr.f32.mxu0 0.0
  %1240 = vmatmul.mubr.f32.gmra.mxu0 %v1112
  %v1241 = vpop.f32.mrf.mxu0
  %v1242 = vadd.f32 0.0, %v1241
  %v1243 = vpop.f32.mrf.mxu0
  %1244 = vmatprep.mubr.f32.mxu0 0.0
  %1245 = vmatmul.mubr.f32.gmra.mxu0 %v1115
  %v1246 = vpop.f32.mrf.mxu0
  %v1247 = vadd.f32 0.0, %v1246
  %v1248 = vpop.f32.mrf.mxu0
  %1249 = vmatprep.mubr.f32.mxu0 0.0
  %1250 = vmatmul.mubr.f32.gmra.mxu0 %v1118
  %v1251 = vpop.f32.mrf.mxu0
  %v1252 = vadd.f32 0.0, %v1251
  %v1253 = vpop.f32.mrf.mxu0
  %1254 = vmatprep.mubr.f32.mxu0 0.0
  %1255 = vmatmul.mubr.f32.gmra.mxu0 %v1121
  %v1256 = vpop.f32.mrf.mxu0
  %v1257 = vadd.f32 0.0, %v1256
  %v1258 = vpop.f32.mrf.mxu0
  %1259 = vmatprep.mubr.f32.mxu0 0.0
  %1260 = vmatmul.mubr.f32.gmra.mxu0 %v1124
  %v1261 = vpop.f32.mrf.mxu0
  %v1262 = vadd.f32 0.0, %v1261
  %v1263 = vpop.f32.mrf.mxu0
  %1264 = vmatprep.mubr.f32.mxu0 0.0
  %1265 = vmatmul.mubr.f32.gmra.mxu0 %v1127
  %v1266 = vpop.f32.mrf.mxu0
  %v1267 = vadd.f32 0.0, %v1266
  %v1268 = vpop.f32.mrf.mxu0
  %1269 = vmatprep.mubr.f32.mxu0 0.0
  %1270 = vmatmul.mubr.f32.gmra.mxu0 %v1130
  %v1271 = vpop.f32.mrf.mxu0
  %v1272 = vadd.f32 0.0, %v1271
  %v1273 = vpop.f32.mrf.mxu0
  %1274 = vmatprep.mubr.f32.mxu0 0.0
  %1275 = vmatmul.mubr.f32.gmra.mxu0 %v1133
  %v1276 = vpop.f32.mrf.mxu0
  %v1277 = vadd.f32 0.0, %v1276
  %v1278 = vpop.f32.mrf.mxu0
  %1279 = vdwg.mxu0
  %v1280 = vadd.s32 %v385, 2
  %vm1281 = vcmp.eq.s32.totalorder %v384, %v1280
  %vm1282 = vcmp.lt.s32.totalorder %v382, 0
  %v1283 = vsub.s32 0, %v382
  %v1284 = vsel %vm1282, %v1283, %v382
  %v1285 = vshrl.u32 %v1284, 1
  %v1286 = vand.u32 %v1284, 1
  %v1287 = vsub.s32 0, %v1286
  %v1288 = vsel %vm1282, %v1287, %v1286
  %vm1289 = vcmp.ne.s32.totalorder %v1288, 0
  %vm1290 = vcmp.lt.s32.totalorder %v1288, 0
  %vm1291 = vmand %vm1290, %vm1289
  %v1292 = vadd.s32 %v1288, 2
  %v1293 = vsel %vm1291, %v1292, %v1288
  %vm1294 = vcmp.ne.s32.totalorder %v1293, 1
  %vm1295 = vmand %vm1281, %vm1294
  %v1296 = vsel %vm1295, 1.0, 0.0
  %v1297 = vsub.s32 %v385, 1
  %vm1298 = vcmp.eq.s32.totalorder %v384, %v1297
  %vm1299 = vcmp.ne.s32.totalorder %v1293, 0
  %vm1300 = vmand %vm1298, %vm1299
  %v1301 = vsel %vm1300, 1.0, 0.0
  %v1303 = vsel %vm742, %v1242, 0
  %v1306 = vsel %vm742, %v1247, 0
  %v1309 = vsel %vm742, %v1252, 0
  %v1312 = vsel %vm742, %v1257, 0
  %v1314 = vsel %vm755, %v517, 0
  %1316 = vmatprep.subr.mxu0 0.0
  %1317 = vmatpush1.msra.mxu0 0.0
  %1318 = vmatprep.subr.mxu0 0.0
  %1319 = vmatpush1.msra.mxu0 0.0
  %1320 = vmatprep.subr.mxu0 0.0
  %1321 = vmatpush1.msra.mxu0 0.0
  %1322 = vmatprep.subr.mxu0 0.0
  %1323 = vmatpush1.msra.mxu0 0.0
  %1324 = vmatprep.subr.mxu0 0.0
  %1325 = vmatpush1.msra.mxu0 0.0
  %1326 = vmatprep.subr.mxu0 0.0
  %1327 = vmatpush1.msra.mxu0 0.0
  %1328 = vmatprep.subr.mxu0 0.0
  %1329 = vmatpush1.msra.mxu0 0.0
  %1330 = vmatprep.subr.mxu0 0.0
  %1331 = vmatpush1.msra.mxu0 0.0
  %1332 = vmatprep.subr.mxu0 0.0
  %1333 = vmatpush1.msra.mxu0 0.0
  %1334 = vmatprep.subr.mxu0 0.0
  %1335 = vmatpush1.msra.mxu0 0.0
  %1336 = vmatprep.subr.mxu0 0.0
  %1337 = vmatpush1.msra.mxu0 0.0
  %1338 = vmatprep.subr.mxu0 0.0
  %1339 = vmatpush1.msra.mxu0 0.0
  %1340 = vmatprep.subr.mxu0 0.0
  %1341 = vmatpush1.msra.mxu0 0.0
  %1342 = vmatprep.subr.mxu0 0.0
  %1343 = vmatpush1.msra.mxu0 0.0
  %1344 = vmatprep.subr.mxu0 0.0
  %1345 = vmatpush1.msra.mxu0 0.0
  %1346 = vmatprep.subr.mxu0 0.0
  %1347 = vmatpush1.msra.mxu0 %v1314
  %1348 = vmatprep.subr.mxu0 0.0
  %1349 = vmatpush2.msra.mxu0 0.0
  %1350 = vmatprep.subr.mxu0 0.0
  %1351 = vmatpush2.msra.mxu0 0.0
  %1352 = vmatprep.subr.mxu0 0.0
  %1353 = vmatpush2.msra.mxu0 0.0
  %1354 = vmatprep.subr.mxu0 0.0
  %1355 = vmatpush2.msra.mxu0 0.0
  %1356 = vmatprep.subr.mxu0 0.0
  %1357 = vmatpush2.msra.mxu0 0.0
  %1358 = vmatprep.subr.mxu0 0.0
  %1359 = vmatpush2.msra.mxu0 0.0
  %1360 = vmatprep.subr.mxu0 0.0
  %1361 = vmatpush2.msra.mxu0 0.0
  %1362 = vmatprep.subr.mxu0 0.0
  %1363 = vmatpush2.msra.mxu0 0.0
  %1364 = vmatprep.subr.mxu0 0.0
  %1365 = vmatpush2.msra.mxu0 0.0
  %1366 = vmatprep.subr.mxu0 0.0
  %1367 = vmatpush2.msra.mxu0 0.0
  %1368 = vmatprep.subr.mxu0 0.0
  %1369 = vmatpush2.msra.mxu0 0.0
  %1370 = vmatprep.subr.mxu0 0.0
  %1371 = vmatpush2.msra.mxu0 0.0
  %1372 = vmatprep.subr.mxu0 0.0
  %1373 = vmatpush2.msra.mxu0 0.0
  %1374 = vmatprep.subr.mxu0 0.0
  %1375 = vmatpush2.msra.mxu0 0.0
  %1376 = vmatprep.subr.mxu0 0.0
  %1377 = vmatpush2.msra.mxu0 0.0
  %1378 = vmatprep.subr.mxu0 0.0
  %1379 = vmatpush2.msra.mxu0 0.0
  %1380 = vmatprep.mubr.f32.mxu0 0.0
  %1381 = vmatmul.mubr.f32.gmra.mxu0 %v1303
  %v1382 = vpop.f32.mrf.mxu0
  %v1383 = vadd.f32 0.0, %v1382
  %v1384 = vpop.f32.mrf.mxu0
  %1385 = vmatprep.mubr.f32.mxu0 0.0
  %1386 = vmatmul.mubr.f32.gmra.mxu0 %v1306
  %v1387 = vpop.f32.mrf.mxu0
  %v1388 = vadd.f32 0.0, %v1387
  %v1389 = vpop.f32.mrf.mxu0
  %1390 = vmatprep.mubr.f32.mxu0 0.0
  %1391 = vmatmul.mubr.f32.gmra.mxu0 %v1309
  %v1392 = vpop.f32.mrf.mxu0
  %v1393 = vadd.f32 0.0, %v1392
  %v1394 = vpop.f32.mrf.mxu0
  %1395 = vmatprep.mubr.f32.mxu0 0.0
  %1396 = vmatmul.mubr.f32.gmra.mxu0 %v1312
  %v1397 = vpop.f32.mrf.mxu0
  %v1398 = vadd.f32 0.0, %v1397
  %v1399 = vpop.f32.mrf.mxu0
  %1400 = vdwg.mxu0
  %v1402 = vsel %vm742, %v1222, 0
  %v1405 = vsel %vm742, %v1227, 0
  %v1408 = vsel %vm742, %v1232, 0
  %v1411 = vsel %vm742, %v1237, 0
  %v1413 = vsel %vm755, %v387, 0
  %1415 = vmatprep.subr.mxu0 0.0
  %1416 = vmatpush1.msra.mxu0 0.0
  %1417 = vmatprep.subr.mxu0 0.0
  %1418 = vmatpush1.msra.mxu0 0.0
  %1419 = vmatprep.subr.mxu0 0.0
  %1420 = vmatpush1.msra.mxu0 0.0
  %1421 = vmatprep.subr.mxu0 0.0
  %1422 = vmatpush1.msra.mxu0 0.0
  %1423 = vmatprep.subr.mxu0 0.0
  %1424 = vmatpush1.msra.mxu0 0.0
  %1425 = vmatprep.subr.mxu0 0.0
  %1426 = vmatpush1.msra.mxu0 0.0
  %1427 = vmatprep.subr.mxu0 0.0
  %1428 = vmatpush1.msra.mxu0 0.0
  %1429 = vmatprep.subr.mxu0 0.0
  %1430 = vmatpush1.msra.mxu0 0.0
  %1431 = vmatprep.subr.mxu0 0.0
  %1432 = vmatpush1.msra.mxu0 0.0
  %1433 = vmatprep.subr.mxu0 0.0
  %1434 = vmatpush1.msra.mxu0 0.0
  %1435 = vmatprep.subr.mxu0 0.0
  %1436 = vmatpush1.msra.mxu0 0.0
  %1437 = vmatprep.subr.mxu0 0.0
  %1438 = vmatpush1.msra.mxu0 0.0
  %1439 = vmatprep.subr.mxu0 0.0
  %1440 = vmatpush1.msra.mxu0 0.0
  %1441 = vmatprep.subr.mxu0 0.0
  %1442 = vmatpush1.msra.mxu0 0.0
  %1443 = vmatprep.subr.mxu0 0.0
  %1444 = vmatpush1.msra.mxu0 0.0
  %1445 = vmatprep.subr.mxu0 0.0
  %1446 = vmatpush1.msra.mxu0 %v1413
  %1447 = vmatprep.subr.mxu0 0.0
  %1448 = vmatpush2.msra.mxu0 0.0
  %1449 = vmatprep.subr.mxu0 0.0
  %1450 = vmatpush2.msra.mxu0 0.0
  %1451 = vmatprep.subr.mxu0 0.0
  %1452 = vmatpush2.msra.mxu0 0.0
  %1453 = vmatprep.subr.mxu0 0.0
  %1454 = vmatpush2.msra.mxu0 0.0
  %1455 = vmatprep.subr.mxu0 0.0
  %1456 = vmatpush2.msra.mxu0 0.0
  %1457 = vmatprep.subr.mxu0 0.0
  %1458 = vmatpush2.msra.mxu0 0.0
  %1459 = vmatprep.subr.mxu0 0.0
  %1460 = vmatpush2.msra.mxu0 0.0
  %1461 = vmatprep.subr.mxu0 0.0
  %1462 = vmatpush2.msra.mxu0 0.0
  %1463 = vmatprep.subr.mxu0 0.0
  %1464 = vmatpush2.msra.mxu0 0.0
  %1465 = vmatprep.subr.mxu0 0.0
  %1466 = vmatpush2.msra.mxu0 0.0
  %1467 = vmatprep.subr.mxu0 0.0
  %1468 = vmatpush2.msra.mxu0 0.0
  %1469 = vmatprep.subr.mxu0 0.0
  %1470 = vmatpush2.msra.mxu0 0.0
  %1471 = vmatprep.subr.mxu0 0.0
  %1472 = vmatpush2.msra.mxu0 0.0
  %1473 = vmatprep.subr.mxu0 0.0
  %1474 = vmatpush2.msra.mxu0 0.0
  %1475 = vmatprep.subr.mxu0 0.0
  %1476 = vmatpush2.msra.mxu0 0.0
  %1477 = vmatprep.subr.mxu0 0.0
  %1478 = vmatpush2.msra.mxu0 0.0
  %1479 = vmatprep.mubr.f32.mxu0 0.0
  %1480 = vmatmul.mubr.f32.gmra.mxu0 %v1402
  %v1481 = vpop.f32.mrf.mxu0
  %v1482 = vadd.f32 %v1383, %v1481
  %v1483 = vpop.f32.mrf.mxu0
  %1484 = vmatprep.mubr.f32.mxu0 0.0
  %1485 = vmatmul.mubr.f32.gmra.mxu0 %v1405
  %v1486 = vpop.f32.mrf.mxu0
  %v1487 = vadd.f32 %v1388, %v1486
  %v1488 = vpop.f32.mrf.mxu0
  %1489 = vmatprep.mubr.f32.mxu0 0.0
  %1490 = vmatmul.mubr.f32.gmra.mxu0 %v1408
  %v1491 = vpop.f32.mrf.mxu0
  %v1492 = vadd.f32 %v1393, %v1491
  %v1493 = vpop.f32.mrf.mxu0
  %1494 = vmatprep.mubr.f32.mxu0 0.0
  %1495 = vmatmul.mubr.f32.gmra.mxu0 %v1411
  %v1496 = vpop.f32.mrf.mxu0
  %v1497 = vadd.f32 %v1398, %v1496
  %v1498 = vpop.f32.mrf.mxu0
  %1499 = vdwg.mxu0
  %v1501 = vsel %vm742, %v1262, 0
  %v1504 = vsel %vm742, %v1267, 0
  %v1507 = vsel %vm742, %v1272, 0
  %v1510 = vsel %vm742, %v1277, 0
  %v1513 = vsel %vm755, %v1296, 0
  %1515 = vmatprep.subr.mxu0 0.0
  %1516 = vmatpush1.msra.mxu0 0.0
  %1517 = vmatprep.subr.mxu0 0.0
  %1518 = vmatpush1.msra.mxu0 0.0
  %1519 = vmatprep.subr.mxu0 0.0
  %1520 = vmatpush1.msra.mxu0 0.0
  %1521 = vmatprep.subr.mxu0 0.0
  %1522 = vmatpush1.msra.mxu0 0.0
  %1523 = vmatprep.subr.mxu0 0.0
  %1524 = vmatpush1.msra.mxu0 0.0
  %1525 = vmatprep.subr.mxu0 0.0
  %1526 = vmatpush1.msra.mxu0 0.0
  %1527 = vmatprep.subr.mxu0 0.0
  %1528 = vmatpush1.msra.mxu0 0.0
  %1529 = vmatprep.subr.mxu0 0.0
  %1530 = vmatpush1.msra.mxu0 0.0
  %1531 = vmatprep.subr.mxu0 0.0
  %1532 = vmatpush1.msra.mxu0 0.0
  %1533 = vmatprep.subr.mxu0 0.0
  %1534 = vmatpush1.msra.mxu0 0.0
  %1535 = vmatprep.subr.mxu0 0.0
  %1536 = vmatpush1.msra.mxu0 0.0
  %1537 = vmatprep.subr.mxu0 0.0
  %1538 = vmatpush1.msra.mxu0 0.0
  %1539 = vmatprep.subr.mxu0 0.0
  %1540 = vmatpush1.msra.mxu0 0.0
  %1541 = vmatprep.subr.mxu0 0.0
  %1542 = vmatpush1.msra.mxu0 0.0
  %1543 = vmatprep.subr.mxu0 0.0
  %1544 = vmatpush1.msra.mxu0 0.0
  %1545 = vmatprep.subr.mxu0 0.0
  %1546 = vmatpush1.msra.mxu0 %v1513
  %1547 = vmatprep.subr.mxu0 0.0
  %1548 = vmatpush2.msra.mxu0 0.0
  %1549 = vmatprep.subr.mxu0 0.0
  %1550 = vmatpush2.msra.mxu0 0.0
  %1551 = vmatprep.subr.mxu0 0.0
  %1552 = vmatpush2.msra.mxu0 0.0
  %1553 = vmatprep.subr.mxu0 0.0
  %1554 = vmatpush2.msra.mxu0 0.0
  %1555 = vmatprep.subr.mxu0 0.0
  %1556 = vmatpush2.msra.mxu0 0.0
  %1557 = vmatprep.subr.mxu0 0.0
  %1558 = vmatpush2.msra.mxu0 0.0
  %1559 = vmatprep.subr.mxu0 0.0
  %1560 = vmatpush2.msra.mxu0 0.0
  %1561 = vmatprep.subr.mxu0 0.0
  %1562 = vmatpush2.msra.mxu0 0.0
  %1563 = vmatprep.subr.mxu0 0.0
  %1564 = vmatpush2.msra.mxu0 0.0
  %1565 = vmatprep.subr.mxu0 0.0
  %1566 = vmatpush2.msra.mxu0 0.0
  %1567 = vmatprep.subr.mxu0 0.0
  %1568 = vmatpush2.msra.mxu0 0.0
  %1569 = vmatprep.subr.mxu0 0.0
  %1570 = vmatpush2.msra.mxu0 0.0
  %1571 = vmatprep.subr.mxu0 0.0
  %1572 = vmatpush2.msra.mxu0 0.0
  %1573 = vmatprep.subr.mxu0 0.0
  %1574 = vmatpush2.msra.mxu0 0.0
  %1575 = vmatprep.subr.mxu0 0.0
  %1576 = vmatpush2.msra.mxu0 0.0
  %1577 = vmatprep.subr.mxu0 0.0
  %1578 = vmatpush2.msra.mxu0 0.0
  %1579 = vmatprep.mubr.f32.mxu0 0.0
  %1580 = vmatmul.mubr.f32.gmra.mxu0 %v1501
  %v1581 = vpop.f32.mrf.mxu0
  %v1582 = vadd.f32 0.0, %v1581
  %v1583 = vpop.f32.mrf.mxu0
  %1584 = vmatprep.mubr.f32.mxu0 0.0
  %1585 = vmatmul.mubr.f32.gmra.mxu0 %v1504
  %v1586 = vpop.f32.mrf.mxu0
  %v1587 = vadd.f32 0.0, %v1586
  %v1588 = vpop.f32.mrf.mxu0
  %1589 = vmatprep.mubr.f32.mxu0 0.0
  %1590 = vmatmul.mubr.f32.gmra.mxu0 %v1507
  %v1591 = vpop.f32.mrf.mxu0
  %v1592 = vadd.f32 0.0, %v1591
  %v1593 = vpop.f32.mrf.mxu0
  %1594 = vmatprep.mubr.f32.mxu0 0.0
  %1595 = vmatmul.mubr.f32.gmra.mxu0 %v1510
  %v1596 = vpop.f32.mrf.mxu0
  %v1597 = vadd.f32 0.0, %v1596
  %v1598 = vpop.f32.mrf.mxu0
  %1599 = vdwg.mxu0
  %v1600 = vadd.f32 %v1482, %v1582
  %v1601 = vadd.f32 %v1487, %v1587
  %v1602 = vadd.f32 %v1492, %v1592
  %v1603 = vadd.f32 %v1497, %v1597
  %v1605 = vsel %vm742, %v1202, 0
  %v1608 = vsel %vm742, %v1207, 0
  %v1611 = vsel %vm742, %v1212, 0
  %v1614 = vsel %vm742, %v1217, 0
  %v1617 = vsel %vm755, %v1301, 0
  %1619 = vmatprep.subr.mxu0 0.0
  %1620 = vmatpush1.msra.mxu0 0.0
  %1621 = vmatprep.subr.mxu0 0.0
  %1622 = vmatpush1.msra.mxu0 0.0
  %1623 = vmatprep.subr.mxu0 0.0
  %1624 = vmatpush1.msra.mxu0 0.0
  %1625 = vmatprep.subr.mxu0 0.0
  %1626 = vmatpush1.msra.mxu0 0.0
  %1627 = vmatprep.subr.mxu0 0.0
  %1628 = vmatpush1.msra.mxu0 0.0
  %1629 = vmatprep.subr.mxu0 0.0
  %1630 = vmatpush1.msra.mxu0 0.0
  %1631 = vmatprep.subr.mxu0 0.0
  %1632 = vmatpush1.msra.mxu0 0.0
  %1633 = vmatprep.subr.mxu0 0.0
  %1634 = vmatpush1.msra.mxu0 0.0
  %1635 = vmatprep.subr.mxu0 0.0
  %1636 = vmatpush1.msra.mxu0 0.0
  %1637 = vmatprep.subr.mxu0 0.0
  %1638 = vmatpush1.msra.mxu0 0.0
  %1639 = vmatprep.subr.mxu0 0.0
  %1640 = vmatpush1.msra.mxu0 0.0
  %1641 = vmatprep.subr.mxu0 0.0
  %1642 = vmatpush1.msra.mxu0 0.0
  %1643 = vmatprep.subr.mxu0 0.0
  %1644 = vmatpush1.msra.mxu0 0.0
  %1645 = vmatprep.subr.mxu0 0.0
  %1646 = vmatpush1.msra.mxu0 0.0
  %1647 = vmatprep.subr.mxu0 0.0
  %1648 = vmatpush1.msra.mxu0 0.0
  %1649 = vmatprep.subr.mxu0 0.0
  %1650 = vmatpush1.msra.mxu0 %v1617
  %1651 = vmatprep.subr.mxu0 0.0
  %1652 = vmatpush2.msra.mxu0 0.0
  %1653 = vmatprep.subr.mxu0 0.0
  %1654 = vmatpush2.msra.mxu0 0.0
  %1655 = vmatprep.subr.mxu0 0.0
  %1656 = vmatpush2.msra.mxu0 0.0
  %1657 = vmatprep.subr.mxu0 0.0
  %1658 = vmatpush2.msra.mxu0 0.0
  %1659 = vmatprep.subr.mxu0 0.0
  %1660 = vmatpush2.msra.mxu0 0.0
  %1661 = vmatprep.subr.mxu0 0.0
  %1662 = vmatpush2.msra.mxu0 0.0
  %1663 = vmatprep.subr.mxu0 0.0
  %1664 = vmatpush2.msra.mxu0 0.0
  %1665 = vmatprep.subr.mxu0 0.0
  %1666 = vmatpush2.msra.mxu0 0.0
  %1667 = vmatprep.subr.mxu0 0.0
  %1668 = vmatpush2.msra.mxu0 0.0
  %1669 = vmatprep.subr.mxu0 0.0
  %1670 = vmatpush2.msra.mxu0 0.0
  %1671 = vmatprep.subr.mxu0 0.0
  %1672 = vmatpush2.msra.mxu0 0.0
  %1673 = vmatprep.subr.mxu0 0.0
  %1674 = vmatpush2.msra.mxu0 0.0
  %1675 = vmatprep.subr.mxu0 0.0
  %1676 = vmatpush2.msra.mxu0 0.0
  %1677 = vmatprep.subr.mxu0 0.0
  %1678 = vmatpush2.msra.mxu0 0.0
  %1679 = vmatprep.subr.mxu0 0.0
  %1680 = vmatpush2.msra.mxu0 0.0
  %1681 = vmatprep.subr.mxu0 0.0
  %1682 = vmatpush2.msra.mxu0 0.0
  %1683 = vmatprep.mubr.f32.mxu0 0.0
  %1684 = vmatmul.mubr.f32.gmra.mxu0 %v1605
  %v1685 = vpop.f32.mrf.mxu0
  %v1686 = vadd.f32 0.0, %v1685
  %v1687 = vpop.f32.mrf.mxu0
  %1688 = vmatprep.mubr.f32.mxu0 0.0
  %1689 = vmatmul.mubr.f32.gmra.mxu0 %v1608
  %v1690 = vpop.f32.mrf.mxu0
  %v1691 = vadd.f32 0.0, %v1690
  %v1692 = vpop.f32.mrf.mxu0
  %1693 = vmatprep.mubr.f32.mxu0 0.0
  %1694 = vmatmul.mubr.f32.gmra.mxu0 %v1611
  %v1695 = vpop.f32.mrf.mxu0
  %v1696 = vadd.f32 0.0, %v1695
  %v1697 = vpop.f32.mrf.mxu0
  %1698 = vmatprep.mubr.f32.mxu0 0.0
  %1699 = vmatmul.mubr.f32.gmra.mxu0 %v1614
  %v1700 = vpop.f32.mrf.mxu0
  %v1701 = vadd.f32 0.0, %v1700
  %v1702 = vpop.f32.mrf.mxu0
  %1703 = vdwg.mxu0
  %v1704 = vadd.f32 %v1600, %v1686
  %v1705 = vadd.f32 %v1601, %v1691
  %v1706 = vadd.f32 %v1602, %v1696
  %v1707 = vadd.f32 %v1603, %v1701
  %v1708 = vld [vmem:[%s8] sm:$0xff]
  %v1709 = vld [vmem:[%s8 + $0x8] sm:$0xff]
  %v1710 = vld [vmem:[%s8 + $0x10] sm:$0xff]
  %v1711 = vld [vmem:[%s8 + $0x18] sm:$0xff]
  %1713 = vset.pattern.permute.xlu0 0
  %1714 = vperm.xlu0 %1713, %v1708
  %v1715 = vpop.permute.xlu0 %1714
  %1718 = vset.pattern.permute.xlu0 0
  %1719 = vperm.xlu0 %1718, %v1709
  %v1720 = vpop.permute.xlu0 %1719
  %1723 = vset.pattern.permute.xlu0 0
  %1724 = vperm.xlu0 %1723, %v1710
  %v1725 = vpop.permute.xlu0 %1724
  %1728 = vset.pattern.permute.xlu0 0
  %1729 = vperm.xlu0 %1728, %v1711
  %v1730 = vpop.permute.xlu0 %1729
  %v1732 = vadd.f32 %v1704, %v1715
  %v1733 = vadd.f32 %v1705, %v1720
  %v1734 = vadd.f32 %v1706, %v1725
  %v1735 = vadd.f32 %v1707, %v1730
  %vm1736 = vcmp.gt.f32.partialorder %v1732, 0.0
  %vm1737 = vcmp.gt.f32.partialorder %v1733, 0.0
  %vm1738 = vcmp.gt.f32.partialorder %v1734, 0.0
  %vm1739 = vcmp.gt.f32.partialorder %v1735, 0.0
  %v1740 = vmul.f32 %v1732, 0.2
  %v1741 = vmul.f32 %v1733, 0.2
  %v1742 = vmul.f32 %v1734, 0.2
  %v1743 = vmul.f32 %v1735, 0.2
  %v1744 = vsel %vm1736, %v1732, %v1740
  %v1745 = vsel %vm1737, %v1733, %v1741
  %v1746 = vsel %vm1738, %v1734, %v1742
  %v1747 = vsel %vm1739, %v1735, %v1743
  %vm1748 = vcmp.lt.s32.totalorder %v384, 0
  %v1749 = vsub.s32 0, %v384
  %v1750 = vsel %vm1748, %v1749, %v384
  %v1751 = vshrl.u32 %v1750, 2
  %v1752 = vand.u32 %v1750, 3
  %v1753 = vsub.s32 0, %v1752
  %v1754 = vsel %vm1748, %v1753, %v1752
  %vm1755 = vcmp.ne.s32.totalorder %v1754, 0
  %vm1756 = vcmp.lt.s32.totalorder %v1754, 0
  %vm1757 = vmand %vm1756, %vm1755
  %v1758 = vadd.s32 %v1754, 4
  %v1759 = vsel %vm1757, %v1758, %v1754
  %vm1760 = vcmp.ne.s32.totalorder %v1759, 0
  %vm1761 = vmand %vm721, %vm1760
  %v1762 = vsel %vm1761, 1.0, 0.0
  %vm1763 = vcmp.ne.s32.totalorder %v1759, 3
  %vm1764 = vmand %vm738, %vm1763
  %v1765 = vsel %vm1764, 1.0, 0.0
  %vm1766 = vcmask 64512
  %v1768 = vsel %vm1766, %v1744, 0
  %v1771 = vsel %vm1766, %v1745, 0
  %v1774 = vsel %vm1766, %v1746, 0
  %v1777 = vsel %vm1766, %v1747, 0
  %1779 = vmatprep.subr.mxu0 0.0
  %1780 = vmatpush1.msra.mxu0 0.0
  %1781 = vmatprep.subr.mxu0 0.0
  %1782 = vmatpush1.msra.mxu0 0.0
  %1783 = vmatprep.subr.mxu0 0.0
  %1784 = vmatpush1.msra.mxu0 0.0
  %1785 = vmatprep.subr.mxu0 0.0
  %1786 = vmatpush1.msra.mxu0 0.0
  %1787 = vmatprep.subr.mxu0 0.0
  %1788 = vmatpush1.msra.mxu0 0.0
  %1789 = vmatprep.subr.mxu0 0.0
  %1790 = vmatpush1.msra.mxu0 0.0
  %1791 = vmatprep.subr.mxu0 0.0
  %1792 = vmatpush1.msra.mxu0 0.0
  %1793 = vmatprep.subr.mxu0 0.0
  %1794 = vmatpush1.msra.mxu0 0.0
  %1795 = vmatprep.subr.mxu0 0.0
  %1796 = vmatpush1.msra.mxu0 0.0
  %1797 = vmatprep.subr.mxu0 0.0
  %1798 = vmatpush1.msra.mxu0 0.0
  %1799 = vmatprep.subr.mxu0 0.0
  %1800 = vmatpush1.msra.mxu0 0.0
  %1801 = vmatprep.subr.mxu0 0.0
  %1802 = vmatpush1.msra.mxu0 0.0
  %1803 = vmatprep.subr.mxu0 0.0
  %1804 = vmatpush1.msra.mxu0 0.0
  %1805 = vmatprep.subr.mxu0 0.0
  %1806 = vmatpush1.msra.mxu0 0.0
  %1807 = vmatprep.subr.mxu0 0.0
  %1808 = vmatpush1.msra.mxu0 0.0
  %1809 = vmatprep.subr.mxu0 0.0
  %1810 = vmatpush1.msra.mxu0 %v1762
  %1811 = vmatprep.subr.mxu0 0.0
  %1812 = vmatpush2.msra.mxu0 0.0
  %1813 = vmatprep.subr.mxu0 0.0
  %1814 = vmatpush2.msra.mxu0 0.0
  %1815 = vmatprep.subr.mxu0 0.0
  %1816 = vmatpush2.msra.mxu0 0.0
  %1817 = vmatprep.subr.mxu0 0.0
  %1818 = vmatpush2.msra.mxu0 0.0
  %1819 = vmatprep.subr.mxu0 0.0
  %1820 = vmatpush2.msra.mxu0 0.0
  %1821 = vmatprep.subr.mxu0 0.0
  %1822 = vmatpush2.msra.mxu0 0.0
  %1823 = vmatprep.subr.mxu0 0.0
  %1824 = vmatpush2.msra.mxu0 0.0
  %1825 = vmatprep.subr.mxu0 0.0
  %1826 = vmatpush2.msra.mxu0 0.0
  %1827 = vmatprep.subr.mxu0 0.0
  %1828 = vmatpush2.msra.mxu0 0.0
  %1829 = vmatprep.subr.mxu0 0.0
  %1830 = vmatpush2.msra.mxu0 0.0
  %1831 = vmatprep.subr.mxu0 0.0
  %1832 = vmatpush2.msra.mxu0 0.0
  %1833 = vmatprep.subr.mxu0 0.0
  %1834 = vmatpush2.msra.mxu0 0.0
  %1835 = vmatprep.subr.mxu0 0.0
  %1836 = vmatpush2.msra.mxu0 0.0
  %1837 = vmatprep.subr.mxu0 0.0
  %1838 = vmatpush2.msra.mxu0 0.0
  %1839 = vmatprep.subr.mxu0 0.0
  %1840 = vmatpush2.msra.mxu0 0.0
  %1841 = vmatprep.subr.mxu0 0.0
  %1842 = vmatpush2.msra.mxu0 0.0
  %1843 = vmatprep.mubr.f32.mxu0 0.0
  %1844 = vmatmul.mubr.f32.gmra.mxu0 %v1768
  %v1845 = vpop.f32.mrf.mxu0
  %v1846 = vadd.f32 0.0, %v1845
  %v1847 = vpop.f32.mrf.mxu0
  %1848 = vmatprep.mubr.f32.mxu0 0.0
  %1849 = vmatmul.mubr.f32.gmra.mxu0 %v1771
  %v1850 = vpop.f32.mrf.mxu0
  %v1851 = vadd.f32 0.0, %v1850
  %v1852 = vpop.f32.mrf.mxu0
  %1853 = vmatprep.mubr.f32.mxu0 0.0
  %1854 = vmatmul.mubr.f32.gmra.mxu0 %v1774
  %v1855 = vpop.f32.mrf.mxu0
  %v1856 = vadd.f32 0.0, %v1855
  %v1857 = vpop.f32.mrf.mxu0
  %1858 = vmatprep.mubr.f32.mxu0 0.0
  %1859 = vmatmul.mubr.f32.gmra.mxu0 %v1777
  %v1860 = vpop.f32.mrf.mxu0
  %v1861 = vadd.f32 0.0, %v1860
  %v1862 = vpop.f32.mrf.mxu0
  %1863 = vdwg.mxu0
  %1864 = vmatprep.subr.mxu0 0.0
  %1865 = vmatpush1.msra.mxu0 0.0
  %1866 = vmatprep.subr.mxu0 0.0
  %1867 = vmatpush1.msra.mxu0 0.0
  %1868 = vmatprep.subr.mxu0 0.0
  %1869 = vmatpush1.msra.mxu0 0.0
  %1870 = vmatprep.subr.mxu0 0.0
  %1871 = vmatpush1.msra.mxu0 0.0
  %1872 = vmatprep.subr.mxu0 0.0
  %1873 = vmatpush1.msra.mxu0 0.0
  %1874 = vmatprep.subr.mxu0 0.0
  %1875 = vmatpush1.msra.mxu0 0.0
  %1876 = vmatprep.subr.mxu0 0.0
  %1877 = vmatpush1.msra.mxu0 0.0
  %1878 = vmatprep.subr.mxu0 0.0
  %1879 = vmatpush1.msra.mxu0 0.0
  %1880 = vmatprep.subr.mxu0 0.0
  %1881 = vmatpush1.msra.mxu0 0.0
  %1882 = vmatprep.subr.mxu0 0.0
  %1883 = vmatpush1.msra.mxu0 0.0
  %1884 = vmatprep.subr.mxu0 0.0
  %1885 = vmatpush1.msra.mxu0 0.0
  %1886 = vmatprep.subr.mxu0 0.0
  %1887 = vmatpush1.msra.mxu0 0.0
  %1888 = vmatprep.subr.mxu0 0.0
  %1889 = vmatpush1.msra.mxu0 0.0
  %1890 = vmatprep.subr.mxu0 0.0
  %1891 = vmatpush1.msra.mxu0 0.0
  %1892 = vmatprep.subr.mxu0 0.0
  %1893 = vmatpush1.msra.mxu0 0.0
  %1894 = vmatprep.subr.mxu0 0.0
  %1895 = vmatpush1.msra.mxu0 %v1765
  %1896 = vmatprep.subr.mxu0 0.0
  %1897 = vmatpush2.msra.mxu0 0.0
  %1898 = vmatprep.subr.mxu0 0.0
  %1899 = vmatpush2.msra.mxu0 0.0
  %1900 = vmatprep.subr.mxu0 0.0
  %1901 = vmatpush2.msra.mxu0 0.0
  %1902 = vmatprep.subr.mxu0 0.0
  %1903 = vmatpush2.msra.mxu0 0.0
  %1904 = vmatprep.subr.mxu0 0.0
  %1905 = vmatpush2.msra.mxu0 0.0
  %1906 = vmatprep.subr.mxu0 0.0
  %1907 = vmatpush2.msra.mxu0 0.0
  %1908 = vmatprep.subr.mxu0 0.0
  %1909 = vmatpush2.msra.mxu0 0.0
  %1910 = vmatprep.subr.mxu0 0.0
  %1911 = vmatpush2.msra.mxu0 0.0
  %1912 = vmatprep.subr.mxu0 0.0
  %1913 = vmatpush2.msra.mxu0 0.0
  %1914 = vmatprep.subr.mxu0 0.0
  %1915 = vmatpush2.msra.mxu0 0.0
  %1916 = vmatprep.subr.mxu0 0.0
  %1917 = vmatpush2.msra.mxu0 0.0
  %1918 = vmatprep.subr.mxu0 0.0
  %1919 = vmatpush2.msra.mxu0 0.0
  %1920 = vmatprep.subr.mxu0 0.0
  %1921 = vmatpush2.msra.mxu0 0.0
  %1922 = vmatprep.subr.mxu0 0.0
  %1923 = vmatpush2.msra.mxu0 0.0
  %1924 = vmatprep.subr.mxu0 0.0
  %1925 = vmatpush2.msra.mxu0 0.0
  %1926 = vmatprep.subr.mxu0 0.0
  %1927 = vmatpush2.msra.mxu0 0.0
  %1928 = vmatprep.mubr.f32.mxu0 0.0
  %1929 = vmatmul.mubr.f32.gmra.mxu0 %v1768
  %v1930 = vpop.f32.mrf.mxu0
  %v1931 = vadd.f32 0.0, %v1930
  %v1932 = vpop.f32.mrf.mxu0
  %1933 = vmatprep.mubr.f32.mxu0 0.0
  %1934 = vmatmul.mubr.f32.gmra.mxu0 %v1771
  %v1935 = vpop.f32.mrf.mxu0
  %v1936 = vadd.f32 0.0, %v1935
  %v1937 = vpop.f32.mrf.mxu0
  %1938 = vmatprep.mubr.f32.mxu0 0.0
  %1939 = vmatmul.mubr.f32.gmra.mxu0 %v1774
  %v1940 = vpop.f32.mrf.mxu0
  %v1941 = vadd.f32 0.0, %v1940
  %v1942 = vpop.f32.mrf.mxu0
  %1943 = vmatprep.mubr.f32.mxu0 0.0
  %1944 = vmatmul.mubr.f32.gmra.mxu0 %v1777
  %v1945 = vpop.f32.mrf.mxu0
  %v1946 = vadd.f32 0.0, %v1945
  %v1947 = vpop.f32.mrf.mxu0
  %1948 = vdwg.mxu0
  %s1949 = scalar_lea.vmem %s5, 32
  %v1950 = vld [vmem:[%s1949] sm:$0xff]
  %v1951 = vld [vmem:[%s1949 + $0x8] sm:$0xff]
  %v1952 = vld [vmem:[%s1949 + $0x10] sm:$0xff]
  %v1953 = vld [vmem:[%s1949 + $0x18] sm:$0xff]
  %s1954 = scalar_lea.vmem %s6, 32
  %v1955 = vld [vmem:[%s1954] sm:$0xff]
  %v1956 = vld [vmem:[%s1954 + $0x8] sm:$0xff]
  %v1957 = vld [vmem:[%s1954 + $0x10] sm:$0xff]
  %v1958 = vld [vmem:[%s1954 + $0x18] sm:$0xff]
  %1960 = vset.pattern.permute.xlu0 0
  %1961 = vperm.xlu0 %1960, %v1955
  %v1962 = vpop.permute.xlu0 %1961
  %1965 = vset.pattern.permute.xlu0 0
  %1966 = vperm.xlu0 %1965, %v1956
  %v1967 = vpop.permute.xlu0 %1966
  %1970 = vset.pattern.permute.xlu0 0
  %1971 = vperm.xlu0 %1970, %v1957
  %v1972 = vpop.permute.xlu0 %1971
  %1975 = vset.pattern.permute.xlu0 0
  %1976 = vperm.xlu0 %1975, %v1958
  %v1977 = vpop.permute.xlu0 %1976
  %v1980 = vsel %vm960, %v1950, 0
  %v1983 = vsel %vm960, %v1951, 0
  %v1986 = vsel %vm960, %v1952, 0
  %v1989 = vsel %vm960, %v1953, 0
  %1991 = vmatprep.subr.mxu0 0.0
  %1992 = vmatpush1.msra.mxu0 0.0
  %1993 = vmatprep.subr.mxu0 0.0
  %1994 = vmatpush1.msra.mxu0 0.0
  %1995 = vmatprep.subr.mxu0 0.0
  %1996 = vmatpush1.msra.mxu0 0.0
  %1997 = vmatprep.subr.mxu0 0.0
  %1998 = vmatpush1.msra.mxu0 0.0
  %1999 = vmatprep.subr.mxu0 0.0
  %2000 = vmatpush1.msra.mxu0 %v1946
  %2001 = vmatprep.subr.mxu0 0.0
  %2002 = vmatpush1.msra.mxu0 %v1941
  %2003 = vmatprep.subr.mxu0 0.0
  %2004 = vmatpush1.msra.mxu0 %v1936
  %2005 = vmatprep.subr.mxu0 0.0
  %2006 = vmatpush1.msra.mxu0 %v1931
  %2007 = vmatprep.subr.mxu0 0.0
  %2008 = vmatpush1.msra.mxu0 %v1747
  %2009 = vmatprep.subr.mxu0 0.0
  %2010 = vmatpush1.msra.mxu0 %v1746
  %2011 = vmatprep.subr.mxu0 0.0
  %2012 = vmatpush1.msra.mxu0 %v1745
  %2013 = vmatprep.subr.mxu0 0.0
  %2014 = vmatpush1.msra.mxu0 %v1744
  %2015 = vmatprep.subr.mxu0 0.0
  %2016 = vmatpush1.msra.mxu0 %v1861
  %2017 = vmatprep.subr.mxu0 0.0
  %2018 = vmatpush1.msra.mxu0 %v1856
  %2019 = vmatprep.subr.mxu0 0.0
  %2020 = vmatpush1.msra.mxu0 %v1851
  %2021 = vmatprep.subr.mxu0 0.0
  %2022 = vmatpush1.msra.mxu0 %v1846
  %2023 = vmatprep.subr.mxu0 0.0
  %2024 = vmatpush2.msra.mxu0 0.0
  %2025 = vmatprep.subr.mxu0 0.0
  %2026 = vmatpush2.msra.mxu0 0.0
  %2027 = vmatprep.subr.mxu0 0.0
  %2028 = vmatpush2.msra.mxu0 0.0
  %2029 = vmatprep.subr.mxu0 0.0
  %2030 = vmatpush2.msra.mxu0 0.0
  %2031 = vmatprep.subr.mxu0 0.0
  %2032 = vmatpush2.msra.mxu0 0.0
  %2033 = vmatprep.subr.mxu0 0.0
  %2034 = vmatpush2.msra.mxu0 0.0
  %2035 = vmatprep.subr.mxu0 0.0
  %2036 = vmatpush2.msra.mxu0 0.0
  %2037 = vmatprep.subr.mxu0 0.0
  %2038 = vmatpush2.msra.mxu0 0.0
  %2039 = vmatprep.subr.mxu0 0.0
  %2040 = vmatpush2.msra.mxu0 0.0
  %2041 = vmatprep.subr.mxu0 0.0
  %2042 = vmatpush2.msra.mxu0 0.0
  %2043 = vmatprep.subr.mxu0 0.0
  %2044 = vmatpush2.msra.mxu0 0.0
  %2045 = vmatprep.subr.mxu0 0.0
  %2046 = vmatpush2.msra.mxu0 0.0
  %2047 = vmatprep.subr.mxu0 0.0
  %2048 = vmatpush2.msra.mxu0 0.0
  %2049 = vmatprep.subr.mxu0 0.0
  %2050 = vmatpush2.msra.mxu0 0.0
  %2051 = vmatprep.subr.mxu0 0.0
  %2052 = vmatpush2.msra.mxu0 0.0
  %2053 = vmatprep.subr.mxu0 0.0
  %2054 = vmatpush2.msra.mxu0 0.0
  %2055 = vmatprep.mubr.f32.mxu0 0.0
  %2056 = vmatmul.mubr.f32.gmra.mxu0 %v1980
  %v2057 = vpop.f32.mrf.mxu0
  %v2058 = vadd.f32 %v1962, %v2057
  %v2059 = vpop.f32.mrf.mxu0
  %2060 = vmatprep.mubr.f32.mxu0 0.0
  %2061 = vmatmul.mubr.f32.gmra.mxu0 %v1983
  %v2062 = vpop.f32.mrf.mxu0
  %v2063 = vadd.f32 %v1967, %v2062
  %v2064 = vpop.f32.mrf.mxu0
  %2065 = vmatprep.mubr.f32.mxu0 0.0
  %2066 = vmatmul.mubr.f32.gmra.mxu0 %v1986
  %v2067 = vpop.f32.mrf.mxu0
  %v2068 = vadd.f32 %v1972, %v2067
  %v2069 = vpop.f32.mrf.mxu0
  %2070 = vmatprep.mubr.f32.mxu0 0.0
  %2071 = vmatmul.mubr.f32.gmra.mxu0 %v1989
  %v2072 = vpop.f32.mrf.mxu0
  %v2073 = vadd.f32 %v1977, %v2072
  %v2074 = vpop.f32.mrf.mxu0
  %2075 = vdwg.mxu0
  %vm2076 = vcmp.gt.f32.partialorder %v2058, 0.0
  %vm2077 = vcmp.gt.f32.partialorder %v2063, 0.0
  %vm2078 = vcmp.gt.f32.partialorder %v2068, 0.0
  %vm2079 = vcmp.gt.f32.partialorder %v2073, 0.0
  %v2080 = vmul.f32 %v2058, 0.2
  %v2081 = vmul.f32 %v2063, 0.2
  %v2082 = vmul.f32 %v2068, 0.2
  %v2083 = vmul.f32 %v2073, 0.2
  %v2084 = vsel %vm2076, %v2058, %v2080
  %v2085 = vsel %vm2077, %v2063, %v2081
  %v2086 = vsel %vm2078, %v2068, %v2082
  %v2087 = vsel %vm2079, %v2073, %v2083
  %s2088 = scalar_lea.vmem %s7, 128
  %v2089 = vld [vmem:[%s2088] sm:$0xff]
  %v2090 = vld [vmem:[%s2088 + $0x8] sm:$0xff]
  %v2091 = vld [vmem:[%s2088 + $0x10] sm:$0xff]
  %v2092 = vld [vmem:[%s2088 + $0x18] sm:$0xff]
  %v2093 = vld [vmem:[%s2088 + $0x20] sm:$0xff]
  %v2094 = vld [vmem:[%s2088 + $0x28] sm:$0xff]
  %v2095 = vld [vmem:[%s2088 + $0x30] sm:$0xff]
  %v2096 = vld [vmem:[%s2088 + $0x38] sm:$0xff]
  %v2097 = vld [vmem:[%s2088 + $0x40] sm:$0xff]
  %v2098 = vld [vmem:[%s2088 + $0x48] sm:$0xff]
  %v2099 = vld [vmem:[%s2088 + $0x50] sm:$0xff]
  %v2100 = vld [vmem:[%s2088 + $0x58] sm:$0xff]
  %v2101 = vld [vmem:[%s2088 + $0x60] sm:$0xff]
  %v2102 = vld [vmem:[%s2088 + $0x68] sm:$0xff]
  %v2103 = vld [vmem:[%s2088 + $0x70] sm:$0xff]
  %v2104 = vld [vmem:[%s2088 + $0x78] sm:$0xff]
  %v2106 = vsel %vm1086, %v2089, 0
  %v2109 = vsel %vm1086, %v2090, 0
  %v2112 = vsel %vm1086, %v2091, 0
  %v2115 = vsel %vm1086, %v2092, 0
  %v2118 = vsel %vm1086, %v2093, 0
  %v2121 = vsel %vm1086, %v2094, 0
  %v2124 = vsel %vm1086, %v2095, 0
  %v2127 = vsel %vm1086, %v2096, 0
  %v2130 = vsel %vm1086, %v2097, 0
  %v2133 = vsel %vm1086, %v2098, 0
  %v2136 = vsel %vm1086, %v2099, 0
  %v2139 = vsel %vm1086, %v2100, 0
  %v2142 = vsel %vm1086, %v2101, 0
  %v2145 = vsel %vm1086, %v2102, 0
  %v2148 = vsel %vm1086, %v2103, 0
  %v2151 = vsel %vm1086, %v2104, 0
  %2153 = vmatprep.subr.mxu0 0.0
  %2154 = vmatpush1.msra.mxu0 0.0
  %2155 = vmatprep.subr.mxu0 0.0
  %2156 = vmatpush1.msra.mxu0 0.0
  %2157 = vmatprep.subr.mxu0 0.0
  %2158 = vmatpush1.msra.mxu0 0.0
  %2159 = vmatprep.subr.mxu0 0.0
  %2160 = vmatpush1.msra.mxu0 0.0
  %2161 = vmatprep.subr.mxu0 0.0
  %2162 = vmatpush1.msra.mxu0 0.0
  %2163 = vmatprep.subr.mxu0 0.0
  %2164 = vmatpush1.msra.mxu0 0.0
  %2165 = vmatprep.subr.mxu0 0.0
  %2166 = vmatpush1.msra.mxu0 0.0
  %2167 = vmatprep.subr.mxu0 0.0
  %2168 = vmatpush1.msra.mxu0 0.0
  %2169 = vmatprep.subr.mxu0 0.0
  %2170 = vmatpush1.msra.mxu0 0.0
  %2171 = vmatprep.subr.mxu0 0.0
  %2172 = vmatpush1.msra.mxu0 0.0
  %2173 = vmatprep.subr.mxu0 0.0
  %2174 = vmatpush1.msra.mxu0 0.0
  %2175 = vmatprep.subr.mxu0 0.0
  %2176 = vmatpush1.msra.mxu0 0.0
  %2177 = vmatprep.subr.mxu0 0.0
  %2178 = vmatpush1.msra.mxu0 %v2087
  %2179 = vmatprep.subr.mxu0 0.0
  %2180 = vmatpush1.msra.mxu0 %v2086
  %2181 = vmatprep.subr.mxu0 0.0
  %2182 = vmatpush1.msra.mxu0 %v2085
  %2183 = vmatprep.subr.mxu0 0.0
  %2184 = vmatpush1.msra.mxu0 %v2084
  %2185 = vmatprep.subr.mxu0 0.0
  %2186 = vmatpush2.msra.mxu0 0.0
  %2187 = vmatprep.subr.mxu0 0.0
  %2188 = vmatpush2.msra.mxu0 0.0
  %2189 = vmatprep.subr.mxu0 0.0
  %2190 = vmatpush2.msra.mxu0 0.0
  %2191 = vmatprep.subr.mxu0 0.0
  %2192 = vmatpush2.msra.mxu0 0.0
  %2193 = vmatprep.subr.mxu0 0.0
  %2194 = vmatpush2.msra.mxu0 0.0
  %2195 = vmatprep.subr.mxu0 0.0
  %2196 = vmatpush2.msra.mxu0 0.0
  %2197 = vmatprep.subr.mxu0 0.0
  %2198 = vmatpush2.msra.mxu0 0.0
  %2199 = vmatprep.subr.mxu0 0.0
  %2200 = vmatpush2.msra.mxu0 0.0
  %2201 = vmatprep.subr.mxu0 0.0
  %2202 = vmatpush2.msra.mxu0 0.0
  %2203 = vmatprep.subr.mxu0 0.0
  %2204 = vmatpush2.msra.mxu0 0.0
  %2205 = vmatprep.subr.mxu0 0.0
  %2206 = vmatpush2.msra.mxu0 0.0
  %2207 = vmatprep.subr.mxu0 0.0
  %2208 = vmatpush2.msra.mxu0 0.0
  %2209 = vmatprep.subr.mxu0 0.0
  %2210 = vmatpush2.msra.mxu0 0.0
  %2211 = vmatprep.subr.mxu0 0.0
  %2212 = vmatpush2.msra.mxu0 0.0
  %2213 = vmatprep.subr.mxu0 0.0
  %2214 = vmatpush2.msra.mxu0 0.0
  %2215 = vmatprep.subr.mxu0 0.0
  %2216 = vmatpush2.msra.mxu0 0.0
  %2217 = vmatprep.mubr.f32.mxu0 0.0
  %2218 = vmatmul.mubr.f32.gmra.mxu0 %v2106
  %v2219 = vpop.f32.mrf.mxu0
  %v2220 = vadd.f32 0.0, %v2219
  %v2221 = vpop.f32.mrf.mxu0
  %2222 = vmatprep.mubr.f32.mxu0 0.0
  %2223 = vmatmul.mubr.f32.gmra.mxu0 %v2109
  %v2224 = vpop.f32.mrf.mxu0
  %v2225 = vadd.f32 0.0, %v2224
  %v2226 = vpop.f32.mrf.mxu0
  %2227 = vmatprep.mubr.f32.mxu0 0.0
  %2228 = vmatmul.mubr.f32.gmra.mxu0 %v2112
  %v2229 = vpop.f32.mrf.mxu0
  %v2230 = vadd.f32 0.0, %v2229
  %v2231 = vpop.f32.mrf.mxu0
  %2232 = vmatprep.mubr.f32.mxu0 0.0
  %2233 = vmatmul.mubr.f32.gmra.mxu0 %v2115
  %v2234 = vpop.f32.mrf.mxu0
  %v2235 = vadd.f32 0.0, %v2234
  %v2236 = vpop.f32.mrf.mxu0
  %2237 = vmatprep.mubr.f32.mxu0 0.0
  %2238 = vmatmul.mubr.f32.gmra.mxu0 %v2118
  %v2239 = vpop.f32.mrf.mxu0
  %v2240 = vadd.f32 0.0, %v2239
  %v2241 = vpop.f32.mrf.mxu0
  %2242 = vmatprep.mubr.f32.mxu0 0.0
  %2243 = vmatmul.mubr.f32.gmra.mxu0 %v2121
  %v2244 = vpop.f32.mrf.mxu0
  %v2245 = vadd.f32 0.0, %v2244
  %v2246 = vpop.f32.mrf.mxu0
  %2247 = vmatprep.mubr.f32.mxu0 0.0
  %2248 = vmatmul.mubr.f32.gmra.mxu0 %v2124
  %v2249 = vpop.f32.mrf.mxu0
  %v2250 = vadd.f32 0.0, %v2249
  %v2251 = vpop.f32.mrf.mxu0
  %2252 = vmatprep.mubr.f32.mxu0 0.0
  %2253 = vmatmul.mubr.f32.gmra.mxu0 %v2127
  %v2254 = vpop.f32.mrf.mxu0
  %v2255 = vadd.f32 0.0, %v2254
  %v2256 = vpop.f32.mrf.mxu0
  %2257 = vmatprep.mubr.f32.mxu0 0.0
  %2258 = vmatmul.mubr.f32.gmra.mxu0 %v2130
  %v2259 = vpop.f32.mrf.mxu0
  %v2260 = vadd.f32 0.0, %v2259
  %v2261 = vpop.f32.mrf.mxu0
  %2262 = vmatprep.mubr.f32.mxu0 0.0
  %2263 = vmatmul.mubr.f32.gmra.mxu0 %v2133
  %v2264 = vpop.f32.mrf.mxu0
  %v2265 = vadd.f32 0.0, %v2264
  %v2266 = vpop.f32.mrf.mxu0
  %2267 = vmatprep.mubr.f32.mxu0 0.0
  %2268 = vmatmul.mubr.f32.gmra.mxu0 %v2136
  %v2269 = vpop.f32.mrf.mxu0
  %v2270 = vadd.f32 0.0, %v2269
  %v2271 = vpop.f32.mrf.mxu0
  %2272 = vmatprep.mubr.f32.mxu0 0.0
  %2273 = vmatmul.mubr.f32.gmra.mxu0 %v2139
  %v2274 = vpop.f32.mrf.mxu0
  %v2275 = vadd.f32 0.0, %v2274
  %v2276 = vpop.f32.mrf.mxu0
  %2277 = vmatprep.mubr.f32.mxu0 0.0
  %2278 = vmatmul.mubr.f32.gmra.mxu0 %v2142
  %v2279 = vpop.f32.mrf.mxu0
  %v2280 = vadd.f32 0.0, %v2279
  %v2281 = vpop.f32.mrf.mxu0
  %2282 = vmatprep.mubr.f32.mxu0 0.0
  %2283 = vmatmul.mubr.f32.gmra.mxu0 %v2145
  %v2284 = vpop.f32.mrf.mxu0
  %v2285 = vadd.f32 0.0, %v2284
  %v2286 = vpop.f32.mrf.mxu0
  %2287 = vmatprep.mubr.f32.mxu0 0.0
  %2288 = vmatmul.mubr.f32.gmra.mxu0 %v2148
  %v2289 = vpop.f32.mrf.mxu0
  %v2290 = vadd.f32 0.0, %v2289
  %v2291 = vpop.f32.mrf.mxu0
  %2292 = vmatprep.mubr.f32.mxu0 0.0
  %2293 = vmatmul.mubr.f32.gmra.mxu0 %v2151
  %v2294 = vpop.f32.mrf.mxu0
  %v2295 = vadd.f32 0.0, %v2294
  %v2296 = vpop.f32.mrf.mxu0
  %2297 = vdwg.mxu0
  %vm2298 = vcmp.lt.s32.totalorder %v382, 0
  %v2299 = vsub.s32 0, %v382
  %v2300 = vsel %vm2298, %v2299, %v382
  %v2301 = vshrl.u32 %v2300, 2
  %v2302 = vand.u32 %v2300, 3
  %v2303 = vsub.s32 0, %v2302
  %v2304 = vsel %vm2298, %v2303, %v2302
  %vm2305 = vcmp.ne.s32.totalorder %v2304, 0
  %vm2306 = vcmp.lt.s32.totalorder %v2304, 0
  %vm2307 = vmand %vm2306, %vm2305
  %v2308 = vadd.s32 %v2304, 4
  %v2309 = vsel %vm2307, %v2308, %v2304
  %vm2310 = vcmp.ne.s32.totalorder %v2309, 3
  %vm2311 = vmand %vm1281, %vm2310
  %v2312 = vsel %vm2311, 1.0, 0.0
  %vm2313 = vcmp.ne.s32.totalorder %v2309, 0
  %vm2314 = vmand %vm1298, %vm2313
  %v2315 = vsel %vm2314, 1.0, 0.0
  %v2317 = vsel %vm1766, %v2260, 0
  %v2320 = vsel %vm1766, %v2265, 0
  %v2323 = vsel %vm1766, %v2270, 0
  %v2326 = vsel %vm1766, %v2275, 0
  %2328 = vmatprep.subr.mxu0 0.0
  %2329 = vmatpush1.msra.mxu0 0.0
  %2330 = vmatprep.subr.mxu0 0.0
  %2331 = vmatpush1.msra.mxu0 0.0
  %2332 = vmatprep.subr.mxu0 0.0
  %2333 = vmatpush1.msra.mxu0 0.0
  %2334 = vmatprep.subr.mxu0 0.0
  %2335 = vmatpush1.msra.mxu0 0.0
  %2336 = vmatprep.subr.mxu0 0.0
  %2337 = vmatpush1.msra.mxu0 0.0
  %2338 = vmatprep.subr.mxu0 0.0
  %2339 = vmatpush1.msra.mxu0 0.0
  %2340 = vmatprep.subr.mxu0 0.0
  %2341 = vmatpush1.msra.mxu0 0.0
  %2342 = vmatprep.subr.mxu0 0.0
  %2343 = vmatpush1.msra.mxu0 0.0
  %2344 = vmatprep.subr.mxu0 0.0
  %2345 = vmatpush1.msra.mxu0 0.0
  %2346 = vmatprep.subr.mxu0 0.0
  %2347 = vmatpush1.msra.mxu0 0.0
  %2348 = vmatprep.subr.mxu0 0.0
  %2349 = vmatpush1.msra.mxu0 0.0
  %2350 = vmatprep.subr.mxu0 0.0
  %2351 = vmatpush1.msra.mxu0 0.0
  %2352 = vmatprep.subr.mxu0 0.0
  %2353 = vmatpush1.msra.mxu0 0.0
  %2354 = vmatprep.subr.mxu0 0.0
  %2355 = vmatpush1.msra.mxu0 0.0
  %2356 = vmatprep.subr.mxu0 0.0
  %2357 = vmatpush1.msra.mxu0 0.0
  %2358 = vmatprep.subr.mxu0 0.0
  %2359 = vmatpush1.msra.mxu0 %v517
  %2360 = vmatprep.subr.mxu0 0.0
  %2361 = vmatpush2.msra.mxu0 0.0
  %2362 = vmatprep.subr.mxu0 0.0
  %2363 = vmatpush2.msra.mxu0 0.0
  %2364 = vmatprep.subr.mxu0 0.0
  %2365 = vmatpush2.msra.mxu0 0.0
  %2366 = vmatprep.subr.mxu0 0.0
  %2367 = vmatpush2.msra.mxu0 0.0
  %2368 = vmatprep.subr.mxu0 0.0
  %2369 = vmatpush2.msra.mxu0 0.0
  %2370 = vmatprep.subr.mxu0 0.0
  %2371 = vmatpush2.msra.mxu0 0.0
  %2372 = vmatprep.subr.mxu0 0.0
  %2373 = vmatpush2.msra.mxu0 0.0
  %2374 = vmatprep.subr.mxu0 0.0
  %2375 = vmatpush2.msra.mxu0 0.0
  %2376 = vmatprep.subr.mxu0 0.0
  %2377 = vmatpush2.msra.mxu0 0.0
  %2378 = vmatprep.subr.mxu0 0.0
  %2379 = vmatpush2.msra.mxu0 0.0
  %2380 = vmatprep.subr.mxu0 0.0
  %2381 = vmatpush2.msra.mxu0 0.0
  %2382 = vmatprep.subr.mxu0 0.0
  %2383 = vmatpush2.msra.mxu0 0.0
  %2384 = vmatprep.subr.mxu0 0.0
  %2385 = vmatpush2.msra.mxu0 0.0
  %2386 = vmatprep.subr.mxu0 0.0
  %2387 = vmatpush2.msra.mxu0 0.0
  %2388 = vmatprep.subr.mxu0 0.0
  %2389 = vmatpush2.msra.mxu0 0.0
  %2390 = vmatprep.subr.mxu0 0.0
  %2391 = vmatpush2.msra.mxu0 0.0
  %2392 = vmatprep.mubr.f32.mxu0 0.0
  %2393 = vmatmul.mubr.f32.gmra.mxu0 %v2317
  %v2394 = vpop.f32.mrf.mxu0
  %v2395 = vadd.f32 0.0, %v2394
  %v2396 = vpop.f32.mrf.mxu0
  %2397 = vmatprep.mubr.f32.mxu0 0.0
  %2398 = vmatmul.mubr.f32.gmra.mxu0 %v2320
  %v2399 = vpop.f32.mrf.mxu0
  %v2400 = vadd.f32 0.0, %v2399
  %v2401 = vpop.f32.mrf.mxu0
  %2402 = vmatprep.mubr.f32.mxu0 0.0
  %2403 = vmatmul.mubr.f32.gmra.mxu0 %v2323
  %v2404 = vpop.f32.mrf.mxu0
  %v2405 = vadd.f32 0.0, %v2404
  %v2406 = vpop.f32.mrf.mxu0
  %2407 = vmatprep.mubr.f32.mxu0 0.0
  %2408 = vmatmul.mubr.f32.gmra.mxu0 %v2326
  %v2409 = vpop.f32.mrf.mxu0
  %v2410 = vadd.f32 0.0, %v2409
  %v2411 = vpop.f32.mrf.mxu0
  %2412 = vdwg.mxu0
  %v2414 = vsel %vm1766, %v2240, 0
  %v2417 = vsel %vm1766, %v2245, 0
  %v2420 = vsel %vm1766, %v2250, 0
  %v2423 = vsel %vm1766, %v2255, 0
  %2425 = vmatprep.subr.mxu0 0.0
  %2426 = vmatpush1.msra.mxu0 0.0
  %2427 = vmatprep.subr.mxu0 0.0
  %2428 = vmatpush1.msra.mxu0 0.0
  %2429 = vmatprep.subr.mxu0 0.0
  %2430 = vmatpush1.msra.mxu0 0.0
  %2431 = vmatprep.subr.mxu0 0.0
  %2432 = vmatpush1.msra.mxu0 0.0
  %2433 = vmatprep.subr.mxu0 0.0
  %2434 = vmatpush1.msra.mxu0 0.0
  %2435 = vmatprep.subr.mxu0 0.0
  %2436 = vmatpush1.msra.mxu0 0.0
  %2437 = vmatprep.subr.mxu0 0.0
  %2438 = vmatpush1.msra.mxu0 0.0
  %2439 = vmatprep.subr.mxu0 0.0
  %2440 = vmatpush1.msra.mxu0 0.0
  %2441 = vmatprep.subr.mxu0 0.0
  %2442 = vmatpush1.msra.mxu0 0.0
  %2443 = vmatprep.subr.mxu0 0.0
  %2444 = vmatpush1.msra.mxu0 0.0
  %2445 = vmatprep.subr.mxu0 0.0
  %2446 = vmatpush1.msra.mxu0 0.0
  %2447 = vmatprep.subr.mxu0 0.0
  %2448 = vmatpush1.msra.mxu0 0.0
  %2449 = vmatprep.subr.mxu0 0.0
  %2450 = vmatpush1.msra.mxu0 0.0
  %2451 = vmatprep.subr.mxu0 0.0
  %2452 = vmatpush1.msra.mxu0 0.0
  %2453 = vmatprep.subr.mxu0 0.0
  %2454 = vmatpush1.msra.mxu0 0.0
  %2455 = vmatprep.subr.mxu0 0.0
  %2456 = vmatpush1.msra.mxu0 %v387
  %2457 = vmatprep.subr.mxu0 0.0
  %2458 = vmatpush2.msra.mxu0 0.0
  %2459 = vmatprep.subr.mxu0 0.0
  %2460 = vmatpush2.msra.mxu0 0.0
  %2461 = vmatprep.subr.mxu0 0.0
  %2462 = vmatpush2.msra.mxu0 0.0
  %2463 = vmatprep.subr.mxu0 0.0
  %2464 = vmatpush2.msra.mxu0 0.0
  %2465 = vmatprep.subr.mxu0 0.0
  %2466 = vmatpush2.msra.mxu0 0.0
  %2467 = vmatprep.subr.mxu0 0.0
  %2468 = vmatpush2.msra.mxu0 0.0
  %2469 = vmatprep.subr.mxu0 0.0
  %2470 = vmatpush2.msra.mxu0 0.0
  %2471 = vmatprep.subr.mxu0 0.0
  %2472 = vmatpush2.msra.mxu0 0.0
  %2473 = vmatprep.subr.mxu0 0.0
  %2474 = vmatpush2.msra.mxu0 0.0
  %2475 = vmatprep.subr.mxu0 0.0
  %2476 = vmatpush2.msra.mxu0 0.0
  %2477 = vmatprep.subr.mxu0 0.0
  %2478 = vmatpush2.msra.mxu0 0.0
  %2479 = vmatprep.subr.mxu0 0.0
  %2480 = vmatpush2.msra.mxu0 0.0
  %2481 = vmatprep.subr.mxu0 0.0
  %2482 = vmatpush2.msra.mxu0 0.0
  %2483 = vmatprep.subr.mxu0 0.0
  %2484 = vmatpush2.msra.mxu0 0.0
  %2485 = vmatprep.subr.mxu0 0.0
  %2486 = vmatpush2.msra.mxu0 0.0
  %2487 = vmatprep.subr.mxu0 0.0
  %2488 = vmatpush2.msra.mxu0 0.0
  %2489 = vmatprep.mubr.f32.mxu0 0.0
  %2490 = vmatmul.mubr.f32.gmra.mxu0 %v2414
  %v2491 = vpop.f32.mrf.mxu0
  %v2492 = vadd.f32 %v2395, %v2491
  %v2493 = vpop.f32.mrf.mxu0
  %2494 = vmatprep.mubr.f32.mxu0 0.0
  %2495 = vmatmul.mubr.f32.gmra.mxu0 %v2417
  %v2496 = vpop.f32.mrf.mxu0
  %v2497 = vadd.f32 %v2400, %v2496
  %v2498 = vpop.f32.mrf.mxu0
  %2499 = vmatprep.mubr.f32.mxu0 0.0
  %2500 = vmatmul.mubr.f32.gmra.mxu0 %v2420
  %v2501 = vpop.f32.mrf.mxu0
  %v2502 = vadd.f32 %v2405, %v2501
  %v2503 = vpop.f32.mrf.mxu0
  %2504 = vmatprep.mubr.f32.mxu0 0.0
  %2505 = vmatmul.mubr.f32.gmra.mxu0 %v2423
  %v2506 = vpop.f32.mrf.mxu0
  %v2507 = vadd.f32 %v2410, %v2506
  %v2508 = vpop.f32.mrf.mxu0
  %2509 = vdwg.mxu0
  %v2511 = vsel %vm1766, %v2280, 0
  %v2514 = vsel %vm1766, %v2285, 0
  %v2517 = vsel %vm1766, %v2290, 0
  %v2520 = vsel %vm1766, %v2295, 0
  %2522 = vmatprep.subr.mxu0 0.0
  %2523 = vmatpush1.msra.mxu0 0.0
  %2524 = vmatprep.subr.mxu0 0.0
  %2525 = vmatpush1.msra.mxu0 0.0
  %2526 = vmatprep.subr.mxu0 0.0
  %2527 = vmatpush1.msra.mxu0 0.0
  %2528 = vmatprep.subr.mxu0 0.0
  %2529 = vmatpush1.msra.mxu0 0.0
  %2530 = vmatprep.subr.mxu0 0.0
  %2531 = vmatpush1.msra.mxu0 0.0
  %2532 = vmatprep.subr.mxu0 0.0
  %2533 = vmatpush1.msra.mxu0 0.0
  %2534 = vmatprep.subr.mxu0 0.0
  %2535 = vmatpush1.msra.mxu0 0.0
  %2536 = vmatprep.subr.mxu0 0.0
  %2537 = vmatpush1.msra.mxu0 0.0
  %2538 = vmatprep.subr.mxu0 0.0
  %2539 = vmatpush1.msra.mxu0 0.0
  %2540 = vmatprep.subr.mxu0 0.0
  %2541 = vmatpush1.msra.mxu0 0.0
  %2542 = vmatprep.subr.mxu0 0.0
  %2543 = vmatpush1.msra.mxu0 0.0
  %2544 = vmatprep.subr.mxu0 0.0
  %2545 = vmatpush1.msra.mxu0 0.0
  %2546 = vmatprep.subr.mxu0 0.0
  %2547 = vmatpush1.msra.mxu0 0.0
  %2548 = vmatprep.subr.mxu0 0.0
  %2549 = vmatpush1.msra.mxu0 0.0
  %2550 = vmatprep.subr.mxu0 0.0
  %2551 = vmatpush1.msra.mxu0 0.0
  %2552 = vmatprep.subr.mxu0 0.0
  %2553 = vmatpush1.msra.mxu0 %v2312
  %2554 = vmatprep.subr.mxu0 0.0
  %2555 = vmatpush2.msra.mxu0 0.0
  %2556 = vmatprep.subr.mxu0 0.0
  %2557 = vmatpush2.msra.mxu0 0.0
  %2558 = vmatprep.subr.mxu0 0.0
  %2559 = vmatpush2.msra.mxu0 0.0
  %2560 = vmatprep.subr.mxu0 0.0
  %2561 = vmatpush2.msra.mxu0 0.0
  %2562 = vmatprep.subr.mxu0 0.0
  %2563 = vmatpush2.msra.mxu0 0.0
  %2564 = vmatprep.subr.mxu0 0.0
  %2565 = vmatpush2.msra.mxu0 0.0
  %2566 = vmatprep.subr.mxu0 0.0
  %2567 = vmatpush2.msra.mxu0 0.0
  %2568 = vmatprep.subr.mxu0 0.0
  %2569 = vmatpush2.msra.mxu0 0.0
  %2570 = vmatprep.subr.mxu0 0.0
  %2571 = vmatpush2.msra.mxu0 0.0
  %2572 = vmatprep.subr.mxu0 0.0
  %2573 = vmatpush2.msra.mxu0 0.0
  %2574 = vmatprep.subr.mxu0 0.0
  %2575 = vmatpush2.msra.mxu0 0.0
  %2576 = vmatprep.subr.mxu0 0.0
  %2577 = vmatpush2.msra.mxu0 0.0
  %2578 = vmatprep.subr.mxu0 0.0
  %2579 = vmatpush2.msra.mxu0 0.0
  %2580 = vmatprep.subr.mxu0 0.0
  %2581 = vmatpush2.msra.mxu0 0.0
  %2582 = vmatprep.subr.mxu0 0.0
  %2583 = vmatpush2.msra.mxu0 0.0
  %2584 = vmatprep.subr.mxu0 0.0
  %2585 = vmatpush2.msra.mxu0 0.0
  %2586 = vmatprep.mubr.f32.mxu0 0.0
  %2587 = vmatmul.mubr.f32.gmra.mxu0 %v2511
  %v2588 = vpop.f32.mrf.mxu0
  %v2589 = vadd.f32 0.0, %v2588
  %v2590 = vpop.f32.mrf.mxu0
  %2591 = vmatprep.mubr.f32.mxu0 0.0
  %2592 = vmatmul.mubr.f32.gmra.mxu0 %v2514
  %v2593 = vpop.f32.mrf.mxu0
  %v2594 = vadd.f32 0.0, %v2593
  %v2595 = vpop.f32.mrf.mxu0
  %2596 = vmatprep.mubr.f32.mxu0 0.0
  %2597 = vmatmul.mubr.f32.gmra.mxu0 %v2517
  %v2598 = vpop.f32.mrf.mxu0
  %v2599 = vadd.f32 0.0, %v2598
  %v2600 = vpop.f32.mrf.mxu0
  %2601 = vmatprep.mubr.f32.mxu0 0.0
  %2602 = vmatmul.mubr.f32.gmra.mxu0 %v2520
  %v2603 = vpop.f32.mrf.mxu0
  %v2604 = vadd.f32 0.0, %v2603
  %v2605 = vpop.f32.mrf.mxu0
  %2606 = vdwg.mxu0
  %v2607 = vadd.f32 %v2492, %v2589
  %v2608 = vadd.f32 %v2497, %v2594
  %v2609 = vadd.f32 %v2502, %v2599
  %v2610 = vadd.f32 %v2507, %v2604
  %v2612 = vsel %vm1766, %v2220, 0
  %v2615 = vsel %vm1766, %v2225, 0
  %v2618 = vsel %vm1766, %v2230, 0
  %v2621 = vsel %vm1766, %v2235, 0
  %2623 = vmatprep.subr.mxu0 0.0
  %2624 = vmatpush1.msra.mxu0 0.0
  %2625 = vmatprep.subr.mxu0 0.0
  %2626 = vmatpush1.msra.mxu0 0.0
  %2627 = vmatprep.subr.mxu0 0.0
  %2628 = vmatpush1.msra.mxu0 0.0
  %2629 = vmatprep.subr.mxu0 0.0
  %2630 = vmatpush1.msra.mxu0 0.0
  %2631 = vmatprep.subr.mxu0 0.0
  %2632 = vmatpush1.msra.mxu0 0.0
  %2633 = vmatprep.subr.mxu0 0.0
  %2634 = vmatpush1.msra.mxu0 0.0
  %2635 = vmatprep.subr.mxu0 0.0
  %2636 = vmatpush1.msra.mxu0 0.0
  %2637 = vmatprep.subr.mxu0 0.0
  %2638 = vmatpush1.msra.mxu0 0.0
  %2639 = vmatprep.subr.mxu0 0.0
  %2640 = vmatpush1.msra.mxu0 0.0
  %2641 = vmatprep.subr.mxu0 0.0
  %2642 = vmatpush1.msra.mxu0 0.0
  %2643 = vmatprep.subr.mxu0 0.0
  %2644 = vmatpush1.msra.mxu0 0.0
  %2645 = vmatprep.subr.mxu0 0.0
  %2646 = vmatpush1.msra.mxu0 0.0
  %2647 = vmatprep.subr.mxu0 0.0
  %2648 = vmatpush1.msra.mxu0 0.0
  %2649 = vmatprep.subr.mxu0 0.0
  %2650 = vmatpush1.msra.mxu0 0.0
  %2651 = vmatprep.subr.mxu0 0.0
  %2652 = vmatpush1.msra.mxu0 0.0
  %2653 = vmatprep.subr.mxu0 0.0
  %2654 = vmatpush1.msra.mxu0 %v2315
  %2655 = vmatprep.subr.mxu0 0.0
  %2656 = vmatpush2.msra.mxu0 0.0
  %2657 = vmatprep.subr.mxu0 0.0
  %2658 = vmatpush2.msra.mxu0 0.0
  %2659 = vmatprep.subr.mxu0 0.0
  %2660 = vmatpush2.msra.mxu0 0.0
  %2661 = vmatprep.subr.mxu0 0.0
  %2662 = vmatpush2.msra.mxu0 0.0
  %2663 = vmatprep.subr.mxu0 0.0
  %2664 = vmatpush2.msra.mxu0 0.0
  %2665 = vmatprep.subr.mxu0 0.0
  %2666 = vmatpush2.msra.mxu0 0.0
  %2667 = vmatprep.subr.mxu0 0.0
  %2668 = vmatpush2.msra.mxu0 0.0
  %2669 = vmatprep.subr.mxu0 0.0
  %2670 = vmatpush2.msra.mxu0 0.0
  %2671 = vmatprep.subr.mxu0 0.0
  %2672 = vmatpush2.msra.mxu0 0.0
  %2673 = vmatprep.subr.mxu0 0.0
  %2674 = vmatpush2.msra.mxu0 0.0
  %2675 = vmatprep.subr.mxu0 0.0
  %2676 = vmatpush2.msra.mxu0 0.0
  %2677 = vmatprep.subr.mxu0 0.0
  %2678 = vmatpush2.msra.mxu0 0.0
  %2679 = vmatprep.subr.mxu0 0.0
  %2680 = vmatpush2.msra.mxu0 0.0
  %2681 = vmatprep.subr.mxu0 0.0
  %2682 = vmatpush2.msra.mxu0 0.0
  %2683 = vmatprep.subr.mxu0 0.0
  %2684 = vmatpush2.msra.mxu0 0.0
  %2685 = vmatprep.subr.mxu0 0.0
  %2686 = vmatpush2.msra.mxu0 0.0
  %2687 = vmatprep.mubr.f32.mxu0 0.0
  %2688 = vmatmul.mubr.f32.gmra.mxu0 %v2612
  %v2689 = vpop.f32.mrf.mxu0
  %v2690 = vadd.f32 0.0, %v2689
  %v2691 = vpop.f32.mrf.mxu0
  %2692 = vmatprep.mubr.f32.mxu0 0.0
  %2693 = vmatmul.mubr.f32.gmra.mxu0 %v2615
  %v2694 = vpop.f32.mrf.mxu0
  %v2695 = vadd.f32 0.0, %v2694
  %v2696 = vpop.f32.mrf.mxu0
  %2697 = vmatprep.mubr.f32.mxu0 0.0
  %2698 = vmatmul.mubr.f32.gmra.mxu0 %v2618
  %v2699 = vpop.f32.mrf.mxu0
  %v2700 = vadd.f32 0.0, %v2699
  %v2701 = vpop.f32.mrf.mxu0
  %2702 = vmatprep.mubr.f32.mxu0 0.0
  %2703 = vmatmul.mubr.f32.gmra.mxu0 %v2621
  %v2704 = vpop.f32.mrf.mxu0
  %v2705 = vadd.f32 0.0, %v2704
  %v2706 = vpop.f32.mrf.mxu0
  %2707 = vdwg.mxu0
  %v2708 = vadd.f32 %v2607, %v2690
  %v2709 = vadd.f32 %v2608, %v2695
  %v2710 = vadd.f32 %v2609, %v2700
  %v2711 = vadd.f32 %v2610, %v2705
  %s2712 = scalar_lea.vmem %s8, 32
  %v2713 = vld [vmem:[%s2712] sm:$0xff]
  %v2714 = vld [vmem:[%s2712 + $0x8] sm:$0xff]
  %v2715 = vld [vmem:[%s2712 + $0x10] sm:$0xff]
  %v2716 = vld [vmem:[%s2712 + $0x18] sm:$0xff]
  %2718 = vset.pattern.permute.xlu0 0
  %2719 = vperm.xlu0 %2718, %v2713
  %v2720 = vpop.permute.xlu0 %2719
  %2723 = vset.pattern.permute.xlu0 0
  %2724 = vperm.xlu0 %2723, %v2714
  %v2725 = vpop.permute.xlu0 %2724
  %2728 = vset.pattern.permute.xlu0 0
  %2729 = vperm.xlu0 %2728, %v2715
  %v2730 = vpop.permute.xlu0 %2729
  %2733 = vset.pattern.permute.xlu0 0
  %2734 = vperm.xlu0 %2733, %v2716
  %v2735 = vpop.permute.xlu0 %2734
  %v2737 = vadd.f32 %v2708, %v2720
  %v2738 = vadd.f32 %v2709, %v2725
  %v2739 = vadd.f32 %v2710, %v2730
  %v2740 = vadd.f32 %v2711, %v2735
  %vm2741 = vcmp.gt.f32.partialorder %v2737, 0.0
  %vm2742 = vcmp.gt.f32.partialorder %v2738, 0.0
  %vm2743 = vcmp.gt.f32.partialorder %v2739, 0.0
  %vm2744 = vcmp.gt.f32.partialorder %v2740, 0.0
  %v2745 = vmul.f32 %v2737, 0.2
  %v2746 = vmul.f32 %v2738, 0.2
  %v2747 = vmul.f32 %v2739, 0.2
  %v2748 = vmul.f32 %v2740, 0.2
  %v2749 = vsel %vm2741, %v2737, %v2745
  %v2750 = vsel %vm2742, %v2738, %v2746
  %v2751 = vsel %vm2743, %v2739, %v2747
  %v2752 = vsel %vm2744, %v2740, %v2748
  %v2753 = vadd.s32 %v382, 8
  %v2754 = vadd.s32 %v2753, 1
  %vm2755 = vcmp.eq.s32.totalorder %v384, %v2754
  %vm2756 = vcmp.lt.s32.totalorder %v384, 0
  %v2757 = vsub.s32 0, %v384
  %v2758 = vsel %vm2756, %v2757, %v384
  %v2759 = vshrl.u32 %v2758, 3
  %v2760 = vand.u32 %v2758, 7
  %v2761 = vsub.s32 0, %v2760
  %v2762 = vsel %vm2756, %v2761, %v2760
  %vm2763 = vcmp.ne.s32.totalorder %v2762, 0
  %vm2764 = vcmp.lt.s32.totalorder %v2762, 0
  %vm2765 = vmand %vm2764, %vm2763
  %v2766 = vadd.s32 %v2762, 8
  %v2767 = vsel %vm2765, %v2766, %v2762
  %vm2768 = vcmp.ne.s32.totalorder %v2767, 0
  %vm2769 = vmand %vm721, %vm2768
  %vm2770 = vmand %vm2755, %vm2768
  %v2771 = vsel %vm2769, 1.0, 0.0
  %v2772 = vsel %vm2770, 1.0, 0.0
  %v2773 = vsub.s32 %v2753, 1
  %vm2774 = vcmp.eq.s32.totalorder %v384, %v2773
  %vm2775 = vcmp.ne.s32.totalorder %v2767, 7
  %vm2776 = vmand %vm738, %vm2775
  %vm2777 = vmand %vm2774, %vm2775
  %v2778 = vsel %vm2776, 1.0, 0.0
  %v2779 = vsel %vm2777, 1.0, 0.0
  %vm2780 = vcmask 130048
  %v2782 = vsel %vm2780, %v2749, 0
  %v2785 = vsel %vm2780, %v2750, 0
  %v2788 = vsel %vm2780, %v2751, 0
  %v2791 = vsel %vm2780, %v2752, 0
  %2793 = vmatprep.subr.mxu0 0.0
  %2794 = vmatpush1.msra.mxu0 0.0
  %2795 = vmatprep.subr.mxu0 0.0
  %2796 = vmatpush1.msra.mxu0 0.0
  %2797 = vmatprep.subr.mxu0 0.0
  %2798 = vmatpush1.msra.mxu0 0.0
  %2799 = vmatprep.subr.mxu0 0.0
  %2800 = vmatpush1.msra.mxu0 0.0
  %2801 = vmatprep.subr.mxu0 0.0
  %2802 = vmatpush1.msra.mxu0 0.0
  %2803 = vmatprep.subr.mxu0 0.0
  %2804 = vmatpush1.msra.mxu0 0.0
  %2805 = vmatprep.subr.mxu0 0.0
  %2806 = vmatpush1.msra.mxu0 0.0
  %2807 = vmatprep.subr.mxu0 0.0
  %2808 = vmatpush1.msra.mxu0 0.0
  %2809 = vmatprep.subr.mxu0 0.0
  %2810 = vmatpush1.msra.mxu0 0.0
  %2811 = vmatprep.subr.mxu0 0.0
  %2812 = vmatpush1.msra.mxu0 0.0
  %2813 = vmatprep.subr.mxu0 0.0
  %2814 = vmatpush1.msra.mxu0 0.0
  %2815 = vmatprep.subr.mxu0 0.0
  %2816 = vmatpush1.msra.mxu0 0.0
  %2817 = vmatprep.subr.mxu0 0.0
  %2818 = vmatpush1.msra.mxu0 0.0
  %2819 = vmatprep.subr.mxu0 0.0
  %2820 = vmatpush1.msra.mxu0 0.0
  %2821 = vmatprep.subr.mxu0 0.0
  %2822 = vmatpush1.msra.mxu0 %v2772
  %2823 = vmatprep.subr.mxu0 0.0
  %2824 = vmatpush1.msra.mxu0 %v2771
  %2825 = vmatprep.subr.mxu0 0.0
  %2826 = vmatpush2.msra.mxu0 0.0
  %2827 = vmatprep.subr.mxu0 0.0
  %2828 = vmatpush2.msra.mxu0 0.0
  %2829 = vmatprep.subr.mxu0 0.0
  %2830 = vmatpush2.msra.mxu0 0.0
  %2831 = vmatprep.subr.mxu0 0.0
  %2832 = vmatpush2.msra.mxu0 0.0
  %2833 = vmatprep.subr.mxu0 0.0
  %2834 = vmatpush2.msra.mxu0 0.0
  %2835 = vmatprep.subr.mxu0 0.0
  %2836 = vmatpush2.msra.mxu0 0.0
  %2837 = vmatprep.subr.mxu0 0.0
  %2838 = vmatpush2.msra.mxu0 0.0
  %2839 = vmatprep.subr.mxu0 0.0
  %2840 = vmatpush2.msra.mxu0 0.0
  %2841 = vmatprep.subr.mxu0 0.0
  %2842 = vmatpush2.msra.mxu0 0.0
  %2843 = vmatprep.subr.mxu0 0.0
  %2844 = vmatpush2.msra.mxu0 0.0
  %2845 = vmatprep.subr.mxu0 0.0
  %2846 = vmatpush2.msra.mxu0 0.0
  %2847 = vmatprep.subr.mxu0 0.0
  %2848 = vmatpush2.msra.mxu0 0.0
  %2849 = vmatprep.subr.mxu0 0.0
  %2850 = vmatpush2.msra.mxu0 0.0
  %2851 = vmatprep.subr.mxu0 0.0
  %2852 = vmatpush2.msra.mxu0 0.0
  %2853 = vmatprep.subr.mxu0 0.0
  %2854 = vmatpush2.msra.mxu0 0.0
  %2855 = vmatprep.subr.mxu0 0.0
  %2856 = vmatpush2.msra.mxu0 0.0
  %2857 = vmatprep.mubr.f32.mxu0 0.0
  %2858 = vmatmul.mubr.f32.gmra.mxu0 %v2782
  %v2859 = vpop.f32.mrf.mxu0
  %v2860 = vadd.f32 0.0, %v2859
  %v2861 = vpop.f32.mrf.mxu0
  %2862 = vmatprep.mubr.f32.mxu0 0.0
  %2863 = vmatmul.mubr.f32.gmra.mxu0 %v2785
  %v2864 = vpop.f32.mrf.mxu0
  %v2865 = vadd.f32 0.0, %v2864
  %v2866 = vpop.f32.mrf.mxu0
  %2867 = vmatprep.mubr.f32.mxu0 0.0
  %2868 = vmatmul.mubr.f32.gmra.mxu0 %v2788
  %v2869 = vpop.f32.mrf.mxu0
  %v2870 = vadd.f32 0.0, %v2869
  %v2871 = vpop.f32.mrf.mxu0
  %2872 = vmatprep.mubr.f32.mxu0 0.0
  %2873 = vmatmul.mubr.f32.gmra.mxu0 %v2791
  %v2874 = vpop.f32.mrf.mxu0
  %v2875 = vadd.f32 0.0, %v2874
  %v2876 = vpop.f32.mrf.mxu0
  %2877 = vdwg.mxu0
  %2878 = vmatprep.subr.mxu0 0.0
  %2879 = vmatpush1.msra.mxu0 0.0
  %2880 = vmatprep.subr.mxu0 0.0
  %2881 = vmatpush1.msra.mxu0 0.0
  %2882 = vmatprep.subr.mxu0 0.0
  %2883 = vmatpush1.msra.mxu0 0.0
  %2884 = vmatprep.subr.mxu0 0.0
  %2885 = vmatpush1.msra.mxu0 0.0
  %2886 = vmatprep.subr.mxu0 0.0
  %2887 = vmatpush1.msra.mxu0 0.0
  %2888 = vmatprep.subr.mxu0 0.0
  %2889 = vmatpush1.msra.mxu0 0.0
  %2890 = vmatprep.subr.mxu0 0.0
  %2891 = vmatpush1.msra.mxu0 0.0
  %2892 = vmatprep.subr.mxu0 0.0
  %2893 = vmatpush1.msra.mxu0 0.0
  %2894 = vmatprep.subr.mxu0 0.0
  %2895 = vmatpush1.msra.mxu0 0.0
  %2896 = vmatprep.subr.mxu0 0.0
  %2897 = vmatpush1.msra.mxu0 0.0
  %2898 = vmatprep.subr.mxu0 0.0
  %2899 = vmatpush1.msra.mxu0 0.0
  %2900 = vmatprep.subr.mxu0 0.0
  %2901 = vmatpush1.msra.mxu0 0.0
  %2902 = vmatprep.subr.mxu0 0.0
  %2903 = vmatpush1.msra.mxu0 0.0
  %2904 = vmatprep.subr.mxu0 0.0
  %2905 = vmatpush1.msra.mxu0 0.0
  %2906 = vmatprep.subr.mxu0 0.0
  %2907 = vmatpush1.msra.mxu0 %v2779
  %2908 = vmatprep.subr.mxu0 0.0
  %2909 = vmatpush1.msra.mxu0 %v2778
  %2910 = vmatprep.subr.mxu0 0.0
  %2911 = vmatpush2.msra.mxu0 0.0
  %2912 = vmatprep.subr.mxu0 0.0
  %2913 = vmatpush2.msra.mxu0 0.0
  %2914 = vmatprep.subr.mxu0 0.0
  %2915 = vmatpush2.msra.mxu0 0.0
  %2916 = vmatprep.subr.mxu0 0.0
  %2917 = vmatpush2.msra.mxu0 0.0
  %2918 = vmatprep.subr.mxu0 0.0
  %2919 = vmatpush2.msra.mxu0 0.0
  %2920 = vmatprep.subr.mxu0 0.0
  %2921 = vmatpush2.msra.mxu0 0.0
  %2922 = vmatprep.subr.mxu0 0.0
  %2923 = vmatpush2.msra.mxu0 0.0
  %2924 = vmatprep.subr.mxu0 0.0
  %2925 = vmatpush2.msra.mxu0 0.0
  %2926 = vmatprep.subr.mxu0 0.0
  %2927 = vmatpush2.msra.mxu0 0.0
  %2928 = vmatprep.subr.mxu0 0.0
  %2929 = vmatpush2.msra.mxu0 0.0
  %2930 = vmatprep.subr.mxu0 0.0
  %2931 = vmatpush2.msra.mxu0 0.0
  %2932 = vmatprep.subr.mxu0 0.0
  %2933 = vmatpush2.msra.mxu0 0.0
  %2934 = vmatprep.subr.mxu0 0.0
  %2935 = vmatpush2.msra.mxu0 0.0
  %2936 = vmatprep.subr.mxu0 0.0
  %2937 = vmatpush2.msra.mxu0 0.0
  %2938 = vmatprep.subr.mxu0 0.0
  %2939 = vmatpush2.msra.mxu0 0.0
  %2940 = vmatprep.subr.mxu0 0.0
  %2941 = vmatpush2.msra.mxu0 0.0
  %2942 = vmatprep.mubr.f32.mxu0 0.0
  %2943 = vmatmul.mubr.f32.gmra.mxu0 %v2782
  %v2944 = vpop.f32.mrf.mxu0
  %v2945 = vadd.f32 0.0, %v2944
  %v2946 = vpop.f32.mrf.mxu0
  %2947 = vmatprep.mubr.f32.mxu0 0.0
  %2948 = vmatmul.mubr.f32.gmra.mxu0 %v2785
  %v2949 = vpop.f32.mrf.mxu0
  %v2950 = vadd.f32 0.0, %v2949
  %v2951 = vpop.f32.mrf.mxu0
  %2952 = vmatprep.mubr.f32.mxu0 0.0
  %2953 = vmatmul.mubr.f32.gmra.mxu0 %v2788
  %v2954 = vpop.f32.mrf.mxu0
  %v2955 = vadd.f32 0.0, %v2954
  %v2956 = vpop.f32.mrf.mxu0
  %2957 = vmatprep.mubr.f32.mxu0 0.0
  %2958 = vmatmul.mubr.f32.gmra.mxu0 %v2791
  %v2959 = vpop.f32.mrf.mxu0
  %v2960 = vadd.f32 0.0, %v2959
  %v2961 = vpop.f32.mrf.mxu0
  %2962 = vdwg.mxu0
  %s2963 = scalar_lea.vmem %s5, 64
  %v2964 = vld [vmem:[%s2963] sm:$0xff]
  %v2965 = vld [vmem:[%s2963 + $0x8] sm:$0xff]
  %v2966 = vld [vmem:[%s2963 + $0x10] sm:$0xff]
  %v2967 = vld [vmem:[%s2963 + $0x18] sm:$0xff]
  %s2968 = scalar_lea.vmem %s6, 64
  %v2969 = vld [vmem:[%s2968] sm:$0xff]
  %v2970 = vld [vmem:[%s2968 + $0x8] sm:$0xff]
  %v2971 = vld [vmem:[%s2968 + $0x10] sm:$0xff]
  %v2972 = vld [vmem:[%s2968 + $0x18] sm:$0xff]
  %2974 = vset.pattern.permute.xlu0 0
  %2975 = vperm.xlu0 %2974, %v2969
  %v2976 = vpop.permute.xlu0 %2975
  %2979 = vset.pattern.permute.xlu0 0
  %2980 = vperm.xlu0 %2979, %v2970
  %v2981 = vpop.permute.xlu0 %2980
  %2984 = vset.pattern.permute.xlu0 0
  %2985 = vperm.xlu0 %2984, %v2971
  %v2986 = vpop.permute.xlu0 %2985
  %2989 = vset.pattern.permute.xlu0 0
  %2990 = vperm.xlu0 %2989, %v2972
  %v2991 = vpop.permute.xlu0 %2990
  %v2994 = vsel %vm960, %v2964, 0
  %v2997 = vsel %vm960, %v2965, 0
  %v3000 = vsel %vm960, %v2966, 0
  %v3003 = vsel %vm960, %v2967, 0
  %3005 = vmatprep.subr.mxu0 0.0
  %3006 = vmatpush1.msra.mxu0 0.0
  %3007 = vmatprep.subr.mxu0 0.0
  %3008 = vmatpush1.msra.mxu0 0.0
  %3009 = vmatprep.subr.mxu0 0.0
  %3010 = vmatpush1.msra.mxu0 0.0
  %3011 = vmatprep.subr.mxu0 0.0
  %3012 = vmatpush1.msra.mxu0 0.0
  %3013 = vmatprep.subr.mxu0 0.0
  %3014 = vmatpush1.msra.mxu0 %v2960
  %3015 = vmatprep.subr.mxu0 0.0
  %3016 = vmatpush1.msra.mxu0 %v2955
  %3017 = vmatprep.subr.mxu0 0.0
  %3018 = vmatpush1.msra.mxu0 %v2950
  %3019 = vmatprep.subr.mxu0 0.0
  %3020 = vmatpush1.msra.mxu0 %v2945
  %3021 = vmatprep.subr.mxu0 0.0
  %3022 = vmatpush1.msra.mxu0 %v2752
  %3023 = vmatprep.subr.mxu0 0.0
  %3024 = vmatpush1.msra.mxu0 %v2751
  %3025 = vmatprep.subr.mxu0 0.0
  %3026 = vmatpush1.msra.mxu0 %v2750
  %3027 = vmatprep.subr.mxu0 0.0
  %3028 = vmatpush1.msra.mxu0 %v2749
  %3029 = vmatprep.subr.mxu0 0.0
  %3030 = vmatpush1.msra.mxu0 %v2875
  %3031 = vmatprep.subr.mxu0 0.0
  %3032 = vmatpush1.msra.mxu0 %v2870
  %3033 = vmatprep.subr.mxu0 0.0
  %3034 = vmatpush1.msra.mxu0 %v2865
  %3035 = vmatprep.subr.mxu0 0.0
  %3036 = vmatpush1.msra.mxu0 %v2860
  %3037 = vmatprep.subr.mxu0 0.0
  %3038 = vmatpush2.msra.mxu0 0.0
  %3039 = vmatprep.subr.mxu0 0.0
  %3040 = vmatpush2.msra.mxu0 0.0
  %3041 = vmatprep.subr.mxu0 0.0
  %3042 = vmatpush2.msra.mxu0 0.0
  %3043 = vmatprep.subr.mxu0 0.0
  %3044 = vmatpush2.msra.mxu0 0.0
  %3045 = vmatprep.subr.mxu0 0.0
  %3046 = vmatpush2.msra.mxu0 0.0
  %3047 = vmatprep.subr.mxu0 0.0
  %3048 = vmatpush2.msra.mxu0 0.0
  %3049 = vmatprep.subr.mxu0 0.0
  %3050 = vmatpush2.msra.mxu0 0.0
  %3051 = vmatprep.subr.mxu0 0.0
  %3052 = vmatpush2.msra.mxu0 0.0
  %3053 = vmatprep.subr.mxu0 0.0
  %3054 = vmatpush2.msra.mxu0 0.0
  %3055 = vmatprep.subr.mxu0 0.0
  %3056 = vmatpush2.msra.mxu0 0.0
  %3057 = vmatprep.subr.mxu0 0.0
  %3058 = vmatpush2.msra.mxu0 0.0
  %3059 = vmatprep.subr.mxu0 0.0
  %3060 = vmatpush2.msra.mxu0 0.0
  %3061 = vmatprep.subr.mxu0 0.0
  %3062 = vmatpush2.msra.mxu0 0.0
  %3063 = vmatprep.subr.mxu0 0.0
  %3064 = vmatpush2.msra.mxu0 0.0
  %3065 = vmatprep.subr.mxu0 0.0
  %3066 = vmatpush2.msra.mxu0 0.0
  %3067 = vmatprep.subr.mxu0 0.0
  %3068 = vmatpush2.msra.mxu0 0.0
  %3069 = vmatprep.mubr.f32.mxu0 0.0
  %3070 = vmatmul.mubr.f32.gmra.mxu0 %v2994
  %v3071 = vpop.f32.mrf.mxu0
  %v3072 = vadd.f32 %v2976, %v3071
  %v3073 = vpop.f32.mrf.mxu0
  %3074 = vmatprep.mubr.f32.mxu0 0.0
  %3075 = vmatmul.mubr.f32.gmra.mxu0 %v2997
  %v3076 = vpop.f32.mrf.mxu0
  %v3077 = vadd.f32 %v2981, %v3076
  %v3078 = vpop.f32.mrf.mxu0
  %3079 = vmatprep.mubr.f32.mxu0 0.0
  %3080 = vmatmul.mubr.f32.gmra.mxu0 %v3000
  %v3081 = vpop.f32.mrf.mxu0
  %v3082 = vadd.f32 %v2986, %v3081
  %v3083 = vpop.f32.mrf.mxu0
  %3084 = vmatprep.mubr.f32.mxu0 0.0
  %3085 = vmatmul.mubr.f32.gmra.mxu0 %v3003
  %v3086 = vpop.f32.mrf.mxu0
  %v3087 = vadd.f32 %v2991, %v3086
  %v3088 = vpop.f32.mrf.mxu0
  %3089 = vdwg.mxu0
  %vm3090 = vcmp.gt.f32.partialorder %v3072, 0.0
  %vm3091 = vcmp.gt.f32.partialorder %v3077, 0.0
  %vm3092 = vcmp.gt.f32.partialorder %v3082, 0.0
  %vm3093 = vcmp.gt.f32.partialorder %v3087, 0.0
  %v3094 = vmul.f32 %v3072, 0.2
  %v3095 = vmul.f32 %v3077, 0.2
  %v3096 = vmul.f32 %v3082, 0.2
  %v3097 = vmul.f32 %v3087, 0.2
  %v3098 = vsel %vm3090, %v3072, %v3094
  %v3099 = vsel %vm3091, %v3077, %v3095
  %v3100 = vsel %vm3092, %v3082, %v3096
  %v3101 = vsel %vm3093, %v3087, %v3097
  %s3102 = scalar_lea.vmem %s7, 256
  %v3103 = vld [vmem:[%s3102] sm:$0xff]
  %v3104 = vld [vmem:[%s3102 + $0x8] sm:$0xff]
  %v3105 = vld [vmem:[%s3102 + $0x10] sm:$0xff]
  %v3106 = vld [vmem:[%s3102 + $0x18] sm:$0xff]
  %v3107 = vld [vmem:[%s3102 + $0x20] sm:$0xff]
  %v3108 = vld [vmem:[%s3102 + $0x28] sm:$0xff]
  %v3109 = vld [vmem:[%s3102 + $0x30] sm:$0xff]
  %v3110 = vld [vmem:[%s3102 + $0x38] sm:$0xff]
  %v3111 = vld [vmem:[%s3102 + $0x40] sm:$0xff]
  %v3112 = vld [vmem:[%s3102 + $0x48] sm:$0xff]
  %v3113 = vld [vmem:[%s3102 + $0x50] sm:$0xff]
  %v3114 = vld [vmem:[%s3102 + $0x58] sm:$0xff]
  %v3115 = vld [vmem:[%s3102 + $0x60] sm:$0xff]
  %v3116 = vld [vmem:[%s3102 + $0x68] sm:$0xff]
  %v3117 = vld [vmem:[%s3102 + $0x70] sm:$0xff]
  %v3118 = vld [vmem:[%s3102 + $0x78] sm:$0xff]
  %v3120 = vsel %vm1086, %v3103, 0
  %v3123 = vsel %vm1086, %v3104, 0
  %v3126 = vsel %vm1086, %v3105, 0
  %v3129 = vsel %vm1086, %v3106, 0
  %v3132 = vsel %vm1086, %v3107, 0
  %v3135 = vsel %vm1086, %v3108, 0
  %v3138 = vsel %vm1086, %v3109, 0
  %v3141 = vsel %vm1086, %v3110, 0
  %v3144 = vsel %vm1086, %v3111, 0
  %v3147 = vsel %vm1086, %v3112, 0
  %v3150 = vsel %vm1086, %v3113, 0
  %v3153 = vsel %vm1086, %v3114, 0
  %v3156 = vsel %vm1086, %v3115, 0
  %v3159 = vsel %vm1086, %v3116, 0
  %v3162 = vsel %vm1086, %v3117, 0
  %v3165 = vsel %vm1086, %v3118, 0
  %3167 = vmatprep.subr.mxu0 0.0
  %3168 = vmatpush1.msra.mxu0 0.0
  %3169 = vmatprep.subr.mxu0 0.0
  %3170 = vmatpush1.msra.mxu0 0.0
  %3171 = vmatprep.subr.mxu0 0.0
  %3172 = vmatpush1.msra.mxu0 0.0
  %3173 = vmatprep.subr.mxu0 0.0
  %3174 = vmatpush1.msra.mxu0 0.0
  %3175 = vmatprep.subr.mxu0 0.0
  %3176 = vmatpush1.msra.mxu0 0.0
  %3177 = vmatprep.subr.mxu0 0.0
  %3178 = vmatpush1.msra.mxu0 0.0
  %3179 = vmatprep.subr.mxu0 0.0
  %3180 = vmatpush1.msra.mxu0 0.0
  %3181 = vmatprep.subr.mxu0 0.0
  %3182 = vmatpush1.msra.mxu0 0.0
  %3183 = vmatprep.subr.mxu0 0.0
  %3184 = vmatpush1.msra.mxu0 0.0
  %3185 = vmatprep.subr.mxu0 0.0
  %3186 = vmatpush1.msra.mxu0 0.0
  %3187 = vmatprep.subr.mxu0 0.0
  %3188 = vmatpush1.msra.mxu0 0.0
  %3189 = vmatprep.subr.mxu0 0.0
  %3190 = vmatpush1.msra.mxu0 0.0
  %3191 = vmatprep.subr.mxu0 0.0
  %3192 = vmatpush1.msra.mxu0 %v3101
  %3193 = vmatprep.subr.mxu0 0.0
  %3194 = vmatpush1.msra.mxu0 %v3100
  %3195 = vmatprep.subr.mxu0 0.0
  %3196 = vmatpush1.msra.mxu0 %v3099
  %3197 = vmatprep.subr.mxu0 0.0
  %3198 = vmatpush1.msra.mxu0 %v3098
  %3199 = vmatprep.subr.mxu0 0.0
  %3200 = vmatpush2.msra.mxu0 0.0
  %3201 = vmatprep.subr.mxu0 0.0
  %3202 = vmatpush2.msra.mxu0 0.0
  %3203 = vmatprep.subr.mxu0 0.0
  %3204 = vmatpush2.msra.mxu0 0.0
  %3205 = vmatprep.subr.mxu0 0.0
  %3206 = vmatpush2.msra.mxu0 0.0
  %3207 = vmatprep.subr.mxu0 0.0
  %3208 = vmatpush2.msra.mxu0 0.0
  %3209 = vmatprep.subr.mxu0 0.0
  %3210 = vmatpush2.msra.mxu0 0.0
  %3211 = vmatprep.subr.mxu0 0.0
  %3212 = vmatpush2.msra.mxu0 0.0
  %3213 = vmatprep.subr.mxu0 0.0
  %3214 = vmatpush2.msra.mxu0 0.0
  %3215 = vmatprep.subr.mxu0 0.0
  %3216 = vmatpush2.msra.mxu0 0.0
  %3217 = vmatprep.subr.mxu0 0.0
  %3218 = vmatpush2.msra.mxu0 0.0
  %3219 = vmatprep.subr.mxu0 0.0
  %3220 = vmatpush2.msra.mxu0 0.0
  %3221 = vmatprep.subr.mxu0 0.0
  %3222 = vmatpush2.msra.mxu0 0.0
  %3223 = vmatprep.subr.mxu0 0.0
  %3224 = vmatpush2.msra.mxu0 0.0
  %3225 = vmatprep.subr.mxu0 0.0
  %3226 = vmatpush2.msra.mxu0 0.0
  %3227 = vmatprep.subr.mxu0 0.0
  %3228 = vmatpush2.msra.mxu0 0.0
  %3229 = vmatprep.subr.mxu0 0.0
  %3230 = vmatpush2.msra.mxu0 0.0
  %3231 = vmatprep.mubr.f32.mxu0 0.0
  %3232 = vmatmul.mubr.f32.gmra.mxu0 %v3120
  %v3233 = vpop.f32.mrf.mxu0
  %v3234 = vadd.f32 0.0, %v3233
  %v3235 = vpop.f32.mrf.mxu0
  %3236 = vmatprep.mubr.f32.mxu0 0.0
  %3237 = vmatmul.mubr.f32.gmra.mxu0 %v3123
  %v3238 = vpop.f32.mrf.mxu0
  %v3239 = vadd.f32 0.0, %v3238
  %v3240 = vpop.f32.mrf.mxu0
  %3241 = vmatprep.mubr.f32.mxu0 0.0
  %3242 = vmatmul.mubr.f32.gmra.mxu0 %v3126
  %v3243 = vpop.f32.mrf.mxu0
  %v3244 = vadd.f32 0.0, %v3243
  %v3245 = vpop.f32.mrf.mxu0
  %3246 = vmatprep.mubr.f32.mxu0 0.0
  %3247 = vmatmul.mubr.f32.gmra.mxu0 %v3129
  %v3248 = vpop.f32.mrf.mxu0
  %v3249 = vadd.f32 0.0, %v3248
  %v3250 = vpop.f32.mrf.mxu0
  %3251 = vmatprep.mubr.f32.mxu0 0.0
  %3252 = vmatmul.mubr.f32.gmra.mxu0 %v3132
  %v3253 = vpop.f32.mrf.mxu0
  %v3254 = vadd.f32 0.0, %v3253
  %v3255 = vpop.f32.mrf.mxu0
  %3256 = vmatprep.mubr.f32.mxu0 0.0
  %3257 = vmatmul.mubr.f32.gmra.mxu0 %v3135
  %v3258 = vpop.f32.mrf.mxu0
  %v3259 = vadd.f32 0.0, %v3258
  %v3260 = vpop.f32.mrf.mxu0
  %3261 = vmatprep.mubr.f32.mxu0 0.0
  %3262 = vmatmul.mubr.f32.gmra.mxu0 %v3138
  %v3263 = vpop.f32.mrf.mxu0
  %v3264 = vadd.f32 0.0, %v3263
  %v3265 = vpop.f32.mrf.mxu0
  %3266 = vmatprep.mubr.f32.mxu0 0.0
  %3267 = vmatmul.mubr.f32.gmra.mxu0 %v3141
  %v3268 = vpop.f32.mrf.mxu0
  %v3269 = vadd.f32 0.0, %v3268
  %v3270 = vpop.f32.mrf.mxu0
  %3271 = vmatprep.mubr.f32.mxu0 0.0
  %3272 = vmatmul.mubr.f32.gmra.mxu0 %v3144
  %v3273 = vpop.f32.mrf.mxu0
  %v3274 = vadd.f32 0.0, %v3273
  %v3275 = vpop.f32.mrf.mxu0
  %3276 = vmatprep.mubr.f32.mxu0 0.0
  %3277 = vmatmul.mubr.f32.gmra.mxu0 %v3147
  %v3278 = vpop.f32.mrf.mxu0
  %v3279 = vadd.f32 0.0, %v3278
  %v3280 = vpop.f32.mrf.mxu0
  %3281 = vmatprep.mubr.f32.mxu0 0.0
  %3282 = vmatmul.mubr.f32.gmra.mxu0 %v3150
  %v3283 = vpop.f32.mrf.mxu0
  %v3284 = vadd.f32 0.0, %v3283
  %v3285 = vpop.f32.mrf.mxu0
  %3286 = vmatprep.mubr.f32.mxu0 0.0
  %3287 = vmatmul.mubr.f32.gmra.mxu0 %v3153
  %v3288 = vpop.f32.mrf.mxu0
  %v3289 = vadd.f32 0.0, %v3288
  %v3290 = vpop.f32.mrf.mxu0
  %3291 = vmatprep.mubr.f32.mxu0 0.0
  %3292 = vmatmul.mubr.f32.gmra.mxu0 %v3156
  %v3293 = vpop.f32.mrf.mxu0
  %v3294 = vadd.f32 0.0, %v3293
  %v3295 = vpop.f32.mrf.mxu0
  %3296 = vmatprep.mubr.f32.mxu0 0.0
  %3297 = vmatmul.mubr.f32.gmra.mxu0 %v3159
  %v3298 = vpop.f32.mrf.mxu0
  %v3299 = vadd.f32 0.0, %v3298
  %v3300 = vpop.f32.mrf.mxu0
  %3301 = vmatprep.mubr.f32.mxu0 0.0
  %3302 = vmatmul.mubr.f32.gmra.mxu0 %v3162
  %v3303 = vpop.f32.mrf.mxu0
  %v3304 = vadd.f32 0.0, %v3303
  %v3305 = vpop.f32.mrf.mxu0
  %3306 = vmatprep.mubr.f32.mxu0 0.0
  %3307 = vmatmul.mubr.f32.gmra.mxu0 %v3165
  %v3308 = vpop.f32.mrf.mxu0
  %v3309 = vadd.f32 0.0, %v3308
  %v3310 = vpop.f32.mrf.mxu0
  %3311 = vdwg.mxu0
  %v3312 = vmul.u32 %v2753, 2
  %vm3313 = vcmp.eq.s32.totalorder %v384, %v3312
  %v3314 = vsel %vm3313, 1.0, 0.0
  %v3315 = vadd.s32 %v3312, 1
  %vm3316 = vcmp.eq.s32.totalorder %v384, %v3315
  %v3317 = vsel %vm3316, 1.0, 0.0
  %v3318 = vadd.s32 %v3312, 2
  %vm3319 = vcmp.eq.s32.totalorder %v384, %v3318
  %vm3320 = vcmp.lt.s32.totalorder %v382, 0
  %v3321 = vsub.s32 0, %v382
  %v3322 = vsel %vm3320, %v3321, %v382
  %v3323 = vshrl.u32 %v3322, 3
  %v3324 = vand.u32 %v3322, 7
  %v3325 = vsub.s32 0, %v3324
  %v3326 = vsel %vm3320, %v3325, %v3324
  %vm3327 = vcmp.lt.s32.totalorder %v2753, 0
  %v3328 = vsub.s32 0, %v2753
  %v3329 = vsel %vm3327, %v3328, %v2753
  %v3330 = vshrl.u32 %v3329, 3
  %v3331 = vand.u32 %v3329, 7
  %v3332 = vsub.s32 0, %v3331
  %v3333 = vsel %vm3327, %v3332, %v3331
  %vm3334 = vcmp.ne.s32.totalorder %v3326, 0
  %vm3335 = vcmp.ne.s32.totalorder %v3333, 0
  %vm3336 = vcmp.lt.s32.totalorder %v3326, 0
  %vm3337 = vcmp.lt.s32.totalorder %v3333, 0
  %vm3338 = vmand %vm3336, %vm3334
  %vm3339 = vmand %vm3337, %vm3335
  %v3340 = vadd.s32 %v3326, 8
  %v3341 = vadd.s32 %v3333, 8
  %v3342 = vsel %vm3338, %v3340, %v3326
  %v3343 = vsel %vm3339, %v3341, %v3333
  %vm3344 = vcmp.ne.s32.totalorder %v3342, 7
  %vm3345 = vcmp.ne.s32.totalorder %v3343, 7
  %vm3346 = vmand %vm1281, %vm3344
  %vm3347 = vmand %vm3319, %vm3345
  %v3348 = vsel %vm3346, 1.0, 0.0
  %v3349 = vsel %vm3347, 1.0, 0.0
  %v3350 = vsub.s32 %v3312, 1
  %vm3351 = vcmp.eq.s32.totalorder %v384, %v3350
  %vm3352 = vcmp.ne.s32.totalorder %v3342, 0
  %vm3353 = vcmp.ne.s32.totalorder %v3343, 0
  %vm3354 = vmand %vm1298, %vm3352
  %vm3355 = vmand %vm3351, %vm3353
  %v3356 = vsel %vm3354, 1.0, 0.0
  %v3357 = vsel %vm3355, 1.0, 0.0
  %v3359 = vsel %vm2780, %v3274, 0
  %v3362 = vsel %vm2780, %v3279, 0
  %v3365 = vsel %vm2780, %v3284, 0
  %v3368 = vsel %vm2780, %v3289, 0
  %3370 = vmatprep.subr.mxu0 0.0
  %3371 = vmatpush1.msra.mxu0 0.0
  %3372 = vmatprep.subr.mxu0 0.0
  %3373 = vmatpush1.msra.mxu0 0.0
  %3374 = vmatprep.subr.mxu0 0.0
  %3375 = vmatpush1.msra.mxu0 0.0
  %3376 = vmatprep.subr.mxu0 0.0
  %3377 = vmatpush1.msra.mxu0 0.0
  %3378 = vmatprep.subr.mxu0 0.0
  %3379 = vmatpush1.msra.mxu0 0.0
  %3380 = vmatprep.subr.mxu0 0.0
  %3381 = vmatpush1.msra.mxu0 0.0
  %3382 = vmatprep.subr.mxu0 0.0
  %3383 = vmatpush1.msra.mxu0 0.0
  %3384 = vmatprep.subr.mxu0 0.0
  %3385 = vmatpush1.msra.mxu0 0.0
  %3386 = vmatprep.subr.mxu0 0.0
  %3387 = vmatpush1.msra.mxu0 0.0
  %3388 = vmatprep.subr.mxu0 0.0
  %3389 = vmatpush1.msra.mxu0 0.0
  %3390 = vmatprep.subr.mxu0 0.0
  %3391 = vmatpush1.msra.mxu0 0.0
  %3392 = vmatprep.subr.mxu0 0.0
  %3393 = vmatpush1.msra.mxu0 0.0
  %3394 = vmatprep.subr.mxu0 0.0
  %3395 = vmatpush1.msra.mxu0 0.0
  %3396 = vmatprep.subr.mxu0 0.0
  %3397 = vmatpush1.msra.mxu0 0.0
  %3398 = vmatprep.subr.mxu0 0.0
  %3399 = vmatpush1.msra.mxu0 %v3317
  %3400 = vmatprep.subr.mxu0 0.0
  %3401 = vmatpush1.msra.mxu0 %v517
  %3402 = vmatprep.subr.mxu0 0.0
  %3403 = vmatpush2.msra.mxu0 0.0
  %3404 = vmatprep.subr.mxu0 0.0
  %3405 = vmatpush2.msra.mxu0 0.0
  %3406 = vmatprep.subr.mxu0 0.0
  %3407 = vmatpush2.msra.mxu0 0.0
  %3408 = vmatprep.subr.mxu0 0.0
  %3409 = vmatpush2.msra.mxu0 0.0
  %3410 = vmatprep.subr.mxu0 0.0
  %3411 = vmatpush2.msra.mxu0 0.0
  %3412 = vmatprep.subr.mxu0 0.0
  %3413 = vmatpush2.msra.mxu0 0.0
  %3414 = vmatprep.subr.mxu0 0.0
  %3415 = vmatpush2.msra.mxu0 0.0
  %3416 = vmatprep.subr.mxu0 0.0
  %3417 = vmatpush2.msra.mxu0 0.0
  %3418 = vmatprep.subr.mxu0 0.0
  %3419 = vmatpush2.msra.mxu0 0.0
  %3420 = vmatprep.subr.mxu0 0.0
  %3421 = vmatpush2.msra.mxu0 0.0
  %3422 = vmatprep.subr.mxu0 0.0
  %3423 = vmatpush2.msra.mxu0 0.0
  %3424 = vmatprep.subr.mxu0 0.0
  %3425 = vmatpush2.msra.mxu0 0.0
  %3426 = vmatprep.subr.mxu0 0.0
  %3427 = vmatpush2.msra.mxu0 0.0
  %3428 = vmatprep.subr.mxu0 0.0
  %3429 = vmatpush2.msra.mxu0 0.0
  %3430 = vmatprep.subr.mxu0 0.0
  %3431 = vmatpush2.msra.mxu0 0.0
  %3432 = vmatprep.subr.mxu0 0.0
  %3433 = vmatpush2.msra.mxu0 0.0
  %3434 = vmatprep.mubr.f32.mxu0 0.0
  %3435 = vmatmul.mubr.f32.gmra.mxu0 %v3359
  %v3436 = vpop.f32.mrf.mxu0
  %v3437 = vadd.f32 0.0, %v3436
  %v3438 = vpop.f32.mrf.mxu0
  %3439 = vmatprep.mubr.f32.mxu0 0.0
  %3440 = vmatmul.mubr.f32.gmra.mxu0 %v3362
  %v3441 = vpop.f32.mrf.mxu0
  %v3442 = vadd.f32 0.0, %v3441
  %v3443 = vpop.f32.mrf.mxu0
  %3444 = vmatprep.mubr.f32.mxu0 0.0
  %3445 = vmatmul.mubr.f32.gmra.mxu0 %v3365
  %v3446 = vpop.f32.mrf.mxu0
  %v3447 = vadd.f32 0.0, %v3446
  %v3448 = vpop.f32.mrf.mxu0
  %3449 = vmatprep.mubr.f32.mxu0 0.0
  %3450 = vmatmul.mubr.f32.gmra.mxu0 %v3368
  %v3451 = vpop.f32.mrf.mxu0
  %v3452 = vadd.f32 0.0, %v3451
  %v3453 = vpop.f32.mrf.mxu0
  %3454 = vdwg.mxu0
  %v3456 = vsel %vm2780, %v3254, 0
  %v3459 = vsel %vm2780, %v3259, 0
  %v3462 = vsel %vm2780, %v3264, 0
  %v3465 = vsel %vm2780, %v3269, 0
  %3467 = vmatprep.subr.mxu0 0.0
  %3468 = vmatpush1.msra.mxu0 0.0
  %3469 = vmatprep.subr.mxu0 0.0
  %3470 = vmatpush1.msra.mxu0 0.0
  %3471 = vmatprep.subr.mxu0 0.0
  %3472 = vmatpush1.msra.mxu0 0.0
  %3473 = vmatprep.subr.mxu0 0.0
  %3474 = vmatpush1.msra.mxu0 0.0
  %3475 = vmatprep.subr.mxu0 0.0
  %3476 = vmatpush1.msra.mxu0 0.0
  %3477 = vmatprep.subr.mxu0 0.0
  %3478 = vmatpush1.msra.mxu0 0.0
  %3479 = vmatprep.subr.mxu0 0.0
  %3480 = vmatpush1.msra.mxu0 0.0
  %3481 = vmatprep.subr.mxu0 0.0
  %3482 = vmatpush1.msra.mxu0 0.0
  %3483 = vmatprep.subr.mxu0 0.0
  %3484 = vmatpush1.msra.mxu0 0.0
  %3485 = vmatprep.subr.mxu0 0.0
  %3486 = vmatpush1.msra.mxu0 0.0
  %3487 = vmatprep.subr.mxu0 0.0
  %3488 = vmatpush1.msra.mxu0 0.0
  %3489 = vmatprep.subr.mxu0 0.0
  %3490 = vmatpush1.msra.mxu0 0.0
  %3491 = vmatprep.subr.mxu0 0.0
  %3492 = vmatpush1.msra.mxu0 0.0
  %3493 = vmatprep.subr.mxu0 0.0
  %3494 = vmatpush1.msra.mxu0 0.0
  %3495 = vmatprep.subr.mxu0 0.0
  %3496 = vmatpush1.msra.mxu0 %v3314
  %3497 = vmatprep.subr.mxu0 0.0
  %3498 = vmatpush1.msra.mxu0 %v387
  %3499 = vmatprep.subr.mxu0 0.0
  %3500 = vmatpush2.msra.mxu0 0.0
  %3501 = vmatprep.subr.mxu0 0.0
  %3502 = vmatpush2.msra.mxu0 0.0
  %3503 = vmatprep.subr.mxu0 0.0
  %3504 = vmatpush2.msra.mxu0 0.0
  %3505 = vmatprep.subr.mxu0 0.0
  %3506 = vmatpush2.msra.mxu0 0.0
  %3507 = vmatprep.subr.mxu0 0.0
  %3508 = vmatpush2.msra.mxu0 0.0
  %3509 = vmatprep.subr.mxu0 0.0
  %3510 = vmatpush2.msra.mxu0 0.0
  %3511 = vmatprep.subr.mxu0 0.0
  %3512 = vmatpush2.msra.mxu0 0.0
  %3513 = vmatprep.subr.mxu0 0.0
  %3514 = vmatpush2.msra.mxu0 0.0
  %3515 = vmatprep.subr.mxu0 0.0
  %3516 = vmatpush2.msra.mxu0 0.0
  %3517 = vmatprep.subr.mxu0 0.0
  %3518 = vmatpush2.msra.mxu0 0.0
  %3519 = vmatprep.subr.mxu0 0.0
  %3520 = vmatpush2.msra.mxu0 0.0
  %3521 = vmatprep.subr.mxu0 0.0
  %3522 = vmatpush2.msra.mxu0 0.0
  %3523 = vmatprep.subr.mxu0 0.0
  %3524 = vmatpush2.msra.mxu0 0.0
  %3525 = vmatprep.subr.mxu0 0.0
  %3526 = vmatpush2.msra.mxu0 0.0
  %3527 = vmatprep.subr.mxu0 0.0
  %3528 = vmatpush2.msra.mxu0 0.0
  %3529 = vmatprep.subr.mxu0 0.0
  %3530 = vmatpush2.msra.mxu0 0.0
  %3531 = vmatprep.mubr.f32.mxu0 0.0
  %3532 = vmatmul.mubr.f32.gmra.mxu0 %v3456
  %v3533 = vpop.f32.mrf.mxu0
  %v3534 = vadd.f32 %v3437, %v3533
  %v3535 = vpop.f32.mrf.mxu0
  %3536 = vmatprep.mubr.f32.mxu0 0.0
  %3537 = vmatmul.mubr.f32.gmra.mxu0 %v3459
  %v3538 = vpop.f32.mrf.mxu0
  %v3539 = vadd.f32 %v3442, %v3538
  %v3540 = vpop.f32.mrf.mxu0
  %3541 = vmatprep.mubr.f32.mxu0 0.0
  %3542 = vmatmul.mubr.f32.gmra.mxu0 %v3462
  %v3543 = vpop.f32.mrf.mxu0
  %v3544 = vadd.f32 %v3447, %v3543
  %v3545 = vpop.f32.mrf.mxu0
  %3546 = vmatprep.mubr.f32.mxu0 0.0
  %3547 = vmatmul.mubr.f32.gmra.mxu0 %v3465
  %v3548 = vpop.f32.mrf.mxu0
  %v3549 = vadd.f32 %v3452, %v3548
  %v3550 = vpop.f32.mrf.mxu0
  %3551 = vdwg.mxu0
  %v3553 = vsel %vm2780, %v3294, 0
  %v3556 = vsel %vm2780, %v3299, 0
  %v3559 = vsel %vm2780, %v3304, 0
  %v3562 = vsel %vm2780, %v3309, 0
  %3564 = vmatprep.subr.mxu0 0.0
  %3565 = vmatpush1.msra.mxu0 0.0
  %3566 = vmatprep.subr.mxu0 0.0
  %3567 = vmatpush1.msra.mxu0 0.0
  %3568 = vmatprep.subr.mxu0 0.0
  %3569 = vmatpush1.msra.mxu0 0.0
  %3570 = vmatprep.subr.mxu0 0.0
  %3571 = vmatpush1.msra.mxu0 0.0
  %3572 = vmatprep.subr.mxu0 0.0
  %3573 = vmatpush1.msra.mxu0 0.0
  %3574 = vmatprep.subr.mxu0 0.0
  %3575 = vmatpush1.msra.mxu0 0.0
  %3576 = vmatprep.subr.mxu0 0.0
  %3577 = vmatpush1.msra.mxu0 0.0
  %3578 = vmatprep.subr.mxu0 0.0
  %3579 = vmatpush1.msra.mxu0 0.0
  %3580 = vmatprep.subr.mxu0 0.0
  %3581 = vmatpush1.msra.mxu0 0.0
  %3582 = vmatprep.subr.mxu0 0.0
  %3583 = vmatpush1.msra.mxu0 0.0
  %3584 = vmatprep.subr.mxu0 0.0
  %3585 = vmatpush1.msra.mxu0 0.0
  %3586 = vmatprep.subr.mxu0 0.0
  %3587 = vmatpush1.msra.mxu0 0.0
  %3588 = vmatprep.subr.mxu0 0.0
  %3589 = vmatpush1.msra.mxu0 0.0
  %3590 = vmatprep.subr.mxu0 0.0
  %3591 = vmatpush1.msra.mxu0 0.0
  %3592 = vmatprep.subr.mxu0 0.0
  %3593 = vmatpush1.msra.mxu0 %v3349
  %3594 = vmatprep.subr.mxu0 0.0
  %3595 = vmatpush1.msra.mxu0 %v3348
  %3596 = vmatprep.subr.mxu0 0.0
  %3597 = vmatpush2.msra.mxu0 0.0
  %3598 = vmatprep.subr.mxu0 0.0
  %3599 = vmatpush2.msra.mxu0 0.0
  %3600 = vmatprep.subr.mxu0 0.0
  %3601 = vmatpush2.msra.mxu0 0.0
  %3602 = vmatprep.subr.mxu0 0.0
  %3603 = vmatpush2.msra.mxu0 0.0
  %3604 = vmatprep.subr.mxu0 0.0
  %3605 = vmatpush2.msra.mxu0 0.0
  %3606 = vmatprep.subr.mxu0 0.0
  %3607 = vmatpush2.msra.mxu0 0.0
  %3608 = vmatprep.subr.mxu0 0.0
  %3609 = vmatpush2.msra.mxu0 0.0
  %3610 = vmatprep.subr.mxu0 0.0
  %3611 = vmatpush2.msra.mxu0 0.0
  %3612 = vmatprep.subr.mxu0 0.0
  %3613 = vmatpush2.msra.mxu0 0.0
  %3614 = vmatprep.subr.mxu0 0.0
  %3615 = vmatpush2.msra.mxu0 0.0
  %3616 = vmatprep.subr.mxu0 0.0
  %3617 = vmatpush2.msra.mxu0 0.0
  %3618 = vmatprep.subr.mxu0 0.0
  %3619 = vmatpush2.msra.mxu0 0.0
  %3620 = vmatprep.subr.mxu0 0.0
  %3621 = vmatpush2.msra.mxu0 0.0
  %3622 = vmatprep.subr.mxu0 0.0
  %3623 = vmatpush2.msra.mxu0 0.0
  %3624 = vmatprep.subr.mxu0 0.0
  %3625 = vmatpush2.msra.mxu0 0.0
  %3626 = vmatprep.subr.mxu0 0.0
  %3627 = vmatpush2.msra.mxu0 0.0
  %3628 = vmatprep.mubr.f32.mxu0 0.0
  %3629 = vmatmul.mubr.f32.gmra.mxu0 %v3553
  %v3630 = vpop.f32.mrf.mxu0
  %v3631 = vadd.f32 0.0, %v3630
  %v3632 = vpop.f32.mrf.mxu0
  %3633 = vmatprep.mubr.f32.mxu0 0.0
  %3634 = vmatmul.mubr.f32.gmra.mxu0 %v3556
  %v3635 = vpop.f32.mrf.mxu0
  %v3636 = vadd.f32 0.0, %v3635
  %v3637 = vpop.f32.mrf.mxu0
  %3638 = vmatprep.mubr.f32.mxu0 0.0
  %3639 = vmatmul.mubr.f32.gmra.mxu0 %v3559
  %v3640 = vpop.f32.mrf.mxu0
  %v3641 = vadd.f32 0.0, %v3640
  %v3642 = vpop.f32.mrf.mxu0
  %3643 = vmatprep.mubr.f32.mxu0 0.0
  %3644 = vmatmul.mubr.f32.gmra.mxu0 %v3562
  %v3645 = vpop.f32.mrf.mxu0
  %v3646 = vadd.f32 0.0, %v3645
  %v3647 = vpop.f32.mrf.mxu0
  %3648 = vdwg.mxu0
  %v3649 = vadd.f32 %v3534, %v3631
  %v3650 = vadd.f32 %v3539, %v3636
  %v3651 = vadd.f32 %v3544, %v3641
  %v3652 = vadd.f32 %v3549, %v3646
  %v3654 = vsel %vm2780, %v3234, 0
  %v3657 = vsel %vm2780, %v3239, 0
  %v3660 = vsel %vm2780, %v3244, 0
  %v3663 = vsel %vm2780, %v3249, 0
  %3665 = vmatprep.subr.mxu0 0.0
  %3666 = vmatpush1.msra.mxu0 0.0
  %3667 = vmatprep.subr.mxu0 0.0
  %3668 = vmatpush1.msra.mxu0 0.0
  %3669 = vmatprep.subr.mxu0 0.0
  %3670 = vmatpush1.msra.mxu0 0.0
  %3671 = vmatprep.subr.mxu0 0.0
  %3672 = vmatpush1.msra.mxu0 0.0
  %3673 = vmatprep.subr.mxu0 0.0
  %3674 = vmatpush1.msra.mxu0 0.0
  %3675 = vmatprep.subr.mxu0 0.0
  %3676 = vmatpush1.msra.mxu0 0.0
  %3677 = vmatprep.subr.mxu0 0.0
  %3678 = vmatpush1.msra.mxu0 0.0
  %3679 = vmatprep.subr.mxu0 0.0
  %3680 = vmatpush1.msra.mxu0 0.0
  %3681 = vmatprep.subr.mxu0 0.0
  %3682 = vmatpush1.msra.mxu0 0.0
  %3683 = vmatprep.subr.mxu0 0.0
  %3684 = vmatpush1.msra.mxu0 0.0
  %3685 = vmatprep.subr.mxu0 0.0
  %3686 = vmatpush1.msra.mxu0 0.0
  %3687 = vmatprep.subr.mxu0 0.0
  %3688 = vmatpush1.msra.mxu0 0.0
  %3689 = vmatprep.subr.mxu0 0.0
  %3690 = vmatpush1.msra.mxu0 0.0
  %3691 = vmatprep.subr.mxu0 0.0
  %3692 = vmatpush1.msra.mxu0 0.0
  %3693 = vmatprep.subr.mxu0 0.0
  %3694 = vmatpush1.msra.mxu0 %v3357
  %3695 = vmatprep.subr.mxu0 0.0
  %3696 = vmatpush1.msra.mxu0 %v3356
  %3697 = vmatprep.subr.mxu0 0.0
  %3698 = vmatpush2.msra.mxu0 0.0
  %3699 = vmatprep.subr.mxu0 0.0
  %3700 = vmatpush2.msra.mxu0 0.0
  %3701 = vmatprep.subr.mxu0 0.0
  %3702 = vmatpush2.msra.mxu0 0.0
  %3703 = vmatprep.subr.mxu0 0.0
  %3704 = vmatpush2.msra.mxu0 0.0
  %3705 = vmatprep.subr.mxu0 0.0
  %3706 = vmatpush2.msra.mxu0 0.0
  %3707 = vmatprep.subr.mxu0 0.0
  %3708 = vmatpush2.msra.mxu0 0.0
  %3709 = vmatprep.subr.mxu0 0.0
  %3710 = vmatpush2.msra.mxu0 0.0
  %3711 = vmatprep.subr.mxu0 0.0
  %3712 = vmatpush2.msra.mxu0 0.0
  %3713 = vmatprep.subr.mxu0 0.0
  %3714 = vmatpush2.msra.mxu0 0.0
  %3715 = vmatprep.subr.mxu0 0.0
  %3716 = vmatpush2.msra.mxu0 0.0
  %3717 = vmatprep.subr.mxu0 0.0
  %3718 = vmatpush2.msra.mxu0 0.0
  %3719 = vmatprep.subr.mxu0 0.0
  %3720 = vmatpush2.msra.mxu0 0.0
  %3721 = vmatprep.subr.mxu0 0.0
  %3722 = vmatpush2.msra.mxu0 0.0
  %3723 = vmatprep.subr.mxu0 0.0
  %3724 = vmatpush2.msra.mxu0 0.0
  %3725 = vmatprep.subr.mxu0 0.0
  %3726 = vmatpush2.msra.mxu0 0.0
  %3727 = vmatprep.subr.mxu0 0.0
  %3728 = vmatpush2.msra.mxu0 0.0
  %3729 = vmatprep.mubr.f32.mxu0 0.0
  %3730 = vmatmul.mubr.f32.gmra.mxu0 %v3654
  %v3731 = vpop.f32.mrf.mxu0
  %v3732 = vadd.f32 0.0, %v3731
  %v3733 = vpop.f32.mrf.mxu0
  %3734 = vmatprep.mubr.f32.mxu0 0.0
  %3735 = vmatmul.mubr.f32.gmra.mxu0 %v3657
  %v3736 = vpop.f32.mrf.mxu0
  %v3737 = vadd.f32 0.0, %v3736
  %v3738 = vpop.f32.mrf.mxu0
  %3739 = vmatprep.mubr.f32.mxu0 0.0
  %3740 = vmatmul.mubr.f32.gmra.mxu0 %v3660
  %v3741 = vpop.f32.mrf.mxu0
  %v3742 = vadd.f32 0.0, %v3741
  %v3743 = vpop.f32.mrf.mxu0
  %3744 = vmatprep.mubr.f32.mxu0 0.0
  %3745 = vmatmul.mubr.f32.gmra.mxu0 %v3663
  %v3746 = vpop.f32.mrf.mxu0
  %v3747 = vadd.f32 0.0, %v3746
  %v3748 = vpop.f32.mrf.mxu0
  %3749 = vdwg.mxu0
  %v3750 = vadd.f32 %v3649, %v3732
  %v3751 = vadd.f32 %v3650, %v3737
  %v3752 = vadd.f32 %v3651, %v3742
  %v3753 = vadd.f32 %v3652, %v3747
  %s3754 = scalar_lea.vmem %s8, 64
  %v3755 = vld [vmem:[%s3754] sm:$0xff]
  %v3756 = vld [vmem:[%s3754 + $0x8] sm:$0xff]
  %v3757 = vld [vmem:[%s3754 + $0x10] sm:$0xff]
  %v3758 = vld [vmem:[%s3754 + $0x18] sm:$0xff]
  %3760 = vset.pattern.permute.xlu0 0
  %3761 = vperm.xlu0 %3760, %v3755
  %v3762 = vpop.permute.xlu0 %3761
  %3765 = vset.pattern.permute.xlu0 0
  %3766 = vperm.xlu0 %3765, %v3756
  %v3767 = vpop.permute.xlu0 %3766
  %3770 = vset.pattern.permute.xlu0 0
  %3771 = vperm.xlu0 %3770, %v3757
  %v3772 = vpop.permute.xlu0 %3771
  %3775 = vset.pattern.permute.xlu0 0
  %3776 = vperm.xlu0 %3775, %v3758
  %v3777 = vpop.permute.xlu0 %3776
  %v3779 = vadd.f32 %v3750, %v3762
  %v3780 = vadd.f32 %v3751, %v3767
  %v3781 = vadd.f32 %v3752, %v3772
  %v3782 = vadd.f32 %v3753, %v3777
  %vm3783 = vcmp.gt.f32.partialorder %v3779, 0.0
  %vm3784 = vcmp.gt.f32.partialorder %v3780, 0.0
  %vm3785 = vcmp.gt.f32.partialorder %v3781, 0.0
  %vm3786 = vcmp.gt.f32.partialorder %v3782, 0.0
  %v3787 = vmul.f32 %v3779, 0.2
  %v3788 = vmul.f32 %v3780, 0.2
  %v3789 = vmul.f32 %v3781, 0.2
  %v3790 = vmul.f32 %v3782, 0.2
  %v3791 = vsel %vm3783, %v3779, %v3787
  %v3792 = vsel %vm3784, %v3780, %v3788
  %v3793 = vsel %vm3785, %v3781, %v3789
  %v3794 = vsel %vm3786, %v3782, %v3790
  %v3795 = vadd.s32 %v382, 16
  %v3796 = vadd.s32 %v382, 24
  %v3797 = vadd.s32 %v3795, 1
  %v3798 = vadd.s32 %v3796, 1
  %vm3799 = vcmp.eq.s32.totalorder %v384, %v3797
  %vm3800 = vcmp.eq.s32.totalorder %v384, %v3798
  %vm3801 = vcmp.lt.s32.totalorder %v384, 0
  %v3802 = vsub.s32 0, %v384
  %v3803 = vsel %vm3801, %v3802, %v384
  %v3804 = vshrl.u32 %v3803, 4
  %v3805 = vand.u32 %v3803, 15
  %v3806 = vsub.s32 0, %v3805
  %v3807 = vsel %vm3801, %v3806, %v3805
  %vm3808 = vcmp.ne.s32.totalorder %v3807, 0
  %vm3809 = vcmp.lt.s32.totalorder %v3807, 0
  %vm3810 = vmand %vm3809, %vm3808
  %v3811 = vadd.s32 %v3807, 16
  %v3812 = vsel %vm3810, %v3811, %v3807
  %vm3813 = vcmp.ne.s32.totalorder %v3812, 0
  %vm3814 = vmand %vm721, %vm3813
  %vm3815 = vmand %vm2755, %vm3813
  %vm3816 = vmand %vm3799, %vm3813
  %vm3817 = vmand %vm3800, %vm3813
  %v3818 = vsel %vm3814, 1.0, 0.0
  %v3819 = vsel %vm3815, 1.0, 0.0
  %v3820 = vsel %vm3816, 1.0, 0.0
  %v3821 = vsel %vm3817, 1.0, 0.0
  %v3822 = vsub.s32 %v3795, 1
  %v3823 = vsub.s32 %v3796, 1
  %vm3824 = vcmp.eq.s32.totalorder %v384, %v3822
  %vm3825 = vcmp.eq.s32.totalorder %v384, %v3823
  %vm3826 = vcmp.ne.s32.totalorder %v3812, 15
  %vm3827 = vmand %vm738, %vm3826
  %vm3828 = vmand %vm2774, %vm3826
  %vm3829 = vmand %vm3824, %vm3826
  %vm3830 = vmand %vm3825, %vm3826
  %v3831 = vsel %vm3827, 1.0, 0.0
  %v3832 = vsel %vm3828, 1.0, 0.0
  %v3833 = vsel %vm3829, 1.0, 0.0
  %v3834 = vsel %vm3830, 1.0, 0.0
  %v3836 = vsel %vm1086, %v3791, 0
  %v3839 = vsel %vm1086, %v3792, 0
  %v3842 = vsel %vm1086, %v3793, 0
  %v3845 = vsel %vm1086, %v3794, 0
  %3847 = vmatprep.subr.mxu0 0.0
  %3848 = vmatpush1.msra.mxu0 0.0
  %3849 = vmatprep.subr.mxu0 0.0
  %3850 = vmatpush1.msra.mxu0 0.0
  %3851 = vmatprep.subr.mxu0 0.0
  %3852 = vmatpush1.msra.mxu0 0.0
  %3853 = vmatprep.subr.mxu0 0.0
  %3854 = vmatpush1.msra.mxu0 0.0
  %3855 = vmatprep.subr.mxu0 0.0
  %3856 = vmatpush1.msra.mxu0 0.0
  %3857 = vmatprep.subr.mxu0 0.0
  %3858 = vmatpush1.msra.mxu0 0.0
  %3859 = vmatprep.subr.mxu0 0.0
  %3860 = vmatpush1.msra.mxu0 0.0
  %3861 = vmatprep.subr.mxu0 0.0
  %3862 = vmatpush1.msra.mxu0 0.0
  %3863 = vmatprep.subr.mxu0 0.0
  %3864 = vmatpush1.msra.mxu0 0.0
  %3865 = vmatprep.subr.mxu0 0.0
  %3866 = vmatpush1.msra.mxu0 0.0
  %3867 = vmatprep.subr.mxu0 0.0
  %3868 = vmatpush1.msra.mxu0 0.0
  %3869 = vmatprep.subr.mxu0 0.0
  %3870 = vmatpush1.msra.mxu0 0.0
  %3871 = vmatprep.subr.mxu0 0.0
  %3872 = vmatpush1.msra.mxu0 %v3821
  %3873 = vmatprep.subr.mxu0 0.0
  %3874 = vmatpush1.msra.mxu0 %v3820
  %3875 = vmatprep.subr.mxu0 0.0
  %3876 = vmatpush1.msra.mxu0 %v3819
  %3877 = vmatprep.subr.mxu0 0.0
  %3878 = vmatpush1.msra.mxu0 %v3818
  %3879 = vmatprep.subr.mxu0 0.0
  %3880 = vmatpush2.msra.mxu0 0.0
  %3881 = vmatprep.subr.mxu0 0.0
  %3882 = vmatpush2.msra.mxu0 0.0
  %3883 = vmatprep.subr.mxu0 0.0
  %3884 = vmatpush2.msra.mxu0 0.0
  %3885 = vmatprep.subr.mxu0 0.0
  %3886 = vmatpush2.msra.mxu0 0.0
  %3887 = vmatprep.subr.mxu0 0.0
  %3888 = vmatpush2.msra.mxu0 0.0
  %3889 = vmatprep.subr.mxu0 0.0
  %3890 = vmatpush2.msra.mxu0 0.0
  %3891 = vmatprep.subr.mxu0 0.0
  %3892 = vmatpush2.msra.mxu0 0.0
  %3893 = vmatprep.subr.mxu0 0.0
  %3894 = vmatpush2.msra.mxu0 0.0
  %3895 = vmatprep.subr.mxu0 0.0
  %3896 = vmatpush2.msra.mxu0 0.0
  %3897 = vmatprep.subr.mxu0 0.0
  %3898 = vmatpush2.msra.mxu0 0.0
  %3899 = vmatprep.subr.mxu0 0.0
  %3900 = vmatpush2.msra.mxu0 0.0
  %3901 = vmatprep.subr.mxu0 0.0
  %3902 = vmatpush2.msra.mxu0 0.0
  %3903 = vmatprep.subr.mxu0 0.0
  %3904 = vmatpush2.msra.mxu0 0.0
  %3905 = vmatprep.subr.mxu0 0.0
  %3906 = vmatpush2.msra.mxu0 0.0
  %3907 = vmatprep.subr.mxu0 0.0
  %3908 = vmatpush2.msra.mxu0 0.0
  %3909 = vmatprep.subr.mxu0 0.0
  %3910 = vmatpush2.msra.mxu0 0.0
  %3911 = vmatprep.mubr.f32.mxu0 0.0
  %3912 = vmatmul.mubr.f32.gmra.mxu0 %v3836
  %v3913 = vpop.f32.mrf.mxu0
  %v3914 = vadd.f32 0.0, %v3913
  %v3915 = vpop.f32.mrf.mxu0
  %3916 = vmatprep.mubr.f32.mxu0 0.0
  %3917 = vmatmul.mubr.f32.gmra.mxu0 %v3839
  %v3918 = vpop.f32.mrf.mxu0
  %v3919 = vadd.f32 0.0, %v3918
  %v3920 = vpop.f32.mrf.mxu0
  %3921 = vmatprep.mubr.f32.mxu0 0.0
  %3922 = vmatmul.mubr.f32.gmra.mxu0 %v3842
  %v3923 = vpop.f32.mrf.mxu0
  %v3924 = vadd.f32 0.0, %v3923
  %v3925 = vpop.f32.mrf.mxu0
  %3926 = vmatprep.mubr.f32.mxu0 0.0
  %3927 = vmatmul.mubr.f32.gmra.mxu0 %v3845
  %v3928 = vpop.f32.mrf.mxu0
  %v3929 = vadd.f32 0.0, %v3928
  %v3930 = vpop.f32.mrf.mxu0
  %3931 = vdwg.mxu0
  %3932 = vmatprep.subr.mxu0 0.0
  %3933 = vmatpush1.msra.mxu0 0.0
  %3934 = vmatprep.subr.mxu0 0.0
  %3935 = vmatpush1.msra.mxu0 0.0
  %3936 = vmatprep.subr.mxu0 0.0
  %3937 = vmatpush1.msra.mxu0 0.0
  %3938 = vmatprep.subr.mxu0 0.0
  %3939 = vmatpush1.msra.mxu0 0.0
  %3940 = vmatprep.subr.mxu0 0.0
  %3941 = vmatpush1.msra.mxu0 0.0
  %3942 = vmatprep.subr.mxu0 0.0
  %3943 = vmatpush1.msra.mxu0 0.0
  %3944 = vmatprep.subr.mxu0 0.0
  %3945 = vmatpush1.msra.mxu0 0.0
  %3946 = vmatprep.subr.mxu0 0.0
  %3947 = vmatpush1.msra.mxu0 0.0
  %3948 = vmatprep.subr.mxu0 0.0
  %3949 = vmatpush1.msra.mxu0 0.0
  %3950 = vmatprep.subr.mxu0 0.0
  %3951 = vmatpush1.msra.mxu0 0.0
  %3952 = vmatprep.subr.mxu0 0.0
  %3953 = vmatpush1.msra.mxu0 0.0
  %3954 = vmatprep.subr.mxu0 0.0
  %3955 = vmatpush1.msra.mxu0 0.0
  %3956 = vmatprep.subr.mxu0 0.0
  %3957 = vmatpush1.msra.mxu0 %v3834
  %3958 = vmatprep.subr.mxu0 0.0
  %3959 = vmatpush1.msra.mxu0 %v3833
  %3960 = vmatprep.subr.mxu0 0.0
  %3961 = vmatpush1.msra.mxu0 %v3832
  %3962 = vmatprep.subr.mxu0 0.0
  %3963 = vmatpush1.msra.mxu0 %v3831
  %3964 = vmatprep.subr.mxu0 0.0
  %3965 = vmatpush2.msra.mxu0 0.0
  %3966 = vmatprep.subr.mxu0 0.0
  %3967 = vmatpush2.msra.mxu0 0.0
  %3968 = vmatprep.subr.mxu0 0.0
  %3969 = vmatpush2.msra.mxu0 0.0
  %3970 = vmatprep.subr.mxu0 0.0
  %3971 = vmatpush2.msra.mxu0 0.0
  %3972 = vmatprep.subr.mxu0 0.0
  %3973 = vmatpush2.msra.mxu0 0.0
  %3974 = vmatprep.subr.mxu0 0.0
  %3975 = vmatpush2.msra.mxu0 0.0
  %3976 = vmatprep.subr.mxu0 0.0
  %3977 = vmatpush2.msra.mxu0 0.0
  %3978 = vmatprep.subr.mxu0 0.0
  %3979 = vmatpush2.msra.mxu0 0.0
  %3980 = vmatprep.subr.mxu0 0.0
  %3981 = vmatpush2.msra.mxu0 0.0
  %3982 = vmatprep.subr.mxu0 0.0
  %3983 = vmatpush2.msra.mxu0 0.0
  %3984 = vmatprep.subr.mxu0 0.0
  %3985 = vmatpush2.msra.mxu0 0.0
  %3986 = vmatprep.subr.mxu0 0.0
  %3987 = vmatpush2.msra.mxu0 0.0
  %3988 = vmatprep.subr.mxu0 0.0
  %3989 = vmatpush2.msra.mxu0 0.0
  %3990 = vmatprep.subr.mxu0 0.0
  %3991 = vmatpush2.msra.mxu0 0.0
  %3992 = vmatprep.subr.mxu0 0.0
  %3993 = vmatpush2.msra.mxu0 0.0
  %3994 = vmatprep.subr.mxu0 0.0
  %3995 = vmatpush2.msra.mxu0 0.0
  %3996 = vmatprep.mubr.f32.mxu0 0.0
  %3997 = vmatmul.mubr.f32.gmra.mxu0 %v3836
  %v3998 = vpop.f32.mrf.mxu0
  %v3999 = vadd.f32 0.0, %v3998
  %v4000 = vpop.f32.mrf.mxu0
  %4001 = vmatprep.mubr.f32.mxu0 0.0
  %4002 = vmatmul.mubr.f32.gmra.mxu0 %v3839
  %v4003 = vpop.f32.mrf.mxu0
  %v4004 = vadd.f32 0.0, %v4003
  %v4005 = vpop.f32.mrf.mxu0
  %4006 = vmatprep.mubr.f32.mxu0 0.0
  %4007 = vmatmul.mubr.f32.gmra.mxu0 %v3842
  %v4008 = vpop.f32.mrf.mxu0
  %v4009 = vadd.f32 0.0, %v4008
  %v4010 = vpop.f32.mrf.mxu0
  %4011 = vmatprep.mubr.f32.mxu0 0.0
  %4012 = vmatmul.mubr.f32.gmra.mxu0 %v3845
  %v4013 = vpop.f32.mrf.mxu0
  %v4014 = vadd.f32 0.0, %v4013
  %v4015 = vpop.f32.mrf.mxu0
  %4016 = vdwg.mxu0
  %s4017 = scalar_lea.vmem %s5, 96
  %v4018 = vld [vmem:[%s4017] sm:$0xff]
  %v4019 = vld [vmem:[%s4017 + $0x8] sm:$0xff]
  %v4020 = vld [vmem:[%s4017 + $0x10] sm:$0xff]
  %v4021 = vld [vmem:[%s4017 + $0x18] sm:$0xff]
  %s4022 = scalar_lea.vmem %s6, 96
  %v4023 = vld [vmem:[%s4022] sm:$0xff]
  %v4024 = vld [vmem:[%s4022 + $0x8] sm:$0xff]
  %v4025 = vld [vmem:[%s4022 + $0x10] sm:$0xff]
  %v4026 = vld [vmem:[%s4022 + $0x18] sm:$0xff]
  %4028 = vset.pattern.permute.xlu0 0
  %4029 = vperm.xlu0 %4028, %v4023
  %v4030 = vpop.permute.xlu0 %4029
  %4033 = vset.pattern.permute.xlu0 0
  %4034 = vperm.xlu0 %4033, %v4024
  %v4035 = vpop.permute.xlu0 %4034
  %4038 = vset.pattern.permute.xlu0 0
  %4039 = vperm.xlu0 %4038, %v4025
  %v4040 = vpop.permute.xlu0 %4039
  %4043 = vset.pattern.permute.xlu0 0
  %4044 = vperm.xlu0 %4043, %v4026
  %v4045 = vpop.permute.xlu0 %4044
  %v4048 = vsel %vm960, %v4018, 0
  %v4051 = vsel %vm960, %v4019, 0
  %v4054 = vsel %vm960, %v4020, 0
  %v4057 = vsel %vm960, %v4021, 0
  %4059 = vmatprep.subr.mxu0 0.0
  %4060 = vmatpush1.msra.mxu0 0.0
  %4061 = vmatprep.subr.mxu0 0.0
  %4062 = vmatpush1.msra.mxu0 0.0
  %4063 = vmatprep.subr.mxu0 0.0
  %4064 = vmatpush1.msra.mxu0 0.0
  %4065 = vmatprep.subr.mxu0 0.0
  %4066 = vmatpush1.msra.mxu0 0.0
  %4067 = vmatprep.subr.mxu0 0.0
  %4068 = vmatpush1.msra.mxu0 %v4014
  %4069 = vmatprep.subr.mxu0 0.0
  %4070 = vmatpush1.msra.mxu0 %v4009
  %4071 = vmatprep.subr.mxu0 0.0
  %4072 = vmatpush1.msra.mxu0 %v4004
  %4073 = vmatprep.subr.mxu0 0.0
  %4074 = vmatpush1.msra.mxu0 %v3999
  %4075 = vmatprep.subr.mxu0 0.0
  %4076 = vmatpush1.msra.mxu0 %v3794
  %4077 = vmatprep.subr.mxu0 0.0
  %4078 = vmatpush1.msra.mxu0 %v3793
  %4079 = vmatprep.subr.mxu0 0.0
  %4080 = vmatpush1.msra.mxu0 %v3792
  %4081 = vmatprep.subr.mxu0 0.0
  %4082 = vmatpush1.msra.mxu0 %v3791
  %4083 = vmatprep.subr.mxu0 0.0
  %4084 = vmatpush1.msra.mxu0 %v3929
  %4085 = vmatprep.subr.mxu0 0.0
  %4086 = vmatpush1.msra.mxu0 %v3924
  %4087 = vmatprep.subr.mxu0 0.0
  %4088 = vmatpush1.msra.mxu0 %v3919
  %4089 = vmatprep.subr.mxu0 0.0
  %4090 = vmatpush1.msra.mxu0 %v3914
  %4091 = vmatprep.subr.mxu0 0.0
  %4092 = vmatpush2.msra.mxu0 0.0
  %4093 = vmatprep.subr.mxu0 0.0
  %4094 = vmatpush2.msra.mxu0 0.0
  %4095 = vmatprep.subr.mxu0 0.0
  %4096 = vmatpush2.msra.mxu0 0.0
  %4097 = vmatprep.subr.mxu0 0.0
  %4098 = vmatpush2.msra.mxu0 0.0
  %4099 = vmatprep.subr.mxu0 0.0
  %4100 = vmatpush2.msra.mxu0 0.0
  %4101 = vmatprep.subr.mxu0 0.0
  %4102 = vmatpush2.msra.mxu0 0.0
  %4103 = vmatprep.subr.mxu0 0.0
  %4104 = vmatpush2.msra.mxu0 0.0
  %4105 = vmatprep.subr.mxu0 0.0
  %4106 = vmatpush2.msra.mxu0 0.0
  %4107 = vmatprep.subr.mxu0 0.0
  %4108 = vmatpush2.msra.mxu0 0.0
  %4109 = vmatprep.subr.mxu0 0.0
  %4110 = vmatpush2.msra.mxu0 0.0
  %4111 = vmatprep.subr.mxu0 0.0
  %4112 = vmatpush2.msra.mxu0 0.0
  %4113 = vmatprep.subr.mxu0 0.0
  %4114 = vmatpush2.msra.mxu0 0.0
  %4115 = vmatprep.subr.mxu0 0.0
  %4116 = vmatpush2.msra.mxu0 0.0
  %4117 = vmatprep.subr.mxu0 0.0
  %4118 = vmatpush2.msra.mxu0 0.0
  %4119 = vmatprep.subr.mxu0 0.0
  %4120 = vmatpush2.msra.mxu0 0.0
  %4121 = vmatprep.subr.mxu0 0.0
  %4122 = vmatpush2.msra.mxu0 0.0
  %4123 = vmatprep.mubr.f32.mxu0 0.0
  %4124 = vmatmul.mubr.f32.gmra.mxu0 %v4048
  %v4125 = vpop.f32.mrf.mxu0
  %v4126 = vadd.f32 %v4030, %v4125
  %v4127 = vpop.f32.mrf.mxu0
  %4128 = vmatprep.mubr.f32.mxu0 0.0
  %4129 = vmatmul.mubr.f32.gmra.mxu0 %v4051
  %v4130 = vpop.f32.mrf.mxu0
  %v4131 = vadd.f32 %v4035, %v4130
  %v4132 = vpop.f32.mrf.mxu0
  %4133 = vmatprep.mubr.f32.mxu0 0.0
  %4134 = vmatmul.mubr.f32.gmra.mxu0 %v4054
  %v4135 = vpop.f32.mrf.mxu0
  %v4136 = vadd.f32 %v4040, %v4135
  %v4137 = vpop.f32.mrf.mxu0
  %4138 = vmatprep.mubr.f32.mxu0 0.0
  %4139 = vmatmul.mubr.f32.gmra.mxu0 %v4057
  %v4140 = vpop.f32.mrf.mxu0
  %v4141 = vadd.f32 %v4045, %v4140
  %v4142 = vpop.f32.mrf.mxu0
  %4143 = vdwg.mxu0
  %vm4144 = vcmp.gt.f32.partialorder %v4126, 0.0
  %vm4145 = vcmp.gt.f32.partialorder %v4131, 0.0
  %vm4146 = vcmp.gt.f32.partialorder %v4136, 0.0
  %vm4147 = vcmp.gt.f32.partialorder %v4141, 0.0
  %v4148 = vmul.f32 %v4126, 0.2
  %v4149 = vmul.f32 %v4131, 0.2
  %v4150 = vmul.f32 %v4136, 0.2
  %v4151 = vmul.f32 %v4141, 0.2
  %v4152 = vsel %vm4144, %v4126, %v4148
  %v4153 = vsel %vm4145, %v4131, %v4149
  %v4154 = vsel %vm4146, %v4136, %v4150
  %v4155 = vsel %vm4147, %v4141, %v4151
  %s4156 = scalar_lea.vmem %s7, 384
  %v4157 = vld [vmem:[%s4156] sm:$0xff]
  %v4158 = vld [vmem:[%s4156 + $0x8] sm:$0xff]
  %v4159 = vld [vmem:[%s4156 + $0x10] sm:$0xff]
  %v4160 = vld [vmem:[%s4156 + $0x18] sm:$0xff]
  %v4161 = vld [vmem:[%s4156 + $0x20] sm:$0xff]
  %v4162 = vld [vmem:[%s4156 + $0x28] sm:$0xff]
  %v4163 = vld [vmem:[%s4156 + $0x30] sm:$0xff]
  %v4164 = vld [vmem:[%s4156 + $0x38] sm:$0xff]
  %v4165 = vld [vmem:[%s4156 + $0x40] sm:$0xff]
  %v4166 = vld [vmem:[%s4156 + $0x48] sm:$0xff]
  %v4167 = vld [vmem:[%s4156 + $0x50] sm:$0xff]
  %v4168 = vld [vmem:[%s4156 + $0x58] sm:$0xff]
  %v4169 = vld [vmem:[%s4156 + $0x60] sm:$0xff]
  %v4170 = vld [vmem:[%s4156 + $0x68] sm:$0xff]
  %v4171 = vld [vmem:[%s4156 + $0x70] sm:$0xff]
  %v4172 = vld [vmem:[%s4156 + $0x78] sm:$0xff]
  %v4174 = vsel %vm1086, %v4157, 0
  %v4177 = vsel %vm1086, %v4158, 0
  %v4180 = vsel %vm1086, %v4159, 0
  %v4183 = vsel %vm1086, %v4160, 0
  %v4186 = vsel %vm1086, %v4161, 0
  %v4189 = vsel %vm1086, %v4162, 0
  %v4192 = vsel %vm1086, %v4163, 0
  %v4195 = vsel %vm1086, %v4164, 0
  %v4198 = vsel %vm1086, %v4165, 0
  %v4201 = vsel %vm1086, %v4166, 0
  %v4204 = vsel %vm1086, %v4167, 0
  %v4207 = vsel %vm1086, %v4168, 0
  %v4210 = vsel %vm1086, %v4169, 0
  %v4213 = vsel %vm1086, %v4170, 0
  %v4216 = vsel %vm1086, %v4171, 0
  %v4219 = vsel %vm1086, %v4172, 0
  %4221 = vmatprep.subr.mxu0 0.0
  %4222 = vmatpush1.msra.mxu0 0.0
  %4223 = vmatprep.subr.mxu0 0.0
  %4224 = vmatpush1.msra.mxu0 0.0
  %4225 = vmatprep.subr.mxu0 0.0
  %4226 = vmatpush1.msra.mxu0 0.0
  %4227 = vmatprep.subr.mxu0 0.0
  %4228 = vmatpush1.msra.mxu0 0.0
  %4229 = vmatprep.subr.mxu0 0.0
  %4230 = vmatpush1.msra.mxu0 0.0
  %4231 = vmatprep.subr.mxu0 0.0
  %4232 = vmatpush1.msra.mxu0 0.0
  %4233 = vmatprep.subr.mxu0 0.0
  %4234 = vmatpush1.msra.mxu0 0.0
  %4235 = vmatprep.subr.mxu0 0.0
  %4236 = vmatpush1.msra.mxu0 0.0
  %4237 = vmatprep.subr.mxu0 0.0
  %4238 = vmatpush1.msra.mxu0 0.0
  %4239 = vmatprep.subr.mxu0 0.0
  %4240 = vmatpush1.msra.mxu0 0.0
  %4241 = vmatprep.subr.mxu0 0.0
  %4242 = vmatpush1.msra.mxu0 0.0
  %4243 = vmatprep.subr.mxu0 0.0
  %4244 = vmatpush1.msra.mxu0 0.0
  %4245 = vmatprep.subr.mxu0 0.0
  %4246 = vmatpush1.msra.mxu0 %v4155
  %4247 = vmatprep.subr.mxu0 0.0
  %4248 = vmatpush1.msra.mxu0 %v4154
  %4249 = vmatprep.subr.mxu0 0.0
  %4250 = vmatpush1.msra.mxu0 %v4153
  %4251 = vmatprep.subr.mxu0 0.0
  %4252 = vmatpush1.msra.mxu0 %v4152
  %4253 = vmatprep.subr.mxu0 0.0
  %4254 = vmatpush2.msra.mxu0 0.0
  %4255 = vmatprep.subr.mxu0 0.0
  %4256 = vmatpush2.msra.mxu0 0.0
  %4257 = vmatprep.subr.mxu0 0.0
  %4258 = vmatpush2.msra.mxu0 0.0
  %4259 = vmatprep.subr.mxu0 0.0
  %4260 = vmatpush2.msra.mxu0 0.0
  %4261 = vmatprep.subr.mxu0 0.0
  %4262 = vmatpush2.msra.mxu0 0.0
  %4263 = vmatprep.subr.mxu0 0.0
  %4264 = vmatpush2.msra.mxu0 0.0
  %4265 = vmatprep.subr.mxu0 0.0
  %4266 = vmatpush2.msra.mxu0 0.0
  %4267 = vmatprep.subr.mxu0 0.0
  %4268 = vmatpush2.msra.mxu0 0.0
  %4269 = vmatprep.subr.mxu0 0.0
  %4270 = vmatpush2.msra.mxu0 0.0
  %4271 = vmatprep.subr.mxu0 0.0
  %4272 = vmatpush2.msra.mxu0 0.0
  %4273 = vmatprep.subr.mxu0 0.0
  %4274 = vmatpush2.msra.mxu0 0.0
  %4275 = vmatprep.subr.mxu0 0.0
  %4276 = vmatpush2.msra.mxu0 0.0
  %4277 = vmatprep.subr.mxu0 0.0
  %4278 = vmatpush2.msra.mxu0 0.0
  %4279 = vmatprep.subr.mxu0 0.0
  %4280 = vmatpush2.msra.mxu0 0.0
  %4281 = vmatprep.subr.mxu0 0.0
  %4282 = vmatpush2.msra.mxu0 0.0
  %4283 = vmatprep.subr.mxu0 0.0
  %4284 = vmatpush2.msra.mxu0 0.0
  %4285 = vmatprep.mubr.f32.mxu0 0.0
  %4286 = vmatmul.mubr.f32.gmra.mxu0 %v4174
  %v4287 = vpop.f32.mrf.mxu0
  %v4288 = vadd.f32 0.0, %v4287
  %v4289 = vpop.f32.mrf.mxu0
  %4290 = vmatprep.mubr.f32.mxu0 0.0
  %4291 = vmatmul.mubr.f32.gmra.mxu0 %v4177
  %v4292 = vpop.f32.mrf.mxu0
  %v4293 = vadd.f32 0.0, %v4292
  %v4294 = vpop.f32.mrf.mxu0
  %4295 = vmatprep.mubr.f32.mxu0 0.0
  %4296 = vmatmul.mubr.f32.gmra.mxu0 %v4180
  %v4297 = vpop.f32.mrf.mxu0
  %v4298 = vadd.f32 0.0, %v4297
  %v4299 = vpop.f32.mrf.mxu0
  %4300 = vmatprep.mubr.f32.mxu0 0.0
  %4301 = vmatmul.mubr.f32.gmra.mxu0 %v4183
  %v4302 = vpop.f32.mrf.mxu0
  %v4303 = vadd.f32 0.0, %v4302
  %v4304 = vpop.f32.mrf.mxu0
  %4305 = vmatprep.mubr.f32.mxu0 0.0
  %4306 = vmatmul.mubr.f32.gmra.mxu0 %v4186
  %v4307 = vpop.f32.mrf.mxu0
  %v4308 = vadd.f32 0.0, %v4307
  %v4309 = vpop.f32.mrf.mxu0
  %4310 = vmatprep.mubr.f32.mxu0 0.0
  %4311 = vmatmul.mubr.f32.gmra.mxu0 %v4189
  %v4312 = vpop.f32.mrf.mxu0
  %v4313 = vadd.f32 0.0, %v4312
  %v4314 = vpop.f32.mrf.mxu0
  %4315 = vmatprep.mubr.f32.mxu0 0.0
  %4316 = vmatmul.mubr.f32.gmra.mxu0 %v4192
  %v4317 = vpop.f32.mrf.mxu0
  %v4318 = vadd.f32 0.0, %v4317
  %v4319 = vpop.f32.mrf.mxu0
  %4320 = vmatprep.mubr.f32.mxu0 0.0
  %4321 = vmatmul.mubr.f32.gmra.mxu0 %v4195
  %v4322 = vpop.f32.mrf.mxu0
  %v4323 = vadd.f32 0.0, %v4322
  %v4324 = vpop.f32.mrf.mxu0
  %4325 = vmatprep.mubr.f32.mxu0 0.0
  %4326 = vmatmul.mubr.f32.gmra.mxu0 %v4198
  %v4327 = vpop.f32.mrf.mxu0
  %v4328 = vadd.f32 0.0, %v4327
  %v4329 = vpop.f32.mrf.mxu0
  %4330 = vmatprep.mubr.f32.mxu0 0.0
  %4331 = vmatmul.mubr.f32.gmra.mxu0 %v4201
  %v4332 = vpop.f32.mrf.mxu0
  %v4333 = vadd.f32 0.0, %v4332
  %v4334 = vpop.f32.mrf.mxu0
  %4335 = vmatprep.mubr.f32.mxu0 0.0
  %4336 = vmatmul.mubr.f32.gmra.mxu0 %v4204
  %v4337 = vpop.f32.mrf.mxu0
  %v4338 = vadd.f32 0.0, %v4337
  %v4339 = vpop.f32.mrf.mxu0
  %4340 = vmatprep.mubr.f32.mxu0 0.0
  %4341 = vmatmul.mubr.f32.gmra.mxu0 %v4207
  %v4342 = vpop.f32.mrf.mxu0
  %v4343 = vadd.f32 0.0, %v4342
  %v4344 = vpop.f32.mrf.mxu0
  %4345 = vmatprep.mubr.f32.mxu0 0.0
  %4346 = vmatmul.mubr.f32.gmra.mxu0 %v4210
  %v4347 = vpop.f32.mrf.mxu0
  %v4348 = vadd.f32 0.0, %v4347
  %v4349 = vpop.f32.mrf.mxu0
  %4350 = vmatprep.mubr.f32.mxu0 0.0
  %4351 = vmatmul.mubr.f32.gmra.mxu0 %v4213
  %v4352 = vpop.f32.mrf.mxu0
  %v4353 = vadd.f32 0.0, %v4352
  %v4354 = vpop.f32.mrf.mxu0
  %4355 = vmatprep.mubr.f32.mxu0 0.0
  %4356 = vmatmul.mubr.f32.gmra.mxu0 %v4216
  %v4357 = vpop.f32.mrf.mxu0
  %v4358 = vadd.f32 0.0, %v4357
  %v4359 = vpop.f32.mrf.mxu0
  %4360 = vmatprep.mubr.f32.mxu0 0.0
  %4361 = vmatmul.mubr.f32.gmra.mxu0 %v4219
  %v4362 = vpop.f32.mrf.mxu0
  %v4363 = vadd.f32 0.0, %v4362
  %v4364 = vpop.f32.mrf.mxu0
  %4365 = vdwg.mxu0
  %v4366 = vmul.u32 %v3795, 2
  %v4367 = vmul.u32 %v3796, 2
  %vm4368 = vcmp.eq.s32.totalorder %v384, %v4366
  %vm4369 = vcmp.eq.s32.totalorder %v384, %v4367
  %v4370 = vsel %vm4368, 1.0, 0.0
  %v4371 = vsel %vm4369, 1.0, 0.0
  %v4372 = vadd.s32 %v4366, 1
  %v4373 = vadd.s32 %v4367, 1
  %vm4374 = vcmp.eq.s32.totalorder %v384, %v4372
  %vm4375 = vcmp.eq.s32.totalorder %v384, %v4373
  %v4376 = vsel %vm4374, 1.0, 0.0
  %v4377 = vsel %vm4375, 1.0, 0.0
  %v4378 = vadd.s32 %v4366, 2
  %v4379 = vadd.s32 %v4367, 2
  %vm4380 = vcmp.eq.s32.totalorder %v384, %v4378
  %vm4381 = vcmp.eq.s32.totalorder %v384, %v4379
  %vm4382 = vcmp.lt.s32.totalorder %v382, 0
  %v4383 = vsub.s32 0, %v382
  %v4384 = vsel %vm4382, %v4383, %v382
  %v4385 = vshrl.u32 %v4384, 4
  %v4386 = vand.u32 %v4384, 15
  %v4387 = vsub.s32 0, %v4386
  %v4388 = vsel %vm4382, %v4387, %v4386
  %vm4389 = vcmp.lt.s32.totalorder %v2753, 0
  %v4390 = vsub.s32 0, %v2753
  %v4391 = vsel %vm4389, %v4390, %v2753
  %v4392 = vshrl.u32 %v4391, 4
  %v4393 = vand.u32 %v4391, 15
  %v4394 = vsub.s32 0, %v4393
  %v4395 = vsel %vm4389, %v4394, %v4393
  %vm4396 = vcmp.lt.s32.totalorder %v3795, 0
  %v4397 = vsub.s32 0, %v3795
  %v4398 = vsel %vm4396, %v4397, %v3795
  %v4399 = vshrl.u32 %v4398, 4
  %v4400 = vand.u32 %v4398, 15
  %v4401 = vsub.s32 0, %v4400
  %v4402 = vsel %vm4396, %v4401, %v4400
  %vm4403 = vcmp.lt.s32.totalorder %v3796, 0
  %v4404 = vsub.s32 0, %v3796
  %v4405 = vsel %vm4403, %v4404, %v3796
  %v4406 = vshrl.u32 %v4405, 4
  %v4407 = vand.u32 %v4405, 15
  %v4408 = vsub.s32 0, %v4407
  %v4409 = vsel %vm4403, %v4408, %v4407
  %vm4410 = vcmp.ne.s32.totalorder %v4388, 0
  %vm4411 = vcmp.ne.s32.totalorder %v4395, 0
  %vm4412 = vcmp.ne.s32.totalorder %v4402, 0
  %vm4413 = vcmp.ne.s32.totalorder %v4409, 0
  %vm4414 = vcmp.lt.s32.totalorder %v4388, 0
  %vm4415 = vcmp.lt.s32.totalorder %v4395, 0
  %vm4416 = vcmp.lt.s32.totalorder %v4402, 0
  %vm4417 = vcmp.lt.s32.totalorder %v4409, 0
  %vm4418 = vmand %vm4414, %vm4410
  %vm4419 = vmand %vm4415, %vm4411
  %vm4420 = vmand %vm4416, %vm4412
  %vm4421 = vmand %vm4417, %vm4413
  %v4422 = vadd.s32 %v4388, 16
  %v4423 = vadd.s32 %v4395, 16
  %v4424 = vadd.s32 %v4402, 16
  %v4425 = vadd.s32 %v4409, 16
  %v4426 = vsel %vm4418, %v4422, %v4388
  %v4427 = vsel %vm4419, %v4423, %v4395
  %v4428 = vsel %vm4420, %v4424, %v4402
  %v4429 = vsel %vm4421, %v4425, %v4409
  %vm4430 = vcmp.ne.s32.totalorder %v4426, 15
  %vm4431 = vcmp.ne.s32.totalorder %v4427, 15
  %vm4432 = vcmp.ne.s32.totalorder %v4428, 15
  %vm4433 = vcmp.ne.s32.totalorder %v4429, 15
  %vm4434 = vmand %vm1281, %vm4430
  %vm4435 = vmand %vm3319, %vm4431
  %vm4436 = vmand %vm4380, %vm4432
  %vm4437 = vmand %vm4381, %vm4433
  %v4438 = vsel %vm4434, 1.0, 0.0
  %v4439 = vsel %vm4435, 1.0, 0.0
  %v4440 = vsel %vm4436, 1.0, 0.0
  %v4441 = vsel %vm4437, 1.0, 0.0
  %v4442 = vsub.s32 %v4366, 1
  %v4443 = vsub.s32 %v4367, 1
  %vm4444 = vcmp.eq.s32.totalorder %v384, %v4442
  %vm4445 = vcmp.eq.s32.totalorder %v384, %v4443
  %vm4446 = vcmp.ne.s32.totalorder %v4426, 0
  %vm4447 = vcmp.ne.s32.totalorder %v4427, 0
  %vm4448 = vcmp.ne.s32.totalorder %v4428, 0
  %vm4449 = vcmp.ne.s32.totalorder %v4429, 0
  %vm4450 = vmand %vm1298, %vm4446
  %vm4451 = vmand %vm3351, %vm4447
  %vm4452 = vmand %vm4444, %vm4448
  %vm4453 = vmand %vm4445, %vm4449
  %v4454 = vsel %vm4450, 1.0, 0.0
  %v4455 = vsel %vm4451, 1.0, 0.0
  %v4456 = vsel %vm4452, 1.0, 0.0
  %v4457 = vsel %vm4453, 1.0, 0.0
  %v4459 = vsel %vm1086, %v4328, 0
  %v4462 = vsel %vm1086, %v4333, 0
  %v4465 = vsel %vm1086, %v4338, 0
  %v4468 = vsel %vm1086, %v4343, 0
  %4470 = vmatprep.subr.mxu0 0.0
  %4471 = vmatpush1.msra.mxu0 0.0
  %4472 = vmatprep.subr.mxu0 0.0
  %4473 = vmatpush1.msra.mxu0 0.0
  %4474 = vmatprep.subr.mxu0 0.0
  %4475 = vmatpush1.msra.mxu0 0.0
  %4476 = vmatprep.subr.mxu0 0.0
  %4477 = vmatpush1.msra.mxu0 0.0
  %4478 = vmatprep.subr.mxu0 0.0
  %4479 = vmatpush1.msra.mxu0 0.0
  %4480 = vmatprep.subr.mxu0 0.0
  %4481 = vmatpush1.msra.mxu0 0.0
  %4482 = vmatprep.subr.mxu0 0.0
  %4483 = vmatpush1.msra.mxu0 0.0
  %4484 = vmatprep.subr.mxu0 0.0
  %4485 = vmatpush1.msra.mxu0 0.0
  %4486 = vmatprep.subr.mxu0 0.0
  %4487 = vmatpush1.msra.mxu0 0.0
  %4488 = vmatprep.subr.mxu0 0.0
  %4489 = vmatpush1.msra.mxu0 0.0
  %4490 = vmatprep.subr.mxu0 0.0
  %4491 = vmatpush1.msra.mxu0 0.0
  %4492 = vmatprep.subr.mxu0 0.0
  %4493 = vmatpush1.msra.mxu0 0.0
  %4494 = vmatprep.subr.mxu0 0.0
  %4495 = vmatpush1.msra.mxu0 %v4377
  %4496 = vmatprep.subr.mxu0 0.0
  %4497 = vmatpush1.msra.mxu0 %v4376
  %4498 = vmatprep.subr.mxu0 0.0
  %4499 = vmatpush1.msra.mxu0 %v3317
  %4500 = vmatprep.subr.mxu0 0.0
  %4501 = vmatpush1.msra.mxu0 %v517
  %4502 = vmatprep.subr.mxu0 0.0
  %4503 = vmatpush2.msra.mxu0 0.0
  %4504 = vmatprep.subr.mxu0 0.0
  %4505 = vmatpush2.msra.mxu0 0.0
  %4506 = vmatprep.subr.mxu0 0.0
  %4507 = vmatpush2.msra.mxu0 0.0
  %4508 = vmatprep.subr.mxu0 0.0
  %4509 = vmatpush2.msra.mxu0 0.0
  %4510 = vmatprep.subr.mxu0 0.0
  %4511 = vmatpush2.msra.mxu0 0.0
  %4512 = vmatprep.subr.mxu0 0.0
  %4513 = vmatpush2.msra.mxu0 0.0
  %4514 = vmatprep.subr.mxu0 0.0
  %4515 = vmatpush2.msra.mxu0 0.0
  %4516 = vmatprep.subr.mxu0 0.0
  %4517 = vmatpush2.msra.mxu0 0.0
  %4518 = vmatprep.subr.mxu0 0.0
  %4519 = vmatpush2.msra.mxu0 0.0
  %4520 = vmatprep.subr.mxu0 0.0
  %4521 = vmatpush2.msra.mxu0 0.0
  %4522 = vmatprep.subr.mxu0 0.0
  %4523 = vmatpush2.msra.mxu0 0.0
  %4524 = vmatprep.subr.mxu0 0.0
  %4525 = vmatpush2.msra.mxu0 0.0
  %4526 = vmatprep.subr.mxu0 0.0
  %4527 = vmatpush2.msra.mxu0 0.0
  %4528 = vmatprep.subr.mxu0 0.0
  %4529 = vmatpush2.msra.mxu0 0.0
  %4530 = vmatprep.subr.mxu0 0.0
  %4531 = vmatpush2.msra.mxu0 0.0
  %4532 = vmatprep.subr.mxu0 0.0
  %4533 = vmatpush2.msra.mxu0 0.0
  %4534 = vmatprep.mubr.f32.mxu0 0.0
  %4535 = vmatmul.mubr.f32.gmra.mxu0 %v4459
  %v4536 = vpop.f32.mrf.mxu0
  %v4537 = vadd.f32 0.0, %v4536
  %v4538 = vpop.f32.mrf.mxu0
  %4539 = vmatprep.mubr.f32.mxu0 0.0
  %4540 = vmatmul.mubr.f32.gmra.mxu0 %v4462
  %v4541 = vpop.f32.mrf.mxu0
  %v4542 = vadd.f32 0.0, %v4541
  %v4543 = vpop.f32.mrf.mxu0
  %4544 = vmatprep.mubr.f32.mxu0 0.0
  %4545 = vmatmul.mubr.f32.gmra.mxu0 %v4465
  %v4546 = vpop.f32.mrf.mxu0
  %v4547 = vadd.f32 0.0, %v4546
  %v4548 = vpop.f32.mrf.mxu0
  %4549 = vmatprep.mubr.f32.mxu0 0.0
  %4550 = vmatmul.mubr.f32.gmra.mxu0 %v4468
  %v4551 = vpop.f32.mrf.mxu0
  %v4552 = vadd.f32 0.0, %v4551
  %v4553 = vpop.f32.mrf.mxu0
  %4554 = vdwg.mxu0
  %v4556 = vsel %vm1086, %v4308, 0
  %v4559 = vsel %vm1086, %v4313, 0
  %v4562 = vsel %vm1086, %v4318, 0
  %v4565 = vsel %vm1086, %v4323, 0
  %4567 = vmatprep.subr.mxu0 0.0
  %4568 = vmatpush1.msra.mxu0 0.0
  %4569 = vmatprep.subr.mxu0 0.0
  %4570 = vmatpush1.msra.mxu0 0.0
  %4571 = vmatprep.subr.mxu0 0.0
  %4572 = vmatpush1.msra.mxu0 0.0
  %4573 = vmatprep.subr.mxu0 0.0
  %4574 = vmatpush1.msra.mxu0 0.0
  %4575 = vmatprep.subr.mxu0 0.0
  %4576 = vmatpush1.msra.mxu0 0.0
  %4577 = vmatprep.subr.mxu0 0.0
  %4578 = vmatpush1.msra.mxu0 0.0
  %4579 = vmatprep.subr.mxu0 0.0
  %4580 = vmatpush1.msra.mxu0 0.0
  %4581 = vmatprep.subr.mxu0 0.0
  %4582 = vmatpush1.msra.mxu0 0.0
  %4583 = vmatprep.subr.mxu0 0.0
  %4584 = vmatpush1.msra.mxu0 0.0
  %4585 = vmatprep.subr.mxu0 0.0
  %4586 = vmatpush1.msra.mxu0 0.0
  %4587 = vmatprep.subr.mxu0 0.0
  %4588 = vmatpush1.msra.mxu0 0.0
  %4589 = vmatprep.subr.mxu0 0.0
  %4590 = vmatpush1.msra.mxu0 0.0
  %4591 = vmatprep.subr.mxu0 0.0
  %4592 = vmatpush1.msra.mxu0 %v4371
  %4593 = vmatprep.subr.mxu0 0.0
  %4594 = vmatpush1.msra.mxu0 %v4370
  %4595 = vmatprep.subr.mxu0 0.0
  %4596 = vmatpush1.msra.mxu0 %v3314
  %4597 = vmatprep.subr.mxu0 0.0
  %4598 = vmatpush1.msra.mxu0 %v387
  %4599 = vmatprep.subr.mxu0 0.0
  %4600 = vmatpush2.msra.mxu0 0.0
  %4601 = vmatprep.subr.mxu0 0.0
  %4602 = vmatpush2.msra.mxu0 0.0
  %4603 = vmatprep.subr.mxu0 0.0
  %4604 = vmatpush2.msra.mxu0 0.0
  %4605 = vmatprep.subr.mxu0 0.0
  %4606 = vmatpush2.msra.mxu0 0.0
  %4607 = vmatprep.subr.mxu0 0.0
  %4608 = vmatpush2.msra.mxu0 0.0
  %4609 = vmatprep.subr.mxu0 0.0
  %4610 = vmatpush2.msra.mxu0 0.0
  %4611 = vmatprep.subr.mxu0 0.0
  %4612 = vmatpush2.msra.mxu0 0.0
  %4613 = vmatprep.subr.mxu0 0.0
  %4614 = vmatpush2.msra.mxu0 0.0
  %4615 = vmatprep.subr.mxu0 0.0
  %4616 = vmatpush2.msra.mxu0 0.0
  %4617 = vmatprep.subr.mxu0 0.0
  %4618 = vmatpush2.msra.mxu0 0.0
  %4619 = vmatprep.subr.mxu0 0.0
  %4620 = vmatpush2.msra.mxu0 0.0
  %4621 = vmatprep.subr.mxu0 0.0
  %4622 = vmatpush2.msra.mxu0 0.0
  %4623 = vmatprep.subr.mxu0 0.0
  %4624 = vmatpush2.msra.mxu0 0.0
  %4625 = vmatprep.subr.mxu0 0.0
  %4626 = vmatpush2.msra.mxu0 0.0
  %4627 = vmatprep.subr.mxu0 0.0
  %4628 = vmatpush2.msra.mxu0 0.0
  %4629 = vmatprep.subr.mxu0 0.0
  %4630 = vmatpush2.msra.mxu0 0.0
  %4631 = vmatprep.mubr.f32.mxu0 0.0
  %4632 = vmatmul.mubr.f32.gmra.mxu0 %v4556
  %v4633 = vpop.f32.mrf.mxu0
  %v4634 = vadd.f32 %v4537, %v4633
  %v4635 = vpop.f32.mrf.mxu0
  %4636 = vmatprep.mubr.f32.mxu0 0.0
  %4637 = vmatmul.mubr.f32.gmra.mxu0 %v4559
  %v4638 = vpop.f32.mrf.mxu0
  %v4639 = vadd.f32 %v4542, %v4638
  %v4640 = vpop.f32.mrf.mxu0
  %4641 = vmatprep.mubr.f32.mxu0 0.0
  %4642 = vmatmul.mubr.f32.gmra.mxu0 %v4562
  %v4643 = vpop.f32.mrf.mxu0
  %v4644 = vadd.f32 %v4547, %v4643
  %v4645 = vpop.f32.mrf.mxu0
  %4646 = vmatprep.mubr.f32.mxu0 0.0
  %4647 = vmatmul.mubr.f32.gmra.mxu0 %v4565
  %v4648 = vpop.f32.mrf.mxu0
  %v4649 = vadd.f32 %v4552, %v4648
  %v4650 = vpop.f32.mrf.mxu0
  %4651 = vdwg.mxu0
  %v4653 = vsel %vm1086, %v4348, 0
  %v4656 = vsel %vm1086, %v4353, 0
  %v4659 = vsel %vm1086, %v4358, 0
  %v4662 = vsel %vm1086, %v4363, 0
  %4664 = vmatprep.subr.mxu0 0.0
  %4665 = vmatpush1.msra.mxu0 0.0
  %4666 = vmatprep.subr.mxu0 0.0
  %4667 = vmatpush1.msra.mxu0 0.0
  %4668 = vmatprep.subr.mxu0 0.0
  %4669 = vmatpush1.msra.mxu0 0.0
  %4670 = vmatprep.subr.mxu0 0.0
  %4671 = vmatpush1.msra.mxu0 0.0
  %4672 = vmatprep.subr.mxu0 0.0
  %4673 = vmatpush1.msra.mxu0 0.0
  %4674 = vmatprep.subr.mxu0 0.0
  %4675 = vmatpush1.msra.mxu0 0.0
  %4676 = vmatprep.subr.mxu0 0.0
  %4677 = vmatpush1.msra.mxu0 0.0
  %4678 = vmatprep.subr.mxu0 0.0
  %4679 = vmatpush1.msra.mxu0 0.0
  %4680 = vmatprep.subr.mxu0 0.0
  %4681 = vmatpush1.msra.mxu0 0.0
  %4682 = vmatprep.subr.mxu0 0.0
  %4683 = vmatpush1.msra.mxu0 0.0
  %4684 = vmatprep.subr.mxu0 0.0
  %4685 = vmatpush1.msra.mxu0 0.0
  %4686 = vmatprep.subr.mxu0 0.0
  %4687 = vmatpush1.msra.mxu0 0.0
  %4688 = vmatprep.subr.mxu0 0.0
  %4689 = vmatpush1.msra.mxu0 %v4441
  %4690 = vmatprep.subr.mxu0 0.0
  %4691 = vmatpush1.msra.mxu0 %v4440
  %4692 = vmatprep.subr.mxu0 0.0
  %4693 = vmatpush1.msra.mxu0 %v4439
  %4694 = vmatprep.subr.mxu0 0.0
  %4695 = vmatpush1.msra.mxu0 %v4438
  %4696 = vmatprep.subr.mxu0 0.0
  %4697 = vmatpush2.msra.mxu0 0.0
  %4698 = vmatprep.subr.mxu0 0.0
  %4699 = vmatpush2.msra.mxu0 0.0
  %4700 = vmatprep.subr.mxu0 0.0
  %4701 = vmatpush2.msra.mxu0 0.0
  %4702 = vmatprep.subr.mxu0 0.0
  %4703 = vmatpush2.msra.mxu0 0.0
  %4704 = vmatprep.subr.mxu0 0.0
  %4705 = vmatpush2.msra.mxu0 0.0
  %4706 = vmatprep.subr.mxu0 0.0
  %4707 = vmatpush2.msra.mxu0 0.0
  %4708 = vmatprep.subr.mxu0 0.0
  %4709 = vmatpush2.msra.mxu0 0.0
  %4710 = vmatprep.subr.mxu0 0.0
  %4711 = vmatpush2.msra.mxu0 0.0
  %4712 = vmatprep.subr.mxu0 0.0
  %4713 = vmatpush2.msra.mxu0 0.0
  %4714 = vmatprep.subr.mxu0 0.0
  %4715 = vmatpush2.msra.mxu0 0.0
  %4716 = vmatprep.subr.mxu0 0.0
  %4717 = vmatpush2.msra.mxu0 0.0
  %4718 = vmatprep.subr.mxu0 0.0
  %4719 = vmatpush2.msra.mxu0 0.0
  %4720 = vmatprep.subr.mxu0 0.0
  %4721 = vmatpush2.msra.mxu0 0.0
  %4722 = vmatprep.subr.mxu0 0.0
  %4723 = vmatpush2.msra.mxu0 0.0
  %4724 = vmatprep.subr.mxu0 0.0
  %4725 = vmatpush2.msra.mxu0 0.0
  %4726 = vmatprep.subr.mxu0 0.0
  %4727 = vmatpush2.msra.mxu0 0.0
  %4728 = vmatprep.mubr.f32.mxu0 0.0
  %4729 = vmatmul.mubr.f32.gmra.mxu0 %v4653
  %v4730 = vpop.f32.mrf.mxu0
  %v4731 = vadd.f32 0.0, %v4730
  %v4732 = vpop.f32.mrf.mxu0
  %4733 = vmatprep.mubr.f32.mxu0 0.0
  %4734 = vmatmul.mubr.f32.gmra.mxu0 %v4656
  %v4735 = vpop.f32.mrf.mxu0
  %v4736 = vadd.f32 0.0, %v4735
  %v4737 = vpop.f32.mrf.mxu0
  %4738 = vmatprep.mubr.f32.mxu0 0.0
  %4739 = vmatmul.mubr.f32.gmra.mxu0 %v4659
  %v4740 = vpop.f32.mrf.mxu0
  %v4741 = vadd.f32 0.0, %v4740
  %v4742 = vpop.f32.mrf.mxu0
  %4743 = vmatprep.mubr.f32.mxu0 0.0
  %4744 = vmatmul.mubr.f32.gmra.mxu0 %v4662
  %v4745 = vpop.f32.mrf.mxu0
  %v4746 = vadd.f32 0.0, %v4745
  %v4747 = vpop.f32.mrf.mxu0
  %4748 = vdwg.mxu0
  %v4749 = vadd.f32 %v4634, %v4731
  %v4750 = vadd.f32 %v4639, %v4736
  %v4751 = vadd.f32 %v4644, %v4741
  %v4752 = vadd.f32 %v4649, %v4746
  %v4754 = vsel %vm1086, %v4288, 0
  %v4757 = vsel %vm1086, %v4293, 0
  %v4760 = vsel %vm1086, %v4298, 0
  %v4763 = vsel %vm1086, %v4303, 0
  %4765 = vmatprep.subr.mxu0 0.0
  %4766 = vmatpush1.msra.mxu0 0.0
  %4767 = vmatprep.subr.mxu0 0.0
  %4768 = vmatpush1.msra.mxu0 0.0
  %4769 = vmatprep.subr.mxu0 0.0
  %4770 = vmatpush1.msra.mxu0 0.0
  %4771 = vmatprep.subr.mxu0 0.0
  %4772 = vmatpush1.msra.mxu0 0.0
  %4773 = vmatprep.subr.mxu0 0.0
  %4774 = vmatpush1.msra.mxu0 0.0
  %4775 = vmatprep.subr.mxu0 0.0
  %4776 = vmatpush1.msra.mxu0 0.0
  %4777 = vmatprep.subr.mxu0 0.0
  %4778 = vmatpush1.msra.mxu0 0.0
  %4779 = vmatprep.subr.mxu0 0.0
  %4780 = vmatpush1.msra.mxu0 0.0
  %4781 = vmatprep.subr.mxu0 0.0
  %4782 = vmatpush1.msra.mxu0 0.0
  %4783 = vmatprep.subr.mxu0 0.0
  %4784 = vmatpush1.msra.mxu0 0.0
  %4785 = vmatprep.subr.mxu0 0.0
  %4786 = vmatpush1.msra.mxu0 0.0
  %4787 = vmatprep.subr.mxu0 0.0
  %4788 = vmatpush1.msra.mxu0 0.0
  %4789 = vmatprep.subr.mxu0 0.0
  %4790 = vmatpush1.msra.mxu0 %v4457
  %4791 = vmatprep.subr.mxu0 0.0
  %4792 = vmatpush1.msra.mxu0 %v4456
  %4793 = vmatprep.subr.mxu0 0.0
  %4794 = vmatpush1.msra.mxu0 %v4455
  %4795 = vmatprep.subr.mxu0 0.0
  %4796 = vmatpush1.msra.mxu0 %v4454
  %4797 = vmatprep.subr.mxu0 0.0
  %4798 = vmatpush2.msra.mxu0 0.0
  %4799 = vmatprep.subr.mxu0 0.0
  %4800 = vmatpush2.msra.mxu0 0.0
  %4801 = vmatprep.subr.mxu0 0.0
  %4802 = vmatpush2.msra.mxu0 0.0
  %4803 = vmatprep.subr.mxu0 0.0
  %4804 = vmatpush2.msra.mxu0 0.0
  %4805 = vmatprep.subr.mxu0 0.0
  %4806 = vmatpush2.msra.mxu0 0.0
  %4807 = vmatprep.subr.mxu0 0.0
  %4808 = vmatpush2.msra.mxu0 0.0
  %4809 = vmatprep.subr.mxu0 0.0
  %4810 = vmatpush2.msra.mxu0 0.0
  %4811 = vmatprep.subr.mxu0 0.0
  %4812 = vmatpush2.msra.mxu0 0.0
  %4813 = vmatprep.subr.mxu0 0.0
  %4814 = vmatpush2.msra.mxu0 0.0
  %4815 = vmatprep.subr.mxu0 0.0
  %4816 = vmatpush2.msra.mxu0 0.0
  %4817 = vmatprep.subr.mxu0 0.0
  %4818 = vmatpush2.msra.mxu0 0.0
  %4819 = vmatprep.subr.mxu0 0.0
  %4820 = vmatpush2.msra.mxu0 0.0
  %4821 = vmatprep.subr.mxu0 0.0
  %4822 = vmatpush2.msra.mxu0 0.0
  %4823 = vmatprep.subr.mxu0 0.0
  %4824 = vmatpush2.msra.mxu0 0.0
  %4825 = vmatprep.subr.mxu0 0.0
  %4826 = vmatpush2.msra.mxu0 0.0
  %4827 = vmatprep.subr.mxu0 0.0
  %4828 = vmatpush2.msra.mxu0 0.0
  %4829 = vmatprep.mubr.f32.mxu0 0.0
  %4830 = vmatmul.mubr.f32.gmra.mxu0 %v4754
  %v4831 = vpop.f32.mrf.mxu0
  %v4832 = vadd.f32 0.0, %v4831
  %v4833 = vpop.f32.mrf.mxu0
  %4834 = vmatprep.mubr.f32.mxu0 0.0
  %4835 = vmatmul.mubr.f32.gmra.mxu0 %v4757
  %v4836 = vpop.f32.mrf.mxu0
  %v4837 = vadd.f32 0.0, %v4836
  %v4838 = vpop.f32.mrf.mxu0
  %4839 = vmatprep.mubr.f32.mxu0 0.0
  %4840 = vmatmul.mubr.f32.gmra.mxu0 %v4760
  %v4841 = vpop.f32.mrf.mxu0
  %v4842 = vadd.f32 0.0, %v4841
  %v4843 = vpop.f32.mrf.mxu0
  %4844 = vmatprep.mubr.f32.mxu0 0.0
  %4845 = vmatmul.mubr.f32.gmra.mxu0 %v4763
  %v4846 = vpop.f32.mrf.mxu0
  %v4847 = vadd.f32 0.0, %v4846
  %v4848 = vpop.f32.mrf.mxu0
  %4849 = vdwg.mxu0
  %v4850 = vadd.f32 %v4749, %v4832
  %v4851 = vadd.f32 %v4750, %v4837
  %v4852 = vadd.f32 %v4751, %v4842
  %v4853 = vadd.f32 %v4752, %v4847
  %s4854 = scalar_lea.vmem %s8, 96
  %v4855 = vld [vmem:[%s4854] sm:$0xff]
  %v4856 = vld [vmem:[%s4854 + $0x8] sm:$0xff]
  %v4857 = vld [vmem:[%s4854 + $0x10] sm:$0xff]
  %v4858 = vld [vmem:[%s4854 + $0x18] sm:$0xff]
  %4860 = vset.pattern.permute.xlu0 0
  %4861 = vperm.xlu0 %4860, %v4855
  %v4862 = vpop.permute.xlu0 %4861
  %4865 = vset.pattern.permute.xlu0 0
  %4866 = vperm.xlu0 %4865, %v4856
  %v4867 = vpop.permute.xlu0 %4866
  %4870 = vset.pattern.permute.xlu0 0
  %4871 = vperm.xlu0 %4870, %v4857
  %v4872 = vpop.permute.xlu0 %4871
  %4875 = vset.pattern.permute.xlu0 0
  %4876 = vperm.xlu0 %4875, %v4858
  %v4877 = vpop.permute.xlu0 %4876
  %v4879 = vadd.f32 %v4850, %v4862
  %v4880 = vadd.f32 %v4851, %v4867
  %v4881 = vadd.f32 %v4852, %v4872
  %v4882 = vadd.f32 %v4853, %v4877
  %vm4883 = vcmp.gt.f32.partialorder %v4879, 0.0
  %vm4884 = vcmp.gt.f32.partialorder %v4880, 0.0
  %vm4885 = vcmp.gt.f32.partialorder %v4881, 0.0
  %vm4886 = vcmp.gt.f32.partialorder %v4882, 0.0
  %v4887 = vmul.f32 %v4879, 0.2
  %v4888 = vmul.f32 %v4880, 0.2
  %v4889 = vmul.f32 %v4881, 0.2
  %v4890 = vmul.f32 %v4882, 0.2
  %v4891 = vsel %vm4883, %v4879, %v4887
  %v4892 = vsel %vm4884, %v4880, %v4888
  %v4893 = vsel %vm4885, %v4881, %v4889
  %v4894 = vsel %vm4886, %v4882, %v4890
  %4895 = vxpose.xlu0.b32.start [1/16] %v4891, 128
  %4896 = vxpose.xlu0.b32.cont [2/16] %v4892, 128
  %4897 = vxpose.xlu0.b32.cont [3/16] %v4893, 128
  %4898 = vxpose.xlu0.b32.cont [4/16] %v4894, 128
  %4899 = vxpose.xlu0.b32.cont [5/16] 0.0, 128
  %4900 = vxpose.xlu0.b32.cont [6/16] 0.0, 128
  %4901 = vxpose.xlu0.b32.cont [7/16] 0.0, 128
  %4902 = vxpose.xlu0.b32.cont [8/16] 0.0, 128
  %4903 = vxpose.xlu0.b32.cont [9/16] 0.0, 128
  %4904 = vxpose.xlu0.b32.cont [10/16] 0.0, 128
  %4905 = vxpose.xlu0.b32.cont [11/16] 0.0, 128
  %4906 = vxpose.xlu0.b32.cont [12/16] 0.0, 128
  %4907 = vxpose.xlu0.b32.cont [13/16] 0.0, 128
  %4908 = vxpose.xlu0.b32.cont [14/16] 0.0, 128
  %4909 = vxpose.xlu0.b32.cont [15/16] 0.0, 128
  %4910 = vxpose.xlu0.b32.end [16/16] 0.0, 128
  %v4911 = vpop.trf.xlu0
  %v4912 = vpop.trf.xlu0
  %v4913 = vpop.trf.xlu0
  %v4914 = vpop.trf.xlu0
  %v4915 = vpop.trf.xlu0
  %v4916 = vpop.trf.xlu0
  %v4917 = vpop.trf.xlu0
  %v4918 = vpop.trf.xlu0
  %v4919 = vpop.trf.xlu0
  %v4920 = vpop.trf.xlu0
  %v4921 = vpop.trf.xlu0
  %v4922 = vpop.trf.xlu0
  %v4923 = vpop.trf.xlu0
  %v4924 = vpop.trf.xlu0
  %v4925 = vpop.trf.xlu0
  %v4926 = vpop.trf.xlu0
  %v4927 = vld [vmem:[%s9] sm:$0xff]
  %v4928 = vld [vmem:[%s9 + $0x8] sm:$0xff]
  %v4929 = vld [vmem:[%s9 + $0x10] sm:$0xff]
  %v4930 = vld [vmem:[%s9 + $0x18] sm:$0xff]
  %v4931 = vld [vmem:[%s10] sm:$0x1]
  %v4933 = vlaneseq
  %v4934 = vshrl.u32 %v4933, 7
  %v4935 = vsub.s32 0, %v4934
  %v4936 = vrot.slane %v4931, %v4935
  %v4939 = vsel %vm1086, %v4911, 0
  %v4942 = vsel %vm1086, %v4912, 0
  %v4945 = vsel %vm1086, %v4913, 0
  %v4948 = vsel %vm1086, %v4914, 0
  %v4951 = vsel %vm1086, %v4915, 0
  %v4954 = vsel %vm1086, %v4916, 0
  %v4957 = vsel %vm1086, %v4917, 0
  %v4960 = vsel %vm1086, %v4918, 0
  %4962 = vmatprep.subr.mxu0 0.0
  %4963 = vmatpush1.msra.mxu0 0.0
  %4964 = vmatprep.subr.mxu0 0.0
  %4965 = vmatpush1.msra.mxu0 0.0
  %4966 = vmatprep.subr.mxu0 0.0
  %4967 = vmatpush1.msra.mxu0 0.0
  %4968 = vmatprep.subr.mxu0 0.0
  %4969 = vmatpush1.msra.mxu0 0.0
  %4970 = vmatprep.subr.mxu0 0.0
  %4971 = vmatpush1.msra.mxu0 0.0
  %4972 = vmatprep.subr.mxu0 0.0
  %4973 = vmatpush1.msra.mxu0 0.0
  %4974 = vmatprep.subr.mxu0 0.0
  %4975 = vmatpush1.msra.mxu0 0.0
  %4976 = vmatprep.subr.mxu0 0.0
  %4977 = vmatpush1.msra.mxu0 0.0
  %4978 = vmatprep.subr.mxu0 0.0
  %4979 = vmatpush1.msra.mxu0 0.0
  %4980 = vmatprep.subr.mxu0 0.0
  %4981 = vmatpush1.msra.mxu0 0.0
  %4982 = vmatprep.subr.mxu0 0.0
  %4983 = vmatpush1.msra.mxu0 0.0
  %4984 = vmatprep.subr.mxu0 0.0
  %4985 = vmatpush1.msra.mxu0 0.0
  %4986 = vmatprep.subr.mxu0 0.0
  %4987 = vmatpush1.msra.mxu0 %v4930
  %4988 = vmatprep.subr.mxu0 0.0
  %4989 = vmatpush1.msra.mxu0 %v4929
  %4990 = vmatprep.subr.mxu0 0.0
  %4991 = vmatpush1.msra.mxu0 %v4928
  %4992 = vmatprep.subr.mxu0 0.0
  %4993 = vmatpush1.msra.mxu0 %v4927
  %4994 = vmatprep.subr.mxu0 0.0
  %4995 = vmatpush2.msra.mxu0 0.0
  %4996 = vmatprep.subr.mxu0 0.0
  %4997 = vmatpush2.msra.mxu0 0.0
  %4998 = vmatprep.subr.mxu0 0.0
  %4999 = vmatpush2.msra.mxu0 0.0
  %5000 = vmatprep.subr.mxu0 0.0
  %5001 = vmatpush2.msra.mxu0 0.0
  %5002 = vmatprep.subr.mxu0 0.0
  %5003 = vmatpush2.msra.mxu0 0.0
  %5004 = vmatprep.subr.mxu0 0.0
  %5005 = vmatpush2.msra.mxu0 0.0
  %5006 = vmatprep.subr.mxu0 0.0
  %5007 = vmatpush2.msra.mxu0 0.0
  %5008 = vmatprep.subr.mxu0 0.0
  %5009 = vmatpush2.msra.mxu0 0.0
  %5010 = vmatprep.subr.mxu0 0.0
  %5011 = vmatpush2.msra.mxu0 0.0
  %5012 = vmatprep.subr.mxu0 0.0
  %5013 = vmatpush2.msra.mxu0 0.0
  %5014 = vmatprep.subr.mxu0 0.0
  %5015 = vmatpush2.msra.mxu0 0.0
  %5016 = vmatprep.subr.mxu0 0.0
  %5017 = vmatpush2.msra.mxu0 0.0
  %5018 = vmatprep.subr.mxu0 0.0
  %5019 = vmatpush2.msra.mxu0 0.0
  %5020 = vmatprep.subr.mxu0 0.0
  %5021 = vmatpush2.msra.mxu0 0.0
  %5022 = vmatprep.subr.mxu0 0.0
  %5023 = vmatpush2.msra.mxu0 0.0
  %5024 = vmatprep.subr.mxu0 0.0
  %5025 = vmatpush2.msra.mxu0 0.0
  %5026 = vmatprep.mubr.f32.mxu0 0.0
  %5027 = vmatmul.mubr.f32.gmra.mxu0 %v4939
  %v5028 = vpop.f32.mrf.mxu0
  %v5029 = vadd.f32 %v4936, %v5028
  %v5030 = vpop.f32.mrf.mxu0
  %5031 = vmatprep.mubr.f32.mxu0 0.0
  %5032 = vmatmul.mubr.f32.gmra.mxu0 %v4942
  %v5033 = vpop.f32.mrf.mxu0
  %v5034 = vadd.f32 %v4936, %v5033
  %v5035 = vpop.f32.mrf.mxu0
  %5036 = vmatprep.mubr.f32.mxu0 0.0
  %5037 = vmatmul.mubr.f32.gmra.mxu0 %v4945
  %v5038 = vpop.f32.mrf.mxu0
  %v5039 = vadd.f32 %v4936, %v5038
  %v5040 = vpop.f32.mrf.mxu0
  %5041 = vmatprep.mubr.f32.mxu0 0.0
  %5042 = vmatmul.mubr.f32.gmra.mxu0 %v4948
  %v5043 = vpop.f32.mrf.mxu0
  %v5044 = vadd.f32 %v4936, %v5043
  %v5045 = vpop.f32.mrf.mxu0
  %5046 = vmatprep.mubr.f32.mxu0 0.0
  %5047 = vmatmul.mubr.f32.gmra.mxu0 %v4951
  %v5048 = vpop.f32.mrf.mxu0
  %v5049 = vadd.f32 %v4936, %v5048
  %v5050 = vpop.f32.mrf.mxu0
  %5051 = vmatprep.mubr.f32.mxu0 0.0
  %5052 = vmatmul.mubr.f32.gmra.mxu0 %v4954
  %v5053 = vpop.f32.mrf.mxu0
  %v5054 = vadd.f32 %v4936, %v5053
  %v5055 = vpop.f32.mrf.mxu0
  %5056 = vmatprep.mubr.f32.mxu0 0.0
  %5057 = vmatmul.mubr.f32.gmra.mxu0 %v4957
  %v5058 = vpop.f32.mrf.mxu0
  %v5059 = vadd.f32 %v4936, %v5058
  %v5060 = vpop.f32.mrf.mxu0
  %5061 = vmatprep.mubr.f32.mxu0 0.0
  %5062 = vmatmul.mubr.f32.gmra.mxu0 %v4960
  %v5063 = vpop.f32.mrf.mxu0
  %v5064 = vadd.f32 %v4936, %v5063
  %v5065 = vpop.f32.mrf.mxu0
  %5066 = vdwg.mxu0
  %vm5067 = vcmask 195584
  %5068 = vst.msk [vmem:[%s11] sm:$0xff] %vm5067, %v5029
  %5069 = vst.msk [vmem:[%s11 + $0x8] sm:$0xff] %vm5067, %v5034
  %5070 = vst.msk [vmem:[%s11 + $0x10] sm:$0xff] %vm5067, %v5039
  %5071 = vst.msk [vmem:[%s11 + $0x18] sm:$0xff] %vm5067, %v5044
  %5072 = vst.msk [vmem:[%s11 + $0x20] sm:$0xff] %vm5067, %v5049
  %5073 = vst.msk [vmem:[%s11 + $0x28] sm:$0xff] %vm5067, %v5054
  %5074 = vst.msk [vmem:[%s11 + $0x30] sm:$0xff] %vm5067, %v5059
  %5075 = vst.msk [vmem:[%s11 + $0x38] sm:$0xff] %vm5067, %v5064
  // Predicated region
  $region46: #{tpu_custom_call.1} parent=0 // pred_check
    _
  $region47: #{tpu_custom_call.1} parent=0 // pred_check_branch
    %5077 = sbr.rel (0) target = $region49
  $region48: #{tpu_custom_call.1} parent=0 // pred_region
    _
  $region49: #{tpu_custom_call.1} parent=0 // pred_fallthru
    _
  // Predicated region
  $region50: #{tpu_custom_call.1} parent=0 // pred_check
    _
  $region51: #{tpu_custom_call.1} parent=0 // pred_check_branch
    %5079 = sbr.rel (0) target = $region53
  $region52: #{tpu_custom_call.1} parent=0 // pred_region
    _
  $region53: #{tpu_custom_call.1} parent=0 // pred_fallthru
    _

</llo_original>
